<compile_context>
chip_gen: v7x
topology: tpu7x:2x2x1
jax: 0.10.0
libtpu: 0.0.40
codegen_flags: <defaults>
</compile_context>

<pallas_src>
import jax
import jax.numpy as jnp
from jax.experimental import pallas as pl
from jax.experimental.pallas import tpu as pltpu

INPUT_DIM = 32
HIDDEN = 32
FF = HIDDEN * 4          # 128
HALF = HIDDEN // 2       # 16
FUSED1 = FF + HALF       # 144: [layer hidden | halting hidden]
FUSED2 = HIDDEN + 1      # 33:  [layer output | halting logit]
MAX_LAYERS = 6
MIN_LAYERS = 2
THRESHOLD = 0.9
EPS = 1e-5
BATCH = 16               # demo batch (2 tiles of 8)


# ------------------------------- kernel -------------------------------------
def _adaptive_kernel(x_ref, wp_ref, bp_ref, wf_ref, bf_ref, ws_ref, bs_ref,
                     g_ref, bt_ref,
                     out_ref, probs_ref, nsteps_ref,
                     state_sc, acc_sc, rem_sc, probs_sc, done_sc, nsteps_sc):
    tb = state_sc.shape[0]

    # ---- per-tile init (scratch persists across grid steps, so re-init here) ----
    x = x_ref[...].astype(jnp.float32)
    state_sc[...] = (jnp.dot(x, wp_ref[...], preferred_element_type=jnp.float32)
                     + bp_ref[...])
    acc_sc[...] = jnp.zeros((tb, HIDDEN), jnp.float32)
    rem_sc[...] = jnp.ones((tb, 1), jnp.float32)
    probs_sc[...] = jnp.zeros((tb, MAX_LAYERS), jnp.float32)
    done_sc[0] = jnp.int32(0)
    nsteps_sc[0] = jnp.int32(0)

    def layer_body(i):
        state = state_sc[...]

        # fused Linear #1: [layer(H->4H) | halting(H->H/2)], shared ReLU.
        h = jnp.maximum(
            jnp.dot(state, wf_ref[i], preferred_element_type=jnp.float32)
            + bf_ref[i], 0.0)

        # fused Linear #2 (block-diagonal): [layer(4H->H) | halting(H/2->1)].
        h2l = (jnp.dot(h, ws_ref[i], preferred_element_type=jnp.float32)
               + bs_ref[i])
        h2 = h2l[:, :HIDDEN]

        # LayerNorm(H)
        mu = jnp.mean(h2, axis=-1, keepdims=True)
        var = jnp.mean((h2 - mu) ** 2, axis=-1, keepdims=True)
        new_state = (h2 - mu) * jax.lax.rsqrt(var + EPS) * g_ref[i] + bt_ref[i]
        state_sc[...] = new_state

        if i >= MIN_LAYERS:
            # halting prob comes from the PRE-update state (baked into h2l).
            halt = jax.nn.sigmoid(h2l[:, HIDDEN:HIDDEN + 1])
            probs_sc[:, i:i + 1] = halt            # static 1-column VMEM store

            # ACT-style accumulation
            rem = rem_sc[...]
            step_rem = jnp.minimum(rem, halt)
            acc_sc[...] = acc_sc[...] + step_rem * new_state
            rem = rem - step_rem
            rem_sc[...] = rem

            nsteps_sc[0] = jnp.int32(i + 1)
            # PyTorch break condition (checked at end of step, i >= min_layers)
            done_sc[0] = (jnp.max(rem) < THRESHOLD).astype(jnp.int32)
        # layers i < MIN_LAYERS: halt == 0 -> acc/rem/probs provably unchanged,
        # and num_steps is overwritten by layer MIN_LAYERS which always runs.

    for i in range(MAX_LAYERS):
        if i <= MIN_LAYERS:
            layer_body(i)                 # break can't have fired yet
        else:
            @pl.when(done_sc[0] == 0)     # runtime skip once the break fired
            def _(i=i):
                layer_body(i)

    # final remainder add (remainders.sum() > 0 guard), using the frozen state
    rem = rem_sc[...]
    acc = acc_sc[...]
    acc = jnp.where(jnp.sum(rem) > 0.0, acc + rem * state_sc[...], acc)

    out_ref[...] = acc.astype(out_ref.dtype)
    probs_ref[...] = probs_sc[...]                                  # one dense store
    nsteps_ref[...] = jnp.zeros((tb, 1), jnp.int32) + nsteps_sc[0]  # per-example steps


# ------------------------------- wrapper -------------------------------------
def pack_params(raw):
    """Pack PyTorch-layout params into the fused kernel layout."""
    wp, bp, w1, b1, w2, b2, g, bt, hw1, hb1, hw2, hb2 = raw
    L = w1.shape[0]
    # fused Linear #1: concat along the output dim
    wf = jnp.concatenate([w1, hw1], axis=-1)                 # [L, H, 4H + H/2]
    bf = jnp.concatenate([b1, hb1], axis=-1)[:, None, :]     # [L, 1, 4H + H/2]
    # fused Linear #2: block-diagonal so both products remain exact
    ws = jnp.zeros((L, FUSED1, FUSED2), jnp.float32)
    ws = ws.at[:, :FF, :HIDDEN].set(w2)
    ws = ws.at[:, FF:, HIDDEN:].set(hw2[:, :, None])
    bs = jnp.concatenate([b2, hb2], axis=-1)[:, None, :]     # [L, 1, H + 1]
    return (wp, bp, wf, bf, ws, bs, g[:, None, :], bt[:, None, :])


def adaptive_computation(x, raw_params, *, batch_tile=256):
    B = x.shape[0]
    tb = min(batch_tile, B)
    assert B % tb == 0 and tb % 8 == 0, (B, tb)
    num_tiles = B // tb
    packed = pack_params(raw_params)

    def full_spec(a):
        # full-array block, constant index map -> fetched once, stays resident
        return pl.BlockSpec(a.shape, lambda b, n=a.ndim: (0,) * n)

    in_specs = ([pl.BlockSpec((tb, INPUT_DIM), lambda b: (b, 0))]
                + [full_spec(p) for p in packed])
    out_specs = (pl.BlockSpec((tb, HIDDEN), lambda b: (b, 0)),
                 pl.BlockSpec((tb, MAX_LAYERS), lambda b: (b, 0)),
                 pl.BlockSpec((tb, 1), lambda b: (b, 0)))
    out_shape = (jax.ShapeDtypeStruct((B, HIDDEN), jnp.float32),
                 jax.ShapeDtypeStruct((B, MAX_LAYERS), jnp.float32),
                 jax.ShapeDtypeStruct((B, 1), jnp.int32))
    scratch = [pltpu.VMEM((tb, HIDDEN), jnp.float32),      # state
               pltpu.VMEM((tb, HIDDEN), jnp.float32),      # accumulated_state
               pltpu.VMEM((tb, 1), jnp.float32),           # remainders
               pltpu.VMEM((tb, MAX_LAYERS), jnp.float32),  # halting probs
               pltpu.SMEM((1,), jnp.int32),                # done flag
               pltpu.SMEM((1,), jnp.int32)]                # num_steps

    out, probs, nsteps = pl.pallas_call(
        _adaptive_kernel,
        grid=(num_tiles,),
        in_specs=in_specs,
        out_specs=out_specs,
        out_shape=out_shape,
        scratch_shapes=scratch,
        compiler_params=pltpu.CompilerParams(
            dimension_semantics=("parallel",)),
    )(x, *packed)
    return out, probs.reshape(B, MAX_LAYERS, 1), nsteps


# ----------------------------- parameter init --------------------------------
def _xavier(key, fan_in, fan_out, shape):
    bound = (6.0 / (fan_in + fan_out)) ** 0.5
    return jax.random.uniform(key, shape, jnp.float32, -bound, bound)


def init_params(key):
    H, H4, H2, D, L = HIDDEN, HIDDEN * 4, HIDDEN // 2, INPUT_DIM, MAX_LAYERS
    ks = iter(jax.random.split(key, 64))
    wp = _xavier(next(ks), D, H, (D, H))
    bp = jax.random.uniform(next(ks), (1, H), jnp.float32, -0.05, 0.05)
    w1 = jnp.stack([_xavier(next(ks), H, H4, (H, H4)) for _ in range(L)])
    b1 = jax.random.uniform(next(ks), (L, H4), jnp.float32, -0.05, 0.05)
    w2 = jnp.stack([_xavier(next(ks), H4, H, (H4, H)) for _ in range(L)])
    b2 = jax.random.uniform(next(ks), (L, H), jnp.float32, -0.05, 0.05)
    g = jnp.ones((L, H), jnp.float32)        # LayerNorm weight
    bt = jnp.zeros((L, H), jnp.float32)      # LayerNorm bias
    hw1 = jnp.stack([_xavier(next(ks), H, H2, (H, H2)) for _ in range(L)])
    hb1 = jax.random.uniform(next(ks), (L, H2), jnp.float32, -0.05, 0.05)
    hw2 = jnp.stack([_xavier(next(ks), H2, 1, (H2,)) for _ in range(L)])
    hb2 = jax.random.uniform(next(ks), (L, 1), jnp.float32, -0.05, 0.05)
    return (wp, bp, w1, b1, w2, b2, g, bt, hw1, hb1, hw2, hb2)


# --------------------------- pure-JAX reference -------------------------------
def reference(x, params):
    """PyTorch-faithful forward on the batch it is given (global break)."""
    wp, bp, w1, b1, w2, b2, g, bt, hw1, hb1, hw2, hb2 = params
    state = x @ wp + bp[0]
    B = x.shape[0]
    remainders = jnp.ones((B, 1), jnp.float32)
    acc = jnp.zeros_like(state)
    probs = []
    num_steps = 0
    for i in range(MAX_LAYERS):
        if i < MIN_LAYERS:
            halt = jnp.zeros((B, 1), jnp.float32)
        else:
            h = jnp.maximum(state @ hw1[i] + hb1[i], 0.0)
            halt = jax.nn.sigmoid(jnp.sum(h * hw2[i], -1, keepdims=True) + hb2[i])
        h1 = jnp.maximum(state @ w1[i] + b1[i], 0.0)
        h2 = h1 @ w2[i] + b2[i]
        mu = h2.mean(-1, keepdims=True)
        var = ((h2 - mu) ** 2).mean(-1, keepdims=True)
        state = (h2 - mu) / jnp.sqrt(var + EPS) * g[i] + bt[i]
        probs.append(halt)
        sr = jnp.minimum(remainders, halt)
        acc = acc + sr * state
        remainders = remainders - sr
        num_steps = i + 1
        if float(remainders.max()) < THRESHOLD and i >= MIN_LAYERS:
            break
    if float(remainders.sum()) > 0:
        acc = acc + remainders * state
    return acc, jnp.stack(probs, axis=1), num_steps


if __name__ == "__main__":
    key = jax.random.PRNGKey(0)
    pkey, xkey = jax.random.split(key)
    params = init_params(pkey)
    x = jax.random.normal(xkey, (BATCH, INPUT_DIM), jnp.float32)

    TB = 8  # two grid tiles, exercises the batch grid + pipelining
    out, probs, nsteps = adaptive_computation(x, params, batch_tile=TB)
    out, probs, nsteps = jax.block_until_ready((out, probs, nsteps))

    # The break condition is evaluated per batch tile -> compare each tile against
    # the PyTorch-faithful reference run on that tile alone (identical semantics).
    for t in range(BATCH // TB):
        sl = slice(t * TB, (t + 1) * TB)
        r_out, r_probs, r_n = reference(x[sl], params)
        n = int(nsteps[t * TB, 0])
        assert jnp.all(nsteps[sl, 0] == n)
        assert n == r_n, (t, n, r_n)
        assert jnp.allclose(out[sl], r_out, rtol=1e-2, atol=1e-2)
        assert jnp.allclose(probs[sl, :n, :], r_probs, rtol=1e-2, atol=1e-2)
        assert jnp.all(probs[sl, n:, :] == 0.0)
    print("KERNEL_OK")
</pallas_src>

<mosaic_0001>
module attributes {stable_mosaic.version = 11 : i64} {
  func.func @_adaptive_kernel(%arg0: i32, %arg1: memref<8x32xf32, #tpu.memory_space<vmem>>, %arg2: memref<32x32xf32, #tpu.memory_space<vmem>>, %arg3: memref<1x32xf32, #tpu.memory_space<vmem>>, %arg4: memref<6x32x144xf32, #tpu.memory_space<vmem>>, %arg5: memref<6x1x144xf32, #tpu.memory_space<vmem>>, %arg6: memref<6x144x33xf32, #tpu.memory_space<vmem>>, %arg7: memref<6x1x33xf32, #tpu.memory_space<vmem>>, %arg8: memref<6x1x32xf32, #tpu.memory_space<vmem>>, %arg9: memref<6x1x32xf32, #tpu.memory_space<vmem>>, %arg10: memref<8x32xf32, #tpu.memory_space<vmem>>, %arg11: memref<8x6xf32, #tpu.memory_space<vmem>>, %arg12: memref<8x1xi32, #tpu.memory_space<vmem>>, %arg13: memref<8x32xf32, #tpu.memory_space<vmem>>, %arg14: memref<8x32xf32, #tpu.memory_space<vmem>>, %arg15: memref<8x1xf32, #tpu.memory_space<vmem>>, %arg16: memref<8x6xf32, #tpu.memory_space<vmem>>, %arg17: memref<1xi32, #tpu.memory_space<smem>>, %arg18: memref<1xi32, #tpu.memory_space<smem>>) attributes {dimension_semantics = [#tpu.dimension_semantics<parallel>], iteration_bounds = array<i64: 2>, scalar_prefetch = 0 : i64, scratch_operands = 6 : i64, tpu.core_type = #tpu.core_type<tc>, window_params = [{transform_indices = @transform_0, window_bounds = array<i64: 8, 32>}, {pipeline_mode = #tpu.pipeline_mode<synchronous>, transform_indices = @transform_1, window_bounds = array<i64: 32, 32>}, {pipeline_mode = #tpu.pipeline_mode<synchronous>, transform_indices = @transform_2, window_bounds = array<i64: 1, 32>}, {pipeline_mode = #tpu.pipeline_mode<synchronous>, transform_indices = @transform_3, window_bounds = array<i64: 6, 32, 144>}, {pipeline_mode = #tpu.pipeline_mode<synchronous>, transform_indices = @transform_4, window_bounds = array<i64: 6, 1, 144>}, {pipeline_mode = #tpu.pipeline_mode<synchronous>, transform_indices = @transform_5, window_bounds = array<i64: 6, 144, 33>}, {pipeline_mode = #tpu.pipeline_mode<synchronous>, transform_indices = @transform_6, window_bounds = array<i64: 6, 1, 33>}, {pipeline_mode = #tpu.pipeline_mode<synchronous>, transform_indices = @transform_7, window_bounds = array<i64: 6, 1, 32>}, {pipeline_mode = #tpu.pipeline_mode<synchronous>, transform_indices = @transform_8, window_bounds = array<i64: 6, 1, 32>}, {transform_indices = @transform_9, window_bounds = array<i64: 8, 32>}, {transform_indices = @transform_10, window_bounds = array<i64: 8, 6>}, {transform_indices = @transform_11, window_bounds = array<i64: 8, 1>}]} {
    %c0 = arith.constant 0 : index
    %c0_0 = arith.constant 0 : index
    %0 = vector.load %arg1[%c0, %c0_0] : memref<8x32xf32, #tpu.memory_space<vmem>>, vector<8x32xf32>
    %c0_1 = arith.constant 0 : index
    %c0_2 = arith.constant 0 : index
    %1 = vector.load %arg2[%c0_1, %c0_2] : memref<32x32xf32, #tpu.memory_space<vmem>>, vector<32x32xf32>
    %cst = arith.constant dense<0.000000e+00> : vector<8x32xf32>
    %2 = tpu.matmul %0, %1, %cst {dimension_numbers = #tpu.dot_dimension_numbers<[1], [0], [0], [1], [0, 0, 1, 1], [], []>} : vector<8x32xf32>, vector<32x32xf32>, vector<8x32xf32> -> vector<8x32xf32>
    %c0_3 = arith.constant 0 : index
    %c0_4 = arith.constant 0 : index
    %3 = vector.load %arg3[%c0_3, %c0_4] : memref<1x32xf32, #tpu.memory_space<vmem>>, vector<1x32xf32>
    %4 = vector.broadcast %3 : vector<1x32xf32> to vector<8x32xf32>
    %5 = arith.addf %2, %4 : vector<8x32xf32>
    %c0_5 = arith.constant 0 : index
    %c0_6 = arith.constant 0 : index
    %6 = vector.load %arg13[%c0_5, %c0_6] : memref<8x32xf32, #tpu.memory_space<vmem>>, vector<8x32xf32>
    tpu.vector_store %arg13[%c0_5, %c0_6], %5 {strides = array<i32>} : memref<8x32xf32, #tpu.memory_space<vmem>>, vector<8x32xf32>,
    %cst_7 = arith.constant 0.000000e+00 : f32
    %7 = vector.broadcast %cst_7 : f32 to vector<8x32xf32>
    %c0_8 = arith.constant 0 : index
    %c0_9 = arith.constant 0 : index
    %8 = vector.load %arg14[%c0_8, %c0_9] : memref<8x32xf32, #tpu.memory_space<vmem>>, vector<8x32xf32>
    tpu.vector_store %arg14[%c0_8, %c0_9], %7 {strides = array<i32>} : memref<8x32xf32, #tpu.memory_space<vmem>>, vector<8x32xf32>,
    %cst_10 = arith.constant 1.000000e+00 : f32
    %9 = vector.broadcast %cst_10 : f32 to vector<8x1xf32>
    %c0_11 = arith.constant 0 : index
    %c0_12 = arith.constant 0 : index
    %10 = vector.load %arg15[%c0_11, %c0_12] : memref<8x1xf32, #tpu.memory_space<vmem>>, vector<8x1xf32>
    tpu.vector_store %arg15[%c0_11, %c0_12], %9 {strides = array<i32>} : memref<8x1xf32, #tpu.memory_space<vmem>>, vector<8x1xf32>,
    %cst_13 = arith.constant 0.000000e+00 : f32
    %11 = vector.broadcast %cst_13 : f32 to vector<8x6xf32>
    %c0_14 = arith.constant 0 : index
    %c0_15 = arith.constant 0 : index
    %12 = vector.load %arg16[%c0_14, %c0_15] : memref<8x6xf32, #tpu.memory_space<vmem>>, vector<8x6xf32>
    tpu.vector_store %arg16[%c0_14, %c0_15], %11 {strides = array<i32>} : memref<8x6xf32, #tpu.memory_space<vmem>>, vector<8x6xf32>,
    %c0_i32 = arith.constant 0 : i32
    %c0_16 = arith.constant 0 : index
    %13 = memref.load %arg17[%c0_16] : memref<1xi32, #tpu.memory_space<smem>>
    memref.store %c0_i32, %arg17[%c0_16] : memref<1xi32, #tpu.memory_space<smem>>
    %c0_i32_17 = arith.constant 0 : i32
    %c0_18 = arith.constant 0 : index
    %14 = memref.load %arg18[%c0_18] : memref<1xi32, #tpu.memory_space<smem>>
    memref.store %c0_i32_17, %arg18[%c0_18] : memref<1xi32, #tpu.memory_space<smem>>
    %c0_19 = arith.constant 0 : index
    %c0_20 = arith.constant 0 : index
    %15 = vector.load %arg13[%c0_19, %c0_20] : memref<8x32xf32, #tpu.memory_space<vmem>>, vector<8x32xf32>
    %c0_21 = arith.constant 0 : index
    %c0_22 = arith.constant 0 : index
    %c0_23 = arith.constant 0 : index
    %16 = vector.load %arg4[%c0_21, %c0_22, %c0_23] : memref<6x32x144xf32, #tpu.memory_space<vmem>>, vector<1x32x144xf32>
    %17 = vector.shape_cast %16 : vector<1x32x144xf32> to vector<32x144xf32>
    %cst_24 = arith.constant dense<0.000000e+00> : vector<8x144xf32>
    %18 = tpu.matmul %15, %17, %cst_24 {dimension_numbers = #tpu.dot_dimension_numbers<[1], [0], [0], [1], [0, 0, 1, 1], [], []>} : vector<8x32xf32>, vector<32x144xf32>, vector<8x144xf32> -> vector<8x144xf32>
    %c0_25 = arith.constant 0 : index
    %c0_26 = arith.constant 0 : index
    %c0_27 = arith.constant 0 : index
    %19 = vector.load %arg5[%c0_25, %c0_26, %c0_27] : memref<6x1x144xf32, #tpu.memory_space<vmem>>, vector<1x1x144xf32>
    %20 = vector.shape_cast %19 : vector<1x1x144xf32> to vector<1x144xf32>
    %21 = vector.broadcast %20 : vector<1x144xf32> to vector<8x144xf32>
    %22 = arith.addf %18, %21 : vector<8x144xf32>
    %cst_28 = arith.constant 0.000000e+00 : f32
    %23 = vector.broadcast %cst_28 : f32 to vector<8x144xf32>
    %24 = arith.maximumf %22, %23 : vector<8x144xf32>
    %c0_29 = arith.constant 0 : index
    %c0_30 = arith.constant 0 : index
    %c0_31 = arith.constant 0 : index
    %25 = vector.load %arg6[%c0_29, %c0_30, %c0_31] : memref<6x144x33xf32, #tpu.memory_space<vmem>>, vector<1x144x33xf32>
    %26 = vector.shape_cast %25 : vector<1x144x33xf32> to vector<144x33xf32>
    %cst_32 = arith.constant dense<0.000000e+00> : vector<8x33xf32>
    %27 = tpu.matmul %24, %26, %cst_32 {dimension_numbers = #tpu.dot_dimension_numbers<[1], [0], [0], [1], [0, 0, 1, 1], [], []>} : vector<8x144xf32>, vector<144x33xf32>, vector<8x33xf32> -> vector<8x33xf32>
    %c0_33 = arith.constant 0 : index
    %c0_34 = arith.constant 0 : index
    %c0_35 = arith.constant 0 : index
    %28 = vector.load %arg7[%c0_33, %c0_34, %c0_35] : memref<6x1x33xf32, #tpu.memory_space<vmem>>, vector<1x1x33xf32>
    %29 = vector.shape_cast %28 : vector<1x1x33xf32> to vector<1x33xf32>
    %30 = vector.broadcast %29 : vector<1x33xf32> to vector<8x33xf32>
    %31 = arith.addf %27, %30 : vector<8x33xf32>
    %32 = vector.extract_strided_slice %31 {offsets = [0, 0], sizes = [8, 32], strides = [1, 1]} : vector<8x33xf32> to vector<8x32xf32>
    %cst_36 = arith.constant dense<0.000000e+00> : vector<8xf32>
    %33 = vector.multi_reduction <add>, %32, %cst_36 [1] : vector<8x32xf32> to vector<8xf32>
    %34 = vector.shape_cast %33 : vector<8xf32> to vector<8x1xf32>
    %cst_37 = arith.constant 3.200000e+01 : f32
    %35 = vector.broadcast %cst_37 : f32 to vector<8x1xf32>
    %36 = arith.divf %34, %35 : vector<8x1xf32>
    %37 = vector.broadcast %36 : vector<8x1xf32> to vector<8x32xf32>
    %38 = arith.subf %32, %37 : vector<8x32xf32>
    %39 = arith.mulf %38, %38 : vector<8x32xf32>
    %cst_38 = arith.constant dense<0.000000e+00> : vector<8xf32>
    %40 = vector.multi_reduction <add>, %39, %cst_38 [1] : vector<8x32xf32> to vector<8xf32>
    %41 = vector.shape_cast %40 : vector<8xf32> to vector<8x1xf32>
    %cst_39 = arith.constant 3.200000e+01 : f32
    %42 = vector.broadcast %cst_39 : f32 to vector<8x1xf32>
    %43 = arith.divf %41, %42 : vector<8x1xf32>
    %44 = vector.broadcast %36 : vector<8x1xf32> to vector<8x32xf32>
    %45 = arith.subf %32, %44 : vector<8x32xf32>
    %cst_40 = arith.constant 9.99999974E-6 : f32
    %46 = vector.broadcast %cst_40 : f32 to vector<8x1xf32>
    %47 = arith.addf %43, %46 : vector<8x1xf32>
    %48 = math.rsqrt %47 : vector<8x1xf32>
    %49 = vector.broadcast %48 : vector<8x1xf32> to vector<8x32xf32>
    %50 = arith.mulf %45, %49 : vector<8x32xf32>
    %c0_41 = arith.constant 0 : index
    %c0_42 = arith.constant 0 : index
    %c0_43 = arith.constant 0 : index
    %51 = vector.load %arg8[%c0_41, %c0_42, %c0_43] : memref<6x1x32xf32, #tpu.memory_space<vmem>>, vector<1x1x32xf32>
    %52 = vector.shape_cast %51 : vector<1x1x32xf32> to vector<1x32xf32>
    %53 = vector.broadcast %52 : vector<1x32xf32> to vector<8x32xf32>
    %54 = arith.mulf %50, %53 : vector<8x32xf32>
    %c0_44 = arith.constant 0 : index
    %c0_45 = arith.constant 0 : index
    %c0_46 = arith.constant 0 : index
    %55 = vector.load %arg9[%c0_44, %c0_45, %c0_46] : memref<6x1x32xf32, #tpu.memory_space<vmem>>, vector<1x1x32xf32>
    %56 = vector.shape_cast %55 : vector<1x1x32xf32> to vector<1x32xf32>
    %57 = vector.broadcast %56 : vector<1x32xf32> to vector<8x32xf32>
    %58 = arith.addf %54, %57 : vector<8x32xf32>
    %c0_47 = arith.constant 0 : index
    %c0_48 = arith.constant 0 : index
    %59 = vector.load %arg13[%c0_47, %c0_48] : memref<8x32xf32, #tpu.memory_space<vmem>>, vector<8x32xf32>
    tpu.vector_store %arg13[%c0_47, %c0_48], %58 {strides = array<i32>} : memref<8x32xf32, #tpu.memory_space<vmem>>, vector<8x32xf32>,
    %c0_49 = arith.constant 0 : index
    %c0_50 = arith.constant 0 : index
    %60 = vector.load %arg13[%c0_49, %c0_50] : memref<8x32xf32, #tpu.memory_space<vmem>>, vector<8x32xf32>
    %c1 = arith.constant 1 : index
    %c0_51 = arith.constant 0 : index
    %c0_52 = arith.constant 0 : index
    %61 = vector.load %arg4[%c1, %c0_51, %c0_52] : memref<6x32x144xf32, #tpu.memory_space<vmem>>, vector<1x32x144xf32>
    %62 = vector.shape_cast %61 : vector<1x32x144xf32> to vector<32x144xf32>
    %cst_53 = arith.constant dense<0.000000e+00> : vector<8x144xf32>
    %63 = tpu.matmul %60, %62, %cst_53 {dimension_numbers = #tpu.dot_dimension_numbers<[1], [0], [0], [1], [0, 0, 1, 1], [], []>} : vector<8x32xf32>, vector<32x144xf32>, vector<8x144xf32> -> vector<8x144xf32>
    %c1_54 = arith.constant 1 : index
    %c0_55 = arith.constant 0 : index
    %c0_56 = arith.constant 0 : index
    %64 = vector.load %arg5[%c1_54, %c0_55, %c0_56] : memref<6x1x144xf32, #tpu.memory_space<vmem>>, vector<1x1x144xf32>
    %65 = vector.shape_cast %64 : vector<1x1x144xf32> to vector<1x144xf32>
    %66 = vector.broadcast %65 : vector<1x144xf32> to vector<8x144xf32>
    %67 = arith.addf %63, %66 : vector<8x144xf32>
    %cst_57 = arith.constant 0.000000e+00 : f32
    %68 = vector.broadcast %cst_57 : f32 to vector<8x144xf32>
    %69 = arith.maximumf %67, %68 : vector<8x144xf32>
    %c1_58 = arith.constant 1 : index
    %c0_59 = arith.constant 0 : index
    %c0_60 = arith.constant 0 : index
    %70 = vector.load %arg6[%c1_58, %c0_59, %c0_60] : memref<6x144x33xf32, #tpu.memory_space<vmem>>, vector<1x144x33xf32>
    %71 = vector.shape_cast %70 : vector<1x144x33xf32> to vector<144x33xf32>
    %cst_61 = arith.constant dense<0.000000e+00> : vector<8x33xf32>
    %72 = tpu.matmul %69, %71, %cst_61 {dimension_numbers = #tpu.dot_dimension_numbers<[1], [0], [0], [1], [0, 0, 1, 1], [], []>} : vector<8x144xf32>, vector<144x33xf32>, vector<8x33xf32> -> vector<8x33xf32>
    %c1_62 = arith.constant 1 : index
    %c0_63 = arith.constant 0 : index
    %c0_64 = arith.constant 0 : index
    %73 = vector.load %arg7[%c1_62, %c0_63, %c0_64] : memref<6x1x33xf32, #tpu.memory_space<vmem>>, vector<1x1x33xf32>
    %74 = vector.shape_cast %73 : vector<1x1x33xf32> to vector<1x33xf32>
    %75 = vector.broadcast %74 : vector<1x33xf32> to vector<8x33xf32>
    %76 = arith.addf %72, %75 : vector<8x33xf32>
    %77 = vector.extract_strided_slice %76 {offsets = [0, 0], sizes = [8, 32], strides = [1, 1]} : vector<8x33xf32> to vector<8x32xf32>
    %cst_65 = arith.constant dense<0.000000e+00> : vector<8xf32>
    %78 = vector.multi_reduction <add>, %77, %cst_65 [1] : vector<8x32xf32> to vector<8xf32>
    %79 = vector.shape_cast %78 : vector<8xf32> to vector<8x1xf32>
    %cst_66 = arith.constant 3.200000e+01 : f32
    %80 = vector.broadcast %cst_66 : f32 to vector<8x1xf32>
    %81 = arith.divf %79, %80 : vector<8x1xf32>
    %82 = vector.broadcast %81 : vector<8x1xf32> to vector<8x32xf32>
    %83 = arith.subf %77, %82 : vector<8x32xf32>
    %84 = arith.mulf %83, %83 : vector<8x32xf32>
    %cst_67 = arith.constant dense<0.000000e+00> : vector<8xf32>
    %85 = vector.multi_reduction <add>, %84, %cst_67 [1] : vector<8x32xf32> to vector<8xf32>
    %86 = vector.shape_cast %85 : vector<8xf32> to vector<8x1xf32>
    %cst_68 = arith.constant 3.200000e+01 : f32
    %87 = vector.broadcast %cst_68 : f32 to vector<8x1xf32>
    %88 = arith.divf %86, %87 : vector<8x1xf32>
    %89 = vector.broadcast %81 : vector<8x1xf32> to vector<8x32xf32>
    %90 = arith.subf %77, %89 : vector<8x32xf32>
    %cst_69 = arith.constant 9.99999974E-6 : f32
    %91 = vector.broadcast %cst_69 : f32 to vector<8x1xf32>
    %92 = arith.addf %88, %91 : vector<8x1xf32>
    %93 = math.rsqrt %92 : vector<8x1xf32>
    %94 = vector.broadcast %93 : vector<8x1xf32> to vector<8x32xf32>
    %95 = arith.mulf %90, %94 : vector<8x32xf32>
    %c1_70 = arith.constant 1 : index
    %c0_71 = arith.constant 0 : index
    %c0_72 = arith.constant 0 : index
    %96 = vector.load %arg8[%c1_70, %c0_71, %c0_72] : memref<6x1x32xf32, #tpu.memory_space<vmem>>, vector<1x1x32xf32>
    %97 = vector.shape_cast %96 : vector<1x1x32xf32> to vector<1x32xf32>
    %98 = vector.broadcast %97 : vector<1x32xf32> to vector<8x32xf32>
    %99 = arith.mulf %95, %98 : vector<8x32xf32>
    %c1_73 = arith.constant 1 : index
    %c0_74 = arith.constant 0 : index
    %c0_75 = arith.constant 0 : index
    %100 = vector.load %arg9[%c1_73, %c0_74, %c0_75] : memref<6x1x32xf32, #tpu.memory_space<vmem>>, vector<1x1x32xf32>
    %101 = vector.shape_cast %100 : vector<1x1x32xf32> to vector<1x32xf32>
    %102 = vector.broadcast %101 : vector<1x32xf32> to vector<8x32xf32>
    %103 = arith.addf %99, %102 : vector<8x32xf32>
    %c0_76 = arith.constant 0 : index
    %c0_77 = arith.constant 0 : index
    %104 = vector.load %arg13[%c0_76, %c0_77] : memref<8x32xf32, #tpu.memory_space<vmem>>, vector<8x32xf32>
    tpu.vector_store %arg13[%c0_76, %c0_77], %103 {strides = array<i32>} : memref<8x32xf32, #tpu.memory_space<vmem>>, vector<8x32xf32>,
    %c0_78 = arith.constant 0 : index
    %c0_79 = arith.constant 0 : index
    %105 = vector.load %arg13[%c0_78, %c0_79] : memref<8x32xf32, #tpu.memory_space<vmem>>, vector<8x32xf32>
    %c2 = arith.constant 2 : index
    %c0_80 = arith.constant 0 : index
    %c0_81 = arith.constant 0 : index
    %106 = vector.load %arg4[%c2, %c0_80, %c0_81] : memref<6x32x144xf32, #tpu.memory_space<vmem>>, vector<1x32x144xf32>
    %107 = vector.shape_cast %106 : vector<1x32x144xf32> to vector<32x144xf32>
    %cst_82 = arith.constant dense<0.000000e+00> : vector<8x144xf32>
    %108 = tpu.matmul %105, %107, %cst_82 {dimension_numbers = #tpu.dot_dimension_numbers<[1], [0], [0], [1], [0, 0, 1, 1], [], []>} : vector<8x32xf32>, vector<32x144xf32>, vector<8x144xf32> -> vector<8x144xf32>
    %c2_83 = arith.constant 2 : index
    %c0_84 = arith.constant 0 : index
    %c0_85 = arith.constant 0 : index
    %109 = vector.load %arg5[%c2_83, %c0_84, %c0_85] : memref<6x1x144xf32, #tpu.memory_space<vmem>>, vector<1x1x144xf32>
    %110 = vector.shape_cast %109 : vector<1x1x144xf32> to vector<1x144xf32>
    %111 = vector.broadcast %110 : vector<1x144xf32> to vector<8x144xf32>
    %112 = arith.addf %108, %111 : vector<8x144xf32>
    %cst_86 = arith.constant 0.000000e+00 : f32
    %113 = vector.broadcast %cst_86 : f32 to vector<8x144xf32>
    %114 = arith.maximumf %112, %113 : vector<8x144xf32>
    %c2_87 = arith.constant 2 : index
    %c0_88 = arith.constant 0 : index
    %c0_89 = arith.constant 0 : index
    %115 = vector.load %arg6[%c2_87, %c0_88, %c0_89] : memref<6x144x33xf32, #tpu.memory_space<vmem>>, vector<1x144x33xf32>
    %116 = vector.shape_cast %115 : vector<1x144x33xf32> to vector<144x33xf32>
    %cst_90 = arith.constant dense<0.000000e+00> : vector<8x33xf32>
    %117 = tpu.matmul %114, %116, %cst_90 {dimension_numbers = #tpu.dot_dimension_numbers<[1], [0], [0], [1], [0, 0, 1, 1], [], []>} : vector<8x144xf32>, vector<144x33xf32>, vector<8x33xf32> -> vector<8x33xf32>
    %c2_91 = arith.constant 2 : index
    %c0_92 = arith.constant 0 : index
    %c0_93 = arith.constant 0 : index
    %118 = vector.load %arg7[%c2_91, %c0_92, %c0_93] : memref<6x1x33xf32, #tpu.memory_space<vmem>>, vector<1x1x33xf32>
    %119 = vector.shape_cast %118 : vector<1x1x33xf32> to vector<1x33xf32>
    %120 = vector.broadcast %119 : vector<1x33xf32> to vector<8x33xf32>
    %121 = arith.addf %117, %120 : vector<8x33xf32>
    %122 = vector.extract_strided_slice %121 {offsets = [0, 0], sizes = [8, 32], strides = [1, 1]} : vector<8x33xf32> to vector<8x32xf32>
    %cst_94 = arith.constant dense<0.000000e+00> : vector<8xf32>
    %123 = vector.multi_reduction <add>, %122, %cst_94 [1] : vector<8x32xf32> to vector<8xf32>
    %124 = vector.shape_cast %123 : vector<8xf32> to vector<8x1xf32>
    %cst_95 = arith.constant 3.200000e+01 : f32
    %125 = vector.broadcast %cst_95 : f32 to vector<8x1xf32>
    %126 = arith.divf %124, %125 : vector<8x1xf32>
    %127 = vector.broadcast %126 : vector<8x1xf32> to vector<8x32xf32>
    %128 = arith.subf %122, %127 : vector<8x32xf32>
    %129 = arith.mulf %128, %128 : vector<8x32xf32>
    %cst_96 = arith.constant dense<0.000000e+00> : vector<8xf32>
    %130 = vector.multi_reduction <add>, %129, %cst_96 [1] : vector<8x32xf32> to vector<8xf32>
    %131 = vector.shape_cast %130 : vector<8xf32> to vector<8x1xf32>
    %cst_97 = arith.constant 3.200000e+01 : f32
    %132 = vector.broadcast %cst_97 : f32 to vector<8x1xf32>
    %133 = arith.divf %131, %132 : vector<8x1xf32>
    %134 = vector.broadcast %126 : vector<8x1xf32> to vector<8x32xf32>
    %135 = arith.subf %122, %134 : vector<8x32xf32>
    %cst_98 = arith.constant 9.99999974E-6 : f32
    %136 = vector.broadcast %cst_98 : f32 to vector<8x1xf32>
    %137 = arith.addf %133, %136 : vector<8x1xf32>
    %138 = math.rsqrt %137 : vector<8x1xf32>
    %139 = vector.broadcast %138 : vector<8x1xf32> to vector<8x32xf32>
    %140 = arith.mulf %135, %139 : vector<8x32xf32>
    %c2_99 = arith.constant 2 : index
    %c0_100 = arith.constant 0 : index
    %c0_101 = arith.constant 0 : index
    %141 = vector.load %arg8[%c2_99, %c0_100, %c0_101] : memref<6x1x32xf32, #tpu.memory_space<vmem>>, vector<1x1x32xf32>
    %142 = vector.shape_cast %141 : vector<1x1x32xf32> to vector<1x32xf32>
    %143 = vector.broadcast %142 : vector<1x32xf32> to vector<8x32xf32>
    %144 = arith.mulf %140, %143 : vector<8x32xf32>
    %c2_102 = arith.constant 2 : index
    %c0_103 = arith.constant 0 : index
    %c0_104 = arith.constant 0 : index
    %145 = vector.load %arg9[%c2_102, %c0_103, %c0_104] : memref<6x1x32xf32, #tpu.memory_space<vmem>>, vector<1x1x32xf32>
    %146 = vector.shape_cast %145 : vector<1x1x32xf32> to vector<1x32xf32>
    %147 = vector.broadcast %146 : vector<1x32xf32> to vector<8x32xf32>
    %148 = arith.addf %144, %147 : vector<8x32xf32>
    %c0_105 = arith.constant 0 : index
    %c0_106 = arith.constant 0 : index
    %149 = vector.load %arg13[%c0_105, %c0_106] : memref<8x32xf32, #tpu.memory_space<vmem>>, vector<8x32xf32>
    tpu.vector_store %arg13[%c0_105, %c0_106], %148 {strides = array<i32>} : memref<8x32xf32, #tpu.memory_space<vmem>>, vector<8x32xf32>,
    %150 = vector.extract_strided_slice %121 {offsets = [0, 32], sizes = [8, 1], strides = [1, 1]} : vector<8x33xf32> to vector<8x1xf32>
    %151 = arith.negf %150 : vector<8x1xf32>
    %152 = math.exp %151 : vector<8x1xf32>
    %cst_107 = arith.constant 1.000000e+00 : f32
    %153 = vector.broadcast %cst_107 : f32 to vector<8x1xf32>
    %154 = arith.addf %153, %152 : vector<8x1xf32>
    %155 = arith.divf %153, %154 : vector<8x1xf32>
    %c0_108 = arith.constant 0 : index
    %c2_109 = arith.constant 2 : index
    %156 = vector.load %arg16[%c0_108, %c2_109] : memref<8x6xf32, #tpu.memory_space<vmem>>, vector<8x1xf32>
    tpu.vector_store %arg16[%c0_108, %c2_109], %155 {strides = array<i32>} : memref<8x6xf32, #tpu.memory_space<vmem>>, vector<8x1xf32>,
    %c0_110 = arith.constant 0 : index
    %c0_111 = arith.constant 0 : index
    %157 = vector.load %arg15[%c0_110, %c0_111] : memref<8x1xf32, #tpu.memory_space<vmem>>, vector<8x1xf32>
    %158 = arith.minimumf %157, %155 : vector<8x1xf32>
    %c0_112 = arith.constant 0 : index
    %c0_113 = arith.constant 0 : index
    %159 = vector.load %arg14[%c0_112, %c0_113] : memref<8x32xf32, #tpu.memory_space<vmem>>, vector<8x32xf32>
    %160 = vector.broadcast %158 : vector<8x1xf32> to vector<8x32xf32>
    %161 = arith.mulf %160, %148 : vector<8x32xf32>
    %162 = arith.addf %159, %161 : vector<8x32xf32>
    %c0_114 = arith.constant 0 : index
    %c0_115 = arith.constant 0 : index
    %163 = vector.load %arg14[%c0_114, %c0_115] : memref<8x32xf32, #tpu.memory_space<vmem>>, vector<8x32xf32>
    tpu.vector_store %arg14[%c0_114, %c0_115], %162 {strides = array<i32>} : memref<8x32xf32, #tpu.memory_space<vmem>>, vector<8x32xf32>,
    %164 = arith.subf %157, %158 : vector<8x1xf32>
    %c0_116 = arith.constant 0 : index
    %c0_117 = arith.constant 0 : index
    %165 = vector.load %arg15[%c0_116, %c0_117] : memref<8x1xf32, #tpu.memory_space<vmem>>, vector<8x1xf32>
    tpu.vector_store %arg15[%c0_116, %c0_117], %164 {strides = array<i32>} : memref<8x1xf32, #tpu.memory_space<vmem>>, vector<8x1xf32>,
    %c3_i32 = arith.constant 3 : i32
    %c0_118 = arith.constant 0 : index
    %166 = memref.load %arg18[%c0_118] : memref<1xi32, #tpu.memory_space<smem>>
    memref.store %c3_i32, %arg18[%c0_118] : memref<1xi32, #tpu.memory_space<smem>>
    %167 = vector.shape_cast %164 : vector<8x1xf32> to vector<1x8x1xf32>
    %cst_119 = arith.constant dense<0xFF800000> : vector<1xf32>
    %168 = vector.multi_reduction <maximumf>, %167, %cst_119 [1, 2] : vector<1x8x1xf32> to vector<1xf32>
    %169 = vector.shape_cast %168 : vector<1xf32> to vector<1x1x1xf32>
    %170 = vector.extract %169[0, 0, 0] : f32 from vector<1x1x1xf32>
    %cst_120 = arith.constant 0.899999976 : f32
    %171 = arith.cmpf olt, %170, %cst_120 : f32
    %172 = arith.extui %171 : i1 to i32
    %c0_121 = arith.constant 0 : index
    %173 = memref.load %arg17[%c0_121] : memref<1xi32, #tpu.memory_space<smem>>
    memref.store %172, %arg17[%c0_121] : memref<1xi32, #tpu.memory_space<smem>>
    %c0_122 = arith.constant 0 : index
    %174 = memref.load %arg17[%c0_122] : memref<1xi32, #tpu.memory_space<smem>>
    %c0_i32_123 = arith.constant 0 : i32
    %175 = arith.cmpi eq, %174, %c0_i32_123 : i32
    %176 = arith.extui %175 : i1 to i32
    %c0_i32_124 = arith.constant 0 : i32
    %177 = arith.cmpi ne, %176, %c0_i32_124 : i32
    scf.if %177 {
      %c0_149 = arith.constant 0 : index
      %c0_150 = arith.constant 0 : index
      %206 = vector.load %arg13[%c0_149, %c0_150] : memref<8x32xf32, #tpu.memory_space<vmem>>, vector<8x32xf32>
      %c3 = arith.constant 3 : index
      %c0_151 = arith.constant 0 : index
      %c0_152 = arith.constant 0 : index
      %207 = vector.load %arg4[%c3, %c0_151, %c0_152] : memref<6x32x144xf32, #tpu.memory_space<vmem>>, vector<1x32x144xf32>
      %208 = vector.shape_cast %207 : vector<1x32x144xf32> to vector<32x144xf32>
      %cst_153 = arith.constant dense<0.000000e+00> : vector<8x144xf32>
      %209 = tpu.matmul %206, %208, %cst_153 {dimension_numbers = #tpu.dot_dimension_numbers<[1], [0], [0], [1], [0, 0, 1, 1], [], []>} : vector<8x32xf32>, vector<32x144xf32>, vector<8x144xf32> -> vector<8x144xf32>
      %c3_154 = arith.constant 3 : index
      %c0_155 = arith.constant 0 : index
      %c0_156 = arith.constant 0 : index
      %210 = vector.load %arg5[%c3_154, %c0_155, %c0_156] : memref<6x1x144xf32, #tpu.memory_space<vmem>>, vector<1x1x144xf32>
      %211 = vector.shape_cast %210 : vector<1x1x144xf32> to vector<1x144xf32>
      %212 = vector.broadcast %211 : vector<1x144xf32> to vector<8x144xf32>
      %213 = arith.addf %209, %212 : vector<8x144xf32>
      %cst_157 = arith.constant 0.000000e+00 : f32
      %214 = vector.broadcast %cst_157 : f32 to vector<8x144xf32>
      %215 = arith.maximumf %213, %214 : vector<8x144xf32>
      %c3_158 = arith.constant 3 : index
      %c0_159 = arith.constant 0 : index
      %c0_160 = arith.constant 0 : index
      %216 = vector.load %arg6[%c3_158, %c0_159, %c0_160] : memref<6x144x33xf32, #tpu.memory_space<vmem>>, vector<1x144x33xf32>
      %217 = vector.shape_cast %216 : vector<1x144x33xf32> to vector<144x33xf32>
      %cst_161 = arith.constant dense<0.000000e+00> : vector<8x33xf32>
      %218 = tpu.matmul %215, %217, %cst_161 {dimension_numbers = #tpu.dot_dimension_numbers<[1], [0], [0], [1], [0, 0, 1, 1], [], []>} : vector<8x144xf32>, vector<144x33xf32>, vector<8x33xf32> -> vector<8x33xf32>
      %c3_162 = arith.constant 3 : index
      %c0_163 = arith.constant 0 : index
      %c0_164 = arith.constant 0 : index
      %219 = vector.load %arg7[%c3_162, %c0_163, %c0_164] : memref<6x1x33xf32, #tpu.memory_space<vmem>>, vector<1x1x33xf32>
      %220 = vector.shape_cast %219 : vector<1x1x33xf32> to vector<1x33xf32>
      %221 = vector.broadcast %220 : vector<1x33xf32> to vector<8x33xf32>
      %222 = arith.addf %218, %221 : vector<8x33xf32>
      %223 = vector.extract_strided_slice %222 {offsets = [0, 0], sizes = [8, 32], strides = [1, 1]} : vector<8x33xf32> to vector<8x32xf32>
      %cst_165 = arith.constant dense<0.000000e+00> : vector<8xf32>
      %224 = vector.multi_reduction <add>, %223, %cst_165 [1] : vector<8x32xf32> to vector<8xf32>
      %225 = vector.shape_cast %224 : vector<8xf32> to vector<8x1xf32>
      %cst_166 = arith.constant 3.200000e+01 : f32
      %226 = vector.broadcast %cst_166 : f32 to vector<8x1xf32>
      %227 = arith.divf %225, %226 : vector<8x1xf32>
      %228 = vector.broadcast %227 : vector<8x1xf32> to vector<8x32xf32>
      %229 = arith.subf %223, %228 : vector<8x32xf32>
      %230 = arith.mulf %229, %229 : vector<8x32xf32>
      %cst_167 = arith.constant dense<0.000000e+00> : vector<8xf32>
      %231 = vector.multi_reduction <add>, %230, %cst_167 [1] : vector<8x32xf32> to vector<8xf32>
      %232 = vector.shape_cast %231 : vector<8xf32> to vector<8x1xf32>
      %cst_168 = arith.constant 3.200000e+01 : f32
      %233 = vector.broadcast %cst_168 : f32 to vector<8x1xf32>
      %234 = arith.divf %232, %233 : vector<8x1xf32>
      %235 = vector.broadcast %227 : vector<8x1xf32> to vector<8x32xf32>
      %236 = arith.subf %223, %235 : vector<8x32xf32>
      %cst_169 = arith.constant 9.99999974E-6 : f32
      %237 = vector.broadcast %cst_169 : f32 to vector<8x1xf32>
      %238 = arith.addf %234, %237 : vector<8x1xf32>
      %239 = math.rsqrt %238 : vector<8x1xf32>
      %240 = vector.broadcast %239 : vector<8x1xf32> to vector<8x32xf32>
      %241 = arith.mulf %236, %240 : vector<8x32xf32>
      %c3_170 = arith.constant 3 : index
      %c0_171 = arith.constant 0 : index
      %c0_172 = arith.constant 0 : index
      %242 = vector.load %arg8[%c3_170, %c0_171, %c0_172] : memref<6x1x32xf32, #tpu.memory_space<vmem>>, vector<1x1x32xf32>
      %243 = vector.shape_cast %242 : vector<1x1x32xf32> to vector<1x32xf32>
      %244 = vector.broadcast %243 : vector<1x32xf32> to vector<8x32xf32>
      %245 = arith.mulf %241, %244 : vector<8x32xf32>
      %c3_173 = arith.constant 3 : index
      %c0_174 = arith.constant 0 : index
      %c0_175 = arith.constant 0 : index
      %246 = vector.load %arg9[%c3_173, %c0_174, %c0_175] : memref<6x1x32xf32, #tpu.memory_space<vmem>>, vector<1x1x32xf32>
      %247 = vector.shape_cast %246 : vector<1x1x32xf32> to vector<1x32xf32>
      %248 = vector.broadcast %247 : vector<1x32xf32> to vector<8x32xf32>
      %249 = arith.addf %245, %248 : vector<8x32xf32>
      %c0_176 = arith.constant 0 : index
      %c0_177 = arith.constant 0 : index
      %250 = vector.load %arg13[%c0_176, %c0_177] : memref<8x32xf32, #tpu.memory_space<vmem>>, vector<8x32xf32>
      tpu.vector_store %arg13[%c0_176, %c0_177], %249 {strides = array<i32>} : memref<8x32xf32, #tpu.memory_space<vmem>>, vector<8x32xf32>,
      %251 = vector.extract_strided_slice %222 {offsets = [0, 32], sizes = [8, 1], strides = [1, 1]} : vector<8x33xf32> to vector<8x1xf32>
      %252 = arith.negf %251 : vector<8x1xf32>
      %253 = math.exp %252 : vector<8x1xf32>
      %cst_178 = arith.constant 1.000000e+00 : f32
      %254 = vector.broadcast %cst_178 : f32 to vector<8x1xf32>
      %255 = arith.addf %254, %253 : vector<8x1xf32>
      %256 = arith.divf %254, %255 : vector<8x1xf32>
      %c0_179 = arith.constant 0 : index
      %c3_180 = arith.constant 3 : index
      %257 = vector.load %arg16[%c0_179, %c3_180] : memref<8x6xf32, #tpu.memory_space<vmem>>, vector<8x1xf32>
      tpu.vector_store %arg16[%c0_179, %c3_180], %256 {strides = array<i32>} : memref<8x6xf32, #tpu.memory_space<vmem>>, vector<8x1xf32>,
      %c0_181 = arith.constant 0 : index
      %c0_182 = arith.constant 0 : index
      %258 = vector.load %arg15[%c0_181, %c0_182] : memref<8x1xf32, #tpu.memory_space<vmem>>, vector<8x1xf32>
      %259 = arith.minimumf %258, %256 : vector<8x1xf32>
      %c0_183 = arith.constant 0 : index
      %c0_184 = arith.constant 0 : index
      %260 = vector.load %arg14[%c0_183, %c0_184] : memref<8x32xf32, #tpu.memory_space<vmem>>, vector<8x32xf32>
      %261 = vector.broadcast %259 : vector<8x1xf32> to vector<8x32xf32>
      %262 = arith.mulf %261, %249 : vector<8x32xf32>
      %263 = arith.addf %260, %262 : vector<8x32xf32>
      %c0_185 = arith.constant 0 : index
      %c0_186 = arith.constant 0 : index
      %264 = vector.load %arg14[%c0_185, %c0_186] : memref<8x32xf32, #tpu.memory_space<vmem>>, vector<8x32xf32>
      tpu.vector_store %arg14[%c0_185, %c0_186], %263 {strides = array<i32>} : memref<8x32xf32, #tpu.memory_space<vmem>>, vector<8x32xf32>,
      %265 = arith.subf %258, %259 : vector<8x1xf32>
      %c0_187 = arith.constant 0 : index
      %c0_188 = arith.constant 0 : index
      %266 = vector.load %arg15[%c0_187, %c0_188] : memref<8x1xf32, #tpu.memory_space<vmem>>, vector<8x1xf32>
      tpu.vector_store %arg15[%c0_187, %c0_188], %265 {strides = array<i32>} : memref<8x1xf32, #tpu.memory_space<vmem>>, vector<8x1xf32>,
      %c4_i32 = arith.constant 4 : i32
      %c0_189 = arith.constant 0 : index
      %267 = memref.load %arg18[%c0_189] : memref<1xi32, #tpu.memory_space<smem>>
      memref.store %c4_i32, %arg18[%c0_189] : memref<1xi32, #tpu.memory_space<smem>>
      %268 = vector.shape_cast %265 : vector<8x1xf32> to vector<1x8x1xf32>
      %cst_190 = arith.constant dense<0xFF800000> : vector<1xf32>
      %269 = vector.multi_reduction <maximumf>, %268, %cst_190 [1, 2] : vector<1x8x1xf32> to vector<1xf32>
      %270 = vector.shape_cast %269 : vector<1xf32> to vector<1x1x1xf32>
      %271 = vector.extract %270[0, 0, 0] : f32 from vector<1x1x1xf32>
      %cst_191 = arith.constant 0.899999976 : f32
      %272 = arith.cmpf olt, %271, %cst_191 : f32
      %273 = arith.extui %272 : i1 to i32
      %c0_192 = arith.constant 0 : index
      %274 = memref.load %arg17[%c0_192] : memref<1xi32, #tpu.memory_space<smem>>
      memref.store %273, %arg17[%c0_192] : memref<1xi32, #tpu.memory_space<smem>>
    } else {
    }
    %c0_125 = arith.constant 0 : index
    %178 = memref.load %arg17[%c0_125] : memref<1xi32, #tpu.memory_space<smem>>
    %c0_i32_126 = arith.constant 0 : i32
    %179 = arith.cmpi eq, %178, %c0_i32_126 : i32
    %180 = arith.extui %179 : i1 to i32
    %c0_i32_127 = arith.constant 0 : i32
    %181 = arith.cmpi ne, %180, %c0_i32_127 : i32
    scf.if %181 {
      %c0_149 = arith.constant 0 : index
      %c0_150 = arith.constant 0 : index
      %206 = vector.load %arg13[%c0_149, %c0_150] : memref<8x32xf32, #tpu.memory_space<vmem>>, vector<8x32xf32>
      %c4 = arith.constant 4 : index
      %c0_151 = arith.constant 0 : index
      %c0_152 = arith.constant 0 : index
      %207 = vector.load %arg4[%c4, %c0_151, %c0_152] : memref<6x32x144xf32, #tpu.memory_space<vmem>>, vector<1x32x144xf32>
      %208 = vector.shape_cast %207 : vector<1x32x144xf32> to vector<32x144xf32>
      %cst_153 = arith.constant dense<0.000000e+00> : vector<8x144xf32>
      %209 = tpu.matmul %206, %208, %cst_153 {dimension_numbers = #tpu.dot_dimension_numbers<[1], [0], [0], [1], [0, 0, 1, 1], [], []>} : vector<8x32xf32>, vector<32x144xf32>, vector<8x144xf32> -> vector<8x144xf32>
      %c4_154 = arith.constant 4 : index
      %c0_155 = arith.constant 0 : index
      %c0_156 = arith.constant 0 : index
      %210 = vector.load %arg5[%c4_154, %c0_155, %c0_156] : memref<6x1x144xf32, #tpu.memory_space<vmem>>, vector<1x1x144xf32>
      %211 = vector.shape_cast %210 : vector<1x1x144xf32> to vector<1x144xf32>
      %212 = vector.broadcast %211 : vector<1x144xf32> to vector<8x144xf32>
      %213 = arith.addf %209, %212 : vector<8x144xf32>
      %cst_157 = arith.constant 0.000000e+00 : f32
      %214 = vector.broadcast %cst_157 : f32 to vector<8x144xf32>
      %215 = arith.maximumf %213, %214 : vector<8x144xf32>
      %c4_158 = arith.constant 4 : index
      %c0_159 = arith.constant 0 : index
      %c0_160 = arith.constant 0 : index
      %216 = vector.load %arg6[%c4_158, %c0_159, %c0_160] : memref<6x144x33xf32, #tpu.memory_space<vmem>>, vector<1x144x33xf32>
      %217 = vector.shape_cast %216 : vector<1x144x33xf32> to vector<144x33xf32>
      %cst_161 = arith.constant dense<0.000000e+00> : vector<8x33xf32>
      %218 = tpu.matmul %215, %217, %cst_161 {dimension_numbers = #tpu.dot_dimension_numbers<[1], [0], [0], [1], [0, 0, 1, 1], [], []>} : vector<8x144xf32>, vector<144x33xf32>, vector<8x33xf32> -> vector<8x33xf32>
      %c4_162 = arith.constant 4 : index
      %c0_163 = arith.constant 0 : index
      %c0_164 = arith.constant 0 : index
      %219 = vector.load %arg7[%c4_162, %c0_163, %c0_164] : memref<6x1x33xf32, #tpu.memory_space<vmem>>, vector<1x1x33xf32>
      %220 = vector.shape_cast %219 : vector<1x1x33xf32> to vector<1x33xf32>
      %221 = vector.broadcast %220 : vector<1x33xf32> to vector<8x33xf32>
      %222 = arith.addf %218, %221 : vector<8x33xf32>
      %223 = vector.extract_strided_slice %222 {offsets = [0, 0], sizes = [8, 32], strides = [1, 1]} : vector<8x33xf32> to vector<8x32xf32>
      %cst_165 = arith.constant dense<0.000000e+00> : vector<8xf32>
      %224 = vector.multi_reduction <add>, %223, %cst_165 [1] : vector<8x32xf32> to vector<8xf32>
      %225 = vector.shape_cast %224 : vector<8xf32> to vector<8x1xf32>
      %cst_166 = arith.constant 3.200000e+01 : f32
      %226 = vector.broadcast %cst_166 : f32 to vector<8x1xf32>
      %227 = arith.divf %225, %226 : vector<8x1xf32>
      %228 = vector.broadcast %227 : vector<8x1xf32> to vector<8x32xf32>
      %229 = arith.subf %223, %228 : vector<8x32xf32>
      %230 = arith.mulf %229, %229 : vector<8x32xf32>
      %cst_167 = arith.constant dense<0.000000e+00> : vector<8xf32>
      %231 = vector.multi_reduction <add>, %230, %cst_167 [1] : vector<8x32xf32> to vector<8xf32>
      %232 = vector.shape_cast %231 : vector<8xf32> to vector<8x1xf32>
      %cst_168 = arith.constant 3.200000e+01 : f32
      %233 = vector.broadcast %cst_168 : f32 to vector<8x1xf32>
      %234 = arith.divf %232, %233 : vector<8x1xf32>
      %235 = vector.broadcast %227 : vector<8x1xf32> to vector<8x32xf32>
      %236 = arith.subf %223, %235 : vector<8x32xf32>
      %cst_169 = arith.constant 9.99999974E-6 : f32
      %237 = vector.broadcast %cst_169 : f32 to vector<8x1xf32>
      %238 = arith.addf %234, %237 : vector<8x1xf32>
      %239 = math.rsqrt %238 : vector<8x1xf32>
      %240 = vector.broadcast %239 : vector<8x1xf32> to vector<8x32xf32>
      %241 = arith.mulf %236, %240 : vector<8x32xf32>
      %c4_170 = arith.constant 4 : index
      %c0_171 = arith.constant 0 : index
      %c0_172 = arith.constant 0 : index
      %242 = vector.load %arg8[%c4_170, %c0_171, %c0_172] : memref<6x1x32xf32, #tpu.memory_space<vmem>>, vector<1x1x32xf32>
      %243 = vector.shape_cast %242 : vector<1x1x32xf32> to vector<1x32xf32>
      %244 = vector.broadcast %243 : vector<1x32xf32> to vector<8x32xf32>
      %245 = arith.mulf %241, %244 : vector<8x32xf32>
      %c4_173 = arith.constant 4 : index
      %c0_174 = arith.constant 0 : index
      %c0_175 = arith.constant 0 : index
      %246 = vector.load %arg9[%c4_173, %c0_174, %c0_175] : memref<6x1x32xf32, #tpu.memory_space<vmem>>, vector<1x1x32xf32>
      %247 = vector.shape_cast %246 : vector<1x1x32xf32> to vector<1x32xf32>
      %248 = vector.broadcast %247 : vector<1x32xf32> to vector<8x32xf32>
      %249 = arith.addf %245, %248 : vector<8x32xf32>
      %c0_176 = arith.constant 0 : index
      %c0_177 = arith.constant 0 : index
      %250 = vector.load %arg13[%c0_176, %c0_177] : memref<8x32xf32, #tpu.memory_space<vmem>>, vector<8x32xf32>
      tpu.vector_store %arg13[%c0_176, %c0_177], %249 {strides = array<i32>} : memref<8x32xf32, #tpu.memory_space<vmem>>, vector<8x32xf32>,
      %251 = vector.extract_strided_slice %222 {offsets = [0, 32], sizes = [8, 1], strides = [1, 1]} : vector<8x33xf32> to vector<8x1xf32>
      %252 = arith.negf %251 : vector<8x1xf32>
      %253 = math.exp %252 : vector<8x1xf32>
      %cst_178 = arith.constant 1.000000e+00 : f32
      %254 = vector.broadcast %cst_178 : f32 to vector<8x1xf32>
      %255 = arith.addf %254, %253 : vector<8x1xf32>
      %256 = arith.divf %254, %255 : vector<8x1xf32>
      %c0_179 = arith.constant 0 : index
      %c4_180 = arith.constant 4 : index
      %257 = vector.load %arg16[%c0_179, %c4_180] : memref<8x6xf32, #tpu.memory_space<vmem>>, vector<8x1xf32>
      tpu.vector_store %arg16[%c0_179, %c4_180], %256 {strides = array<i32>} : memref<8x6xf32, #tpu.memory_space<vmem>>, vector<8x1xf32>,
      %c0_181 = arith.constant 0 : index
      %c0_182 = arith.constant 0 : index
      %258 = vector.load %arg15[%c0_181, %c0_182] : memref<8x1xf32, #tpu.memory_space<vmem>>, vector<8x1xf32>
      %259 = arith.minimumf %258, %256 : vector<8x1xf32>
      %c0_183 = arith.constant 0 : index
      %c0_184 = arith.constant 0 : index
      %260 = vector.load %arg14[%c0_183, %c0_184] : memref<8x32xf32, #tpu.memory_space<vmem>>, vector<8x32xf32>
      %261 = vector.broadcast %259 : vector<8x1xf32> to vector<8x32xf32>
      %262 = arith.mulf %261, %249 : vector<8x32xf32>
      %263 = arith.addf %260, %262 : vector<8x32xf32>
      %c0_185 = arith.constant 0 : index
      %c0_186 = arith.constant 0 : index
      %264 = vector.load %arg14[%c0_185, %c0_186] : memref<8x32xf32, #tpu.memory_space<vmem>>, vector<8x32xf32>
      tpu.vector_store %arg14[%c0_185, %c0_186], %263 {strides = array<i32>} : memref<8x32xf32, #tpu.memory_space<vmem>>, vector<8x32xf32>,
      %265 = arith.subf %258, %259 : vector<8x1xf32>
      %c0_187 = arith.constant 0 : index
      %c0_188 = arith.constant 0 : index
      %266 = vector.load %arg15[%c0_187, %c0_188] : memref<8x1xf32, #tpu.memory_space<vmem>>, vector<8x1xf32>
      tpu.vector_store %arg15[%c0_187, %c0_188], %265 {strides = array<i32>} : memref<8x1xf32, #tpu.memory_space<vmem>>, vector<8x1xf32>,
      %c5_i32 = arith.constant 5 : i32
      %c0_189 = arith.constant 0 : index
      %267 = memref.load %arg18[%c0_189] : memref<1xi32, #tpu.memory_space<smem>>
      memref.store %c5_i32, %arg18[%c0_189] : memref<1xi32, #tpu.memory_space<smem>>
      %268 = vector.shape_cast %265 : vector<8x1xf32> to vector<1x8x1xf32>
      %cst_190 = arith.constant dense<0xFF800000> : vector<1xf32>
      %269 = vector.multi_reduction <maximumf>, %268, %cst_190 [1, 2] : vector<1x8x1xf32> to vector<1xf32>
      %270 = vector.shape_cast %269 : vector<1xf32> to vector<1x1x1xf32>
      %271 = vector.extract %270[0, 0, 0] : f32 from vector<1x1x1xf32>
      %cst_191 = arith.constant 0.899999976 : f32
      %272 = arith.cmpf olt, %271, %cst_191 : f32
      %273 = arith.extui %272 : i1 to i32
      %c0_192 = arith.constant 0 : index
      %274 = memref.load %arg17[%c0_192] : memref<1xi32, #tpu.memory_space<smem>>
      memref.store %273, %arg17[%c0_192] : memref<1xi32, #tpu.memory_space<smem>>
    } else {
    }
    %c0_128 = arith.constant 0 : index
    %182 = memref.load %arg17[%c0_128] : memref<1xi32, #tpu.memory_space<smem>>
    %c0_i32_129 = arith.constant 0 : i32
    %183 = arith.cmpi eq, %182, %c0_i32_129 : i32
    %184 = arith.extui %183 : i1 to i32
    %c0_i32_130 = arith.constant 0 : i32
    %185 = arith.cmpi ne, %184, %c0_i32_130 : i32
    scf.if %185 {
      %c0_149 = arith.constant 0 : index
      %c0_150 = arith.constant 0 : index
      %206 = vector.load %arg13[%c0_149, %c0_150] : memref<8x32xf32, #tpu.memory_space<vmem>>, vector<8x32xf32>
      %c5 = arith.constant 5 : index
      %c0_151 = arith.constant 0 : index
      %c0_152 = arith.constant 0 : index
      %207 = vector.load %arg4[%c5, %c0_151, %c0_152] : memref<6x32x144xf32, #tpu.memory_space<vmem>>, vector<1x32x144xf32>
      %208 = vector.shape_cast %207 : vector<1x32x144xf32> to vector<32x144xf32>
      %cst_153 = arith.constant dense<0.000000e+00> : vector<8x144xf32>
      %209 = tpu.matmul %206, %208, %cst_153 {dimension_numbers = #tpu.dot_dimension_numbers<[1], [0], [0], [1], [0, 0, 1, 1], [], []>} : vector<8x32xf32>, vector<32x144xf32>, vector<8x144xf32> -> vector<8x144xf32>
      %c5_154 = arith.constant 5 : index
      %c0_155 = arith.constant 0 : index
      %c0_156 = arith.constant 0 : index
      %210 = vector.load %arg5[%c5_154, %c0_155, %c0_156] : memref<6x1x144xf32, #tpu.memory_space<vmem>>, vector<1x1x144xf32>
      %211 = vector.shape_cast %210 : vector<1x1x144xf32> to vector<1x144xf32>
      %212 = vector.broadcast %211 : vector<1x144xf32> to vector<8x144xf32>
      %213 = arith.addf %209, %212 : vector<8x144xf32>
      %cst_157 = arith.constant 0.000000e+00 : f32
      %214 = vector.broadcast %cst_157 : f32 to vector<8x144xf32>
      %215 = arith.maximumf %213, %214 : vector<8x144xf32>
      %c5_158 = arith.constant 5 : index
      %c0_159 = arith.constant 0 : index
      %c0_160 = arith.constant 0 : index
      %216 = vector.load %arg6[%c5_158, %c0_159, %c0_160] : memref<6x144x33xf32, #tpu.memory_space<vmem>>, vector<1x144x33xf32>
      %217 = vector.shape_cast %216 : vector<1x144x33xf32> to vector<144x33xf32>
      %cst_161 = arith.constant dense<0.000000e+00> : vector<8x33xf32>
      %218 = tpu.matmul %215, %217, %cst_161 {dimension_numbers = #tpu.dot_dimension_numbers<[1], [0], [0], [1], [0, 0, 1, 1], [], []>} : vector<8x144xf32>, vector<144x33xf32>, vector<8x33xf32> -> vector<8x33xf32>
      %c5_162 = arith.constant 5 : index
      %c0_163 = arith.constant 0 : index
      %c0_164 = arith.constant 0 : index
      %219 = vector.load %arg7[%c5_162, %c0_163, %c0_164] : memref<6x1x33xf32, #tpu.memory_space<vmem>>, vector<1x1x33xf32>
      %220 = vector.shape_cast %219 : vector<1x1x33xf32> to vector<1x33xf32>
      %221 = vector.broadcast %220 : vector<1x33xf32> to vector<8x33xf32>
      %222 = arith.addf %218, %221 : vector<8x33xf32>
      %223 = vector.extract_strided_slice %222 {offsets = [0, 0], sizes = [8, 32], strides = [1, 1]} : vector<8x33xf32> to vector<8x32xf32>
      %cst_165 = arith.constant dense<0.000000e+00> : vector<8xf32>
      %224 = vector.multi_reduction <add>, %223, %cst_165 [1] : vector<8x32xf32> to vector<8xf32>
      %225 = vector.shape_cast %224 : vector<8xf32> to vector<8x1xf32>
      %cst_166 = arith.constant 3.200000e+01 : f32
      %226 = vector.broadcast %cst_166 : f32 to vector<8x1xf32>
      %227 = arith.divf %225, %226 : vector<8x1xf32>
      %228 = vector.broadcast %227 : vector<8x1xf32> to vector<8x32xf32>
      %229 = arith.subf %223, %228 : vector<8x32xf32>
      %230 = arith.mulf %229, %229 : vector<8x32xf32>
      %cst_167 = arith.constant dense<0.000000e+00> : vector<8xf32>
      %231 = vector.multi_reduction <add>, %230, %cst_167 [1] : vector<8x32xf32> to vector<8xf32>
      %232 = vector.shape_cast %231 : vector<8xf32> to vector<8x1xf32>
      %cst_168 = arith.constant 3.200000e+01 : f32
      %233 = vector.broadcast %cst_168 : f32 to vector<8x1xf32>
      %234 = arith.divf %232, %233 : vector<8x1xf32>
      %235 = vector.broadcast %227 : vector<8x1xf32> to vector<8x32xf32>
      %236 = arith.subf %223, %235 : vector<8x32xf32>
      %cst_169 = arith.constant 9.99999974E-6 : f32
      %237 = vector.broadcast %cst_169 : f32 to vector<8x1xf32>
      %238 = arith.addf %234, %237 : vector<8x1xf32>
      %239 = math.rsqrt %238 : vector<8x1xf32>
      %240 = vector.broadcast %239 : vector<8x1xf32> to vector<8x32xf32>
      %241 = arith.mulf %236, %240 : vector<8x32xf32>
      %c5_170 = arith.constant 5 : index
      %c0_171 = arith.constant 0 : index
      %c0_172 = arith.constant 0 : index
      %242 = vector.load %arg8[%c5_170, %c0_171, %c0_172] : memref<6x1x32xf32, #tpu.memory_space<vmem>>, vector<1x1x32xf32>
      %243 = vector.shape_cast %242 : vector<1x1x32xf32> to vector<1x32xf32>
      %244 = vector.broadcast %243 : vector<1x32xf32> to vector<8x32xf32>
      %245 = arith.mulf %241, %244 : vector<8x32xf32>
      %c5_173 = arith.constant 5 : index
      %c0_174 = arith.constant 0 : index
      %c0_175 = arith.constant 0 : index
      %246 = vector.load %arg9[%c5_173, %c0_174, %c0_175] : memref<6x1x32xf32, #tpu.memory_space<vmem>>, vector<1x1x32xf32>
      %247 = vector.shape_cast %246 : vector<1x1x32xf32> to vector<1x32xf32>
      %248 = vector.broadcast %247 : vector<1x32xf32> to vector<8x32xf32>
      %249 = arith.addf %245, %248 : vector<8x32xf32>
      %c0_176 = arith.constant 0 : index
      %c0_177 = arith.constant 0 : index
      %250 = vector.load %arg13[%c0_176, %c0_177] : memref<8x32xf32, #tpu.memory_space<vmem>>, vector<8x32xf32>
      tpu.vector_store %arg13[%c0_176, %c0_177], %249 {strides = array<i32>} : memref<8x32xf32, #tpu.memory_space<vmem>>, vector<8x32xf32>,
      %251 = vector.extract_strided_slice %222 {offsets = [0, 32], sizes = [8, 1], strides = [1, 1]} : vector<8x33xf32> to vector<8x1xf32>
      %252 = arith.negf %251 : vector<8x1xf32>
      %253 = math.exp %252 : vector<8x1xf32>
      %cst_178 = arith.constant 1.000000e+00 : f32
      %254 = vector.broadcast %cst_178 : f32 to vector<8x1xf32>
      %255 = arith.addf %254, %253 : vector<8x1xf32>
      %256 = arith.divf %254, %255 : vector<8x1xf32>
      %c0_179 = arith.constant 0 : index
      %c5_180 = arith.constant 5 : index
      %257 = vector.load %arg16[%c0_179, %c5_180] : memref<8x6xf32, #tpu.memory_space<vmem>>, vector<8x1xf32>
      tpu.vector_store %arg16[%c0_179, %c5_180], %256 {strides = array<i32>} : memref<8x6xf32, #tpu.memory_space<vmem>>, vector<8x1xf32>,
      %c0_181 = arith.constant 0 : index
      %c0_182 = arith.constant 0 : index
      %258 = vector.load %arg15[%c0_181, %c0_182] : memref<8x1xf32, #tpu.memory_space<vmem>>, vector<8x1xf32>
      %259 = arith.minimumf %258, %256 : vector<8x1xf32>
      %c0_183 = arith.constant 0 : index
      %c0_184 = arith.constant 0 : index
      %260 = vector.load %arg14[%c0_183, %c0_184] : memref<8x32xf32, #tpu.memory_space<vmem>>, vector<8x32xf32>
      %261 = vector.broadcast %259 : vector<8x1xf32> to vector<8x32xf32>
      %262 = arith.mulf %261, %249 : vector<8x32xf32>
      %263 = arith.addf %260, %262 : vector<8x32xf32>
      %c0_185 = arith.constant 0 : index
      %c0_186 = arith.constant 0 : index
      %264 = vector.load %arg14[%c0_185, %c0_186] : memref<8x32xf32, #tpu.memory_space<vmem>>, vector<8x32xf32>
      tpu.vector_store %arg14[%c0_185, %c0_186], %263 {strides = array<i32>} : memref<8x32xf32, #tpu.memory_space<vmem>>, vector<8x32xf32>,
      %265 = arith.subf %258, %259 : vector<8x1xf32>
      %c0_187 = arith.constant 0 : index
      %c0_188 = arith.constant 0 : index
      %266 = vector.load %arg15[%c0_187, %c0_188] : memref<8x1xf32, #tpu.memory_space<vmem>>, vector<8x1xf32>
      tpu.vector_store %arg15[%c0_187, %c0_188], %265 {strides = array<i32>} : memref<8x1xf32, #tpu.memory_space<vmem>>, vector<8x1xf32>,
      %c6_i32 = arith.constant 6 : i32
      %c0_189 = arith.constant 0 : index
      %267 = memref.load %arg18[%c0_189] : memref<1xi32, #tpu.memory_space<smem>>
      memref.store %c6_i32, %arg18[%c0_189] : memref<1xi32, #tpu.memory_space<smem>>
      %268 = vector.shape_cast %265 : vector<8x1xf32> to vector<1x8x1xf32>
      %cst_190 = arith.constant dense<0xFF800000> : vector<1xf32>
      %269 = vector.multi_reduction <maximumf>, %268, %cst_190 [1, 2] : vector<1x8x1xf32> to vector<1xf32>
      %270 = vector.shape_cast %269 : vector<1xf32> to vector<1x1x1xf32>
      %271 = vector.extract %270[0, 0, 0] : f32 from vector<1x1x1xf32>
      %cst_191 = arith.constant 0.899999976 : f32
      %272 = arith.cmpf olt, %271, %cst_191 : f32
      %273 = arith.extui %272 : i1 to i32
      %c0_192 = arith.constant 0 : index
      %274 = memref.load %arg17[%c0_192] : memref<1xi32, #tpu.memory_space<smem>>
      memref.store %273, %arg17[%c0_192] : memref<1xi32, #tpu.memory_space<smem>>
    } else {
    }
    %c0_131 = arith.constant 0 : index
    %c0_132 = arith.constant 0 : index
    %186 = vector.load %arg15[%c0_131, %c0_132] : memref<8x1xf32, #tpu.memory_space<vmem>>, vector<8x1xf32>
    %c0_133 = arith.constant 0 : index
    %c0_134 = arith.constant 0 : index
    %187 = vector.load %arg14[%c0_133, %c0_134] : memref<8x32xf32, #tpu.memory_space<vmem>>, vector<8x32xf32>
    %188 = vector.shape_cast %186 : vector<8x1xf32> to vector<1x8x1xf32>
    %cst_135 = arith.constant dense<0.000000e+00> : vector<1xf32>
    %189 = vector.multi_reduction <add>, %188, %cst_135 [1, 2] : vector<1x8x1xf32> to vector<1xf32>
    %190 = vector.shape_cast %189 : vector<1xf32> to vector<1x1x1xf32>
    %191 = vector.extract %190[0, 0, 0] : f32 from vector<1x1x1xf32>
    %cst_136 = arith.constant 0.000000e+00 : f32
    %192 = arith.cmpf ogt, %191, %cst_136 : f32
    %c0_137 = arith.constant 0 : index
    %c0_138 = arith.constant 0 : index
    %193 = vector.load %arg13[%c0_137, %c0_138] : memref<8x32xf32, #tpu.memory_space<vmem>>, vector<8x32xf32>
    %194 = vector.broadcast %186 : vector<8x1xf32> to vector<8x32xf32>
    %195 = arith.mulf %194, %193 : vector<8x32xf32>
    %196 = arith.addf %187, %195 : vector<8x32xf32>
    %197 = arith.select %192, %196, %187 : vector<8x32xf32>
    %c0_139 = arith.constant 0 : index
    %c0_140 = arith.constant 0 : index
    %198 = vector.load %arg10[%c0_139, %c0_140] : memref<8x32xf32, #tpu.memory_space<vmem>>, vector<8x32xf32>
    tpu.vector_store %arg10[%c0_139, %c0_140], %197 {strides = array<i32>} : memref<8x32xf32, #tpu.memory_space<vmem>>, vector<8x32xf32>,
    %c0_141 = arith.constant 0 : index
    %c0_142 = arith.constant 0 : index
    %199 = vector.load %arg16[%c0_141, %c0_142] : memref<8x6xf32, #tpu.memory_space<vmem>>, vector<8x6xf32>
    %c0_143 = arith.constant 0 : index
    %c0_144 = arith.constant 0 : index
    %200 = vector.load %arg11[%c0_143, %c0_144] : memref<8x6xf32, #tpu.memory_space<vmem>>, vector<8x6xf32>
    tpu.vector_store %arg11[%c0_143, %c0_144], %199 {strides = array<i32>} : memref<8x6xf32, #tpu.memory_space<vmem>>, vector<8x6xf32>,
    %c0_i32_145 = arith.constant 0 : i32
    %201 = vector.broadcast %c0_i32_145 : i32 to vector<8x1xi32>
    %c0_146 = arith.constant 0 : index
    %202 = memref.load %arg18[%c0_146] : memref<1xi32, #tpu.memory_space<smem>>
    %203 = vector.broadcast %202 : i32 to vector<8x1xi32>
    %204 = arith.addi %201, %203 : vector<8x1xi32>
    %c0_147 = arith.constant 0 : index
    %c0_148 = arith.constant 0 : index
    %205 = vector.load %arg12[%c0_147, %c0_148] : memref<8x1xi32, #tpu.memory_space<vmem>>, vector<8x1xi32>
    tpu.vector_store %arg12[%c0_147, %c0_148], %204 {strides = array<i32>} : memref<8x1xi32, #tpu.memory_space<vmem>>, vector<8x1xi32>,
    return
  }
  func.func @transform_0(%arg0: i32) -> (i32, i32) {
    %c0_i32 = arith.constant 0 : i32
    %c0_i32_0 = arith.constant 0 : i32
    return %arg0, %c0_i32 : i32, i32
  }
  func.func @transform_1(%arg0: i32) -> (i32, i32) {
    %c0_i32 = arith.constant 0 : i32
    %c0_i32_0 = arith.constant 0 : i32
    %c0_i32_1 = arith.constant 0 : i32
    return %c0_i32, %c0_i32_0 : i32, i32
  }
  func.func @transform_2(%arg0: i32) -> (i32, i32) {
    %c0_i32 = arith.constant 0 : i32
    %c0_i32_0 = arith.constant 0 : i32
    %c0_i32_1 = arith.constant 0 : i32
    return %c0_i32, %c0_i32_0 : i32, i32
  }
  func.func @transform_3(%arg0: i32) -> (i32, i32, i32) {
    %c0_i32 = arith.constant 0 : i32
    %c0_i32_0 = arith.constant 0 : i32
    %c0_i32_1 = arith.constant 0 : i32
    %c0_i32_2 = arith.constant 0 : i32
    return %c0_i32, %c0_i32_0, %c0_i32_1 : i32, i32, i32
  }
  func.func @transform_4(%arg0: i32) -> (i32, i32, i32) {
    %c0_i32 = arith.constant 0 : i32
    %c0_i32_0 = arith.constant 0 : i32
    %c0_i32_1 = arith.constant 0 : i32
    %c0_i32_2 = arith.constant 0 : i32
    return %c0_i32, %c0_i32_0, %c0_i32_1 : i32, i32, i32
  }
  func.func @transform_5(%arg0: i32) -> (i32, i32, i32) {
    %c0_i32 = arith.constant 0 : i32
    %c0_i32_0 = arith.constant 0 : i32
    %c0_i32_1 = arith.constant 0 : i32
    %c0_i32_2 = arith.constant 0 : i32
    return %c0_i32, %c0_i32_0, %c0_i32_1 : i32, i32, i32
  }
  func.func @transform_6(%arg0: i32) -> (i32, i32, i32) {
    %c0_i32 = arith.constant 0 : i32
    %c0_i32_0 = arith.constant 0 : i32
    %c0_i32_1 = arith.constant 0 : i32
    %c0_i32_2 = arith.constant 0 : i32
    return %c0_i32, %c0_i32_0, %c0_i32_1 : i32, i32, i32
  }
  func.func @transform_7(%arg0: i32) -> (i32, i32, i32) {
    %c0_i32 = arith.constant 0 : i32
    %c0_i32_0 = arith.constant 0 : i32
    %c0_i32_1 = arith.constant 0 : i32
    %c0_i32_2 = arith.constant 0 : i32
    return %c0_i32, %c0_i32_0, %c0_i32_1 : i32, i32, i32
  }
  func.func @transform_8(%arg0: i32) -> (i32, i32, i32) {
    %c0_i32 = arith.constant 0 : i32
    %c0_i32_0 = arith.constant 0 : i32
    %c0_i32_1 = arith.constant 0 : i32
    %c0_i32_2 = arith.constant 0 : i32
    return %c0_i32, %c0_i32_0, %c0_i32_1 : i32, i32, i32
  }
  func.func @transform_9(%arg0: i32) -> (i32, i32) {
    %c0_i32 = arith.constant 0 : i32
    %c0_i32_0 = arith.constant 0 : i32
    return %arg0, %c0_i32 : i32, i32
  }
  func.func @transform_10(%arg0: i32) -> (i32, i32) {
    %c0_i32 = arith.constant 0 : i32
    %c0_i32_0 = arith.constant 0 : i32
    return %arg0, %c0_i32 : i32, i32
  }
  func.func @transform_11(%arg0: i32) -> (i32, i32) {
    %c0_i32 = arith.constant 0 : i32
    %c0_i32_0 = arith.constant 0 : i32
    return %arg0, %c0_i32 : i32, i32
  }
}

</mosaic_0001>

<llo_original>
// kernel: tpu_custom_call.1
$region0: #{tpu_custom_call.1}
  #allocation0 [shape = 'u32[]', space=smem, size = 0x4, offset = 0x4, fixed_abs, tag = 'smem constant byte address 0x4 - core index']
  #allocation1 [shape = 'u32[144,128]{1,0:T(1,128)}', space=vmem, size = 0x12000, scoped, tag = 'internal scratch']
  #allocation2 [shape = 'f32[8,32]{1,0:T(8,128)}', space=vmem, size = 0x1000, scoped, tag = 'scratch operand']
  #allocation3 [shape = 'f32[8,32]{1,0:T(8,128)}', space=vmem, size = 0x1000, scoped, tag = 'scratch operand']
  #allocation4 [shape = 'f32[8,1]{1,0:T(8,128)}', space=vmem, size = 0x1000, scoped, tag = 'scratch operand']
  #allocation5 [shape = 'f32[8,6]{1,0:T(8,128)}', space=vmem, size = 0x1000, scoped, tag = 'scratch operand']
  #allocation6 [shape = 's32[1]{0:T(128)}', space=smem, size = 0x200, scoped, tag = 'scratch operand']
  #allocation7 [shape = 's32[1]{0:T(128)}', space=smem, size = 0x200, scoped, tag = 'scratch operand']
  %s0 = inlined_call_operand.vmem [shape: f32[16,32], index: 0, kind: input, shape index: {}]
  %s1 = inlined_call_operand.vmem [shape: f32[32,32], index: 1, kind: input, shape index: {}]
  %s2 = inlined_call_operand.vmem [shape: f32[1,32], index: 2, kind: input, shape index: {}]
  %s3 = inlined_call_operand.vmem [shape: f32[6,32,144], index: 3, kind: input, shape index: {}]
  %s4 = inlined_call_operand.vmem [shape: f32[6,1,144], index: 4, kind: input, shape index: {}]
  %s5 = inlined_call_operand.vmem [shape: f32[6,144,33], index: 5, kind: input, shape index: {}]
  %s6 = inlined_call_operand.vmem [shape: f32[6,1,33], index: 6, kind: input, shape index: {}]
  %s7 = inlined_call_operand.vmem [shape: f32[6,1,32], index: 7, kind: input, shape index: {}]
  %s8 = inlined_call_operand.vmem [shape: f32[6,1,32], index: 8, kind: input, shape index: {}]
  %s9 = inlined_call_operand.hbm [shape: f32[16,32], index: 9, kind: output, shape index: {0}]
  %s10 = inlined_call_operand.vmem [shape: f32[16,6], index: 10, kind: output, shape index: {1}]
  %s11 = inlined_call_operand.vmem [shape: s32[16,1], index: 11, kind: output, shape index: {2}]
  %12 = xla_tuple %s9, %s10, %s11
  %s13 = sld [smem:[#allocation0]]
  $region97: #{tpu_custom_call.1} parent=0
    _
  %s15 = ssub.s32 1, %s13
  %s16 = scalar_select 0, %s15, %s13
  $region1: #{tpu_custom_call.1} parent=0
    #allocation8 [shape = 'u8[8192]{0}', space=vmem, size = 0x2000, scoped, tag = 'output window, operand 0']
    #allocation9 [shape = 's32[2]{0}', space=sflag, size = 0x8, scoped, tag = 'scoped memory for tpu_custom_call.1']
    %17 = vsyncpa [#allocation9], 0
    %s18 = scalar_lea.sflag [#allocation9], 1
    %19 = vsyncpa %s18, 0
    loop: start=0, step=1, limit=4
    $region2: #{tpu_custom_call.1} parent=1 // loop_pre_header
      _
    $region3: #{tpu_custom_call.1} parent=1 // loop_header
      %s21 = sphi 0, %s25
      %p22 = scmp.ge.s32.totalorder %s21, 4
      %s31 = sphi 0, %s33
      %s34 = sphi 0, %s31
      %s35 = sphi 0, %s34
      %s51 = sphi 0, %s35
      %s55 = sphi 0, %s55
      %s57 = sphi 0, %s55
      %s58 = sphi 0, %s57
      %s72 = sphi 0, %s58
      %s76 = sphi 0, %s76
      %s78 = sphi 0, %s76
      %s79 = sphi 0, %s78
      %s93 = sphi 0, %s79
      %s97 = sphi 0, %s97
      %s99 = sphi 0, %s97
      %s100 = sphi 0, %s99
      %s114 = sphi 0, %s100
      %s118 = sphi 0, %s118
      %s120 = sphi 0, %s118
      %s121 = sphi 0, %s120
      %s135 = sphi 0, %s121
      %s139 = sphi 0, %s139
      %s141 = sphi 0, %s139
      %s142 = sphi 0, %s141
      %s156 = sphi 0, %s142
      %s160 = sphi 0, %s160
      %s162 = sphi 0, %s160
      %s163 = sphi 0, %s162
      %s177 = sphi 0, %s163
      %s181 = sphi 0, %s181
      %s183 = sphi 0, %s181
      %s184 = sphi 0, %s183
      %s198 = sphi 0, %s184
      %s202 = sphi 0, %s202
      %s204 = sphi 0, %s202
      %s205 = sphi 0, %s204
      %s219 = sphi 0, %s205
      %s225 = sphi 0, %s227
      %s228 = sphi 0, %s225
      %s229 = sphi 0, %s228
      %s245 = sphi 0, %s229
      %s251 = sphi 0, %s253
      %s254 = sphi 0, %s251
      %s255 = sphi 0, %s254
      %s271 = sphi 0, %s255
      %s277 = sphi 0, %s279
      %s280 = sphi 0, %s277
      %s281 = sphi 0, %s280
      %s297 = sphi 0, %s281
    $region4: #{tpu_custom_call.1} parent=1 // loop_header_branch
      %24 = sbr.rel (%p22) target = $region8
    $region5: #{tpu_custom_call.1} parent=1 // loop_body
      %s26 = ssub.s32 %s21, 1
      %s27 = ssub.s32 %s21, 2
      %s28 = sadd.s32 %s21, 1
      %s29 = ssub.s32 %s21, %s28
      %p30 = scmp.eq.s32.totalorder %s29, 0
      %s32 = sadd.s32 %s31, 1
      %s33 = scalar_select %p30, %s31, %s32
      %p36 = pneg %p30
      %p37 = scmp.eq.s32.totalorder %s21, 1
      %p38 = por %p36, %p37
      %p39 = scmp.ne.s32.totalorder %s31, %s34
      %p40 = scmp.eq.s32.totalorder %s21, 0
      %p41 = por %p39, %p40
      %p42 = scmp.ne.s32.totalorder %s31, %s34
      %p43 = scmp.eq.s32.totalorder %s26, 1
      %p44 = por %p42, %p43
      %p45 = scmp.ne.s32.totalorder %s34, %s35
      %p46 = scmp.eq.s32.totalorder %s26, 0
      %p47 = por %p45, %p46
      %p48 = scmp.ne.s32.totalorder %s34, %s35
      %p49 = scmp.eq.s32.totalorder %s27, 1
      %p50 = por %p48, %p49
      %p52 = scmp.ne.s32.totalorder %s35, %s51
      %p53 = scmp.eq.s32.totalorder %s27, 0
      %p54 = por %p52, %p53
      %s56 = sadd.s32 %s55, 1
      %p59 = scmp.eq.s32.totalorder %s21, 1
      %p60 = scmp.ne.s32.totalorder %s55, %s57
      %p61 = scmp.eq.s32.totalorder %s21, 0
      %p62 = por %p60, %p61
      %p63 = scmp.ne.s32.totalorder %s55, %s57
      %p64 = scmp.eq.s32.totalorder %s26, 1
      %p65 = por %p63, %p64
      %p66 = scmp.ne.s32.totalorder %s57, %s58
      %p67 = scmp.eq.s32.totalorder %s26, 0
      %p68 = por %p66, %p67
      %p69 = scmp.ne.s32.totalorder %s57, %s58
      %p70 = scmp.eq.s32.totalorder %s27, 1
      %p71 = por %p69, %p70
      %p73 = scmp.ne.s32.totalorder %s58, %s72
      %p74 = scmp.eq.s32.totalorder %s27, 0
      %p75 = por %p73, %p74
      %s77 = sadd.s32 %s76, 1
      %p80 = scmp.eq.s32.totalorder %s21, 1
      %p81 = scmp.ne.s32.totalorder %s76, %s78
      %p82 = scmp.eq.s32.totalorder %s21, 0
      %p83 = por %p81, %p82
      %p84 = scmp.ne.s32.totalorder %s76, %s78
      %p85 = scmp.eq.s32.totalorder %s26, 1
      %p86 = por %p84, %p85
      %p87 = scmp.ne.s32.totalorder %s78, %s79
      %p88 = scmp.eq.s32.totalorder %s26, 0
      %p89 = por %p87, %p88
      %p90 = scmp.ne.s32.totalorder %s78, %s79
      %p91 = scmp.eq.s32.totalorder %s27, 1
      %p92 = por %p90, %p91
      %p94 = scmp.ne.s32.totalorder %s79, %s93
      %p95 = scmp.eq.s32.totalorder %s27, 0
      %p96 = por %p94, %p95
      %s98 = sadd.s32 %s97, 1
      %p101 = scmp.eq.s32.totalorder %s21, 1
      %p102 = scmp.ne.s32.totalorder %s97, %s99
      %p103 = scmp.eq.s32.totalorder %s21, 0
      %p104 = por %p102, %p103
      %p105 = scmp.ne.s32.totalorder %s97, %s99
      %p106 = scmp.eq.s32.totalorder %s26, 1
      %p107 = por %p105, %p106
      %p108 = scmp.ne.s32.totalorder %s99, %s100
      %p109 = scmp.eq.s32.totalorder %s26, 0
      %p110 = por %p108, %p109
      %p111 = scmp.ne.s32.totalorder %s99, %s100
      %p112 = scmp.eq.s32.totalorder %s27, 1
      %p113 = por %p111, %p112
      %p115 = scmp.ne.s32.totalorder %s100, %s114
      %p116 = scmp.eq.s32.totalorder %s27, 0
      %p117 = por %p115, %p116
      %s119 = sadd.s32 %s118, 1
      %p122 = scmp.eq.s32.totalorder %s21, 1
      %p123 = scmp.ne.s32.totalorder %s118, %s120
      %p124 = scmp.eq.s32.totalorder %s21, 0
      %p125 = por %p123, %p124
      %p126 = scmp.ne.s32.totalorder %s118, %s120
      %p127 = scmp.eq.s32.totalorder %s26, 1
      %p128 = por %p126, %p127
      %p129 = scmp.ne.s32.totalorder %s120, %s121
      %p130 = scmp.eq.s32.totalorder %s26, 0
      %p131 = por %p129, %p130
      %p132 = scmp.ne.s32.totalorder %s120, %s121
      %p133 = scmp.eq.s32.totalorder %s27, 1
      %p134 = por %p132, %p133
      %p136 = scmp.ne.s32.totalorder %s121, %s135
      %p137 = scmp.eq.s32.totalorder %s27, 0
      %p138 = por %p136, %p137
      %s140 = sadd.s32 %s139, 1
      %p143 = scmp.eq.s32.totalorder %s21, 1
      %p144 = scmp.ne.s32.totalorder %s139, %s141
      %p145 = scmp.eq.s32.totalorder %s21, 0
      %p146 = por %p144, %p145
      %p147 = scmp.ne.s32.totalorder %s139, %s141
      %p148 = scmp.eq.s32.totalorder %s26, 1
      %p149 = por %p147, %p148
      %p150 = scmp.ne.s32.totalorder %s141, %s142
      %p151 = scmp.eq.s32.totalorder %s26, 0
      %p152 = por %p150, %p151
      %p153 = scmp.ne.s32.totalorder %s141, %s142
      %p154 = scmp.eq.s32.totalorder %s27, 1
      %p155 = por %p153, %p154
      %p157 = scmp.ne.s32.totalorder %s142, %s156
      %p158 = scmp.eq.s32.totalorder %s27, 0
      %p159 = por %p157, %p158
      %s161 = sadd.s32 %s160, 1
      %p164 = scmp.eq.s32.totalorder %s21, 1
      %p165 = scmp.ne.s32.totalorder %s160, %s162
      %p166 = scmp.eq.s32.totalorder %s21, 0
      %p167 = por %p165, %p166
      %p168 = scmp.ne.s32.totalorder %s160, %s162
      %p169 = scmp.eq.s32.totalorder %s26, 1
      %p170 = por %p168, %p169
      %p171 = scmp.ne.s32.totalorder %s162, %s163
      %p172 = scmp.eq.s32.totalorder %s26, 0
      %p173 = por %p171, %p172
      %p174 = scmp.ne.s32.totalorder %s162, %s163
      %p175 = scmp.eq.s32.totalorder %s27, 1
      %p176 = por %p174, %p175
      %p178 = scmp.ne.s32.totalorder %s163, %s177
      %p179 = scmp.eq.s32.totalorder %s27, 0
      %p180 = por %p178, %p179
      %s182 = sadd.s32 %s181, 1
      %p185 = scmp.eq.s32.totalorder %s21, 1
      %p186 = scmp.ne.s32.totalorder %s181, %s183
      %p187 = scmp.eq.s32.totalorder %s21, 0
      %p188 = por %p186, %p187
      %p189 = scmp.ne.s32.totalorder %s181, %s183
      %p190 = scmp.eq.s32.totalorder %s26, 1
      %p191 = por %p189, %p190
      %p192 = scmp.ne.s32.totalorder %s183, %s184
      %p193 = scmp.eq.s32.totalorder %s26, 0
      %p194 = por %p192, %p193
      %p195 = scmp.ne.s32.totalorder %s183, %s184
      %p196 = scmp.eq.s32.totalorder %s27, 1
      %p197 = por %p195, %p196
      %p199 = scmp.ne.s32.totalorder %s184, %s198
      %p200 = scmp.eq.s32.totalorder %s27, 0
      %p201 = por %p199, %p200
      %s203 = sadd.s32 %s202, 1
      %p206 = scmp.eq.s32.totalorder %s21, 1
      %p207 = scmp.ne.s32.totalorder %s202, %s204
      %p208 = scmp.eq.s32.totalorder %s21, 0
      %p209 = por %p207, %p208
      %p210 = scmp.ne.s32.totalorder %s202, %s204
      %p211 = scmp.eq.s32.totalorder %s26, 1
      %p212 = por %p210, %p211
      %p213 = scmp.ne.s32.totalorder %s204, %s205
      %p214 = scmp.eq.s32.totalorder %s26, 0
      %p215 = por %p213, %p214
      %p216 = scmp.ne.s32.totalorder %s204, %s205
      %p217 = scmp.eq.s32.totalorder %s27, 1
      %p218 = por %p216, %p217
      %p220 = scmp.ne.s32.totalorder %s205, %s219
      %p221 = scmp.eq.s32.totalorder %s27, 0
      %p222 = por %p220, %p221
      %s223 = ssub.s32 %s21, %s28
      %p224 = scmp.eq.s32.totalorder %s223, 0
      %s226 = sadd.s32 %s225, 1
      %s227 = scalar_select %p224, %s225, %s226
      %p230 = pneg %p224
      %p231 = scmp.eq.s32.totalorder %s21, 1
      %p232 = por %p230, %p231
      %p233 = scmp.ne.s32.totalorder %s225, %s228
      %p234 = scmp.eq.s32.totalorder %s21, 0
      %p235 = por %p233, %p234
      %p236 = scmp.ne.s32.totalorder %s225, %s228
      %p237 = scmp.eq.s32.totalorder %s26, 1
      %p238 = por %p236, %p237
      %p239 = scmp.ne.s32.totalorder %s228, %s229
      %p240 = scmp.eq.s32.totalorder %s26, 0
      %p241 = por %p239, %p240
      %p242 = scmp.ne.s32.totalorder %s228, %s229
      %p243 = scmp.eq.s32.totalorder %s27, 1
      %p244 = por %p242, %p243
      %p246 = scmp.ne.s32.totalorder %s229, %s245
      %p247 = scmp.eq.s32.totalorder %s27, 0
      %p248 = por %p246, %p247
      %s249 = ssub.s32 %s21, %s28
      %p250 = scmp.eq.s32.totalorder %s249, 0
      %s252 = sadd.s32 %s251, 1
      %s253 = scalar_select %p250, %s251, %s252
      %p256 = pneg %p250
      %p257 = scmp.eq.s32.totalorder %s21, 1
      %p258 = por %p256, %p257
      %p259 = scmp.ne.s32.totalorder %s251, %s254
      %p260 = scmp.eq.s32.totalorder %s21, 0
      %p261 = por %p259, %p260
      %p262 = scmp.ne.s32.totalorder %s251, %s254
      %p263 = scmp.eq.s32.totalorder %s26, 1
      %p264 = por %p262, %p263
      %p265 = scmp.ne.s32.totalorder %s254, %s255
      %p266 = scmp.eq.s32.totalorder %s26, 0
      %p267 = por %p265, %p266
      %p268 = scmp.ne.s32.totalorder %s254, %s255
      %p269 = scmp.eq.s32.totalorder %s27, 1
      %p270 = por %p268, %p269
      %p272 = scmp.ne.s32.totalorder %s255, %s271
      %p273 = scmp.eq.s32.totalorder %s27, 0
      %p274 = por %p272, %p273
      %s275 = ssub.s32 %s21, %s28
      %p276 = scmp.eq.s32.totalorder %s275, 0
      %s278 = sadd.s32 %s277, 1
      %s279 = scalar_select %p276, %s277, %s278
      %p282 = pneg %p276
      %p283 = scmp.eq.s32.totalorder %s21, 1
      %p284 = por %p282, %p283
      %p285 = scmp.ne.s32.totalorder %s277, %s280
      %p286 = scmp.eq.s32.totalorder %s21, 0
      %p287 = por %p285, %p286
      %p288 = scmp.ne.s32.totalorder %s277, %s280
      %p289 = scmp.eq.s32.totalorder %s26, 1
      %p290 = por %p288, %p289
      %p291 = scmp.ne.s32.totalorder %s280, %s281
      %p292 = scmp.eq.s32.totalorder %s26, 0
      %p293 = por %p291, %p292
      %p294 = scmp.ne.s32.totalorder %s280, %s281
      %p295 = scmp.eq.s32.totalorder %s27, 1
      %p296 = por %p294, %p295
      %p298 = scmp.ne.s32.totalorder %s281, %s297
      %p299 = scmp.eq.s32.totalorder %s27, 0
      %p300 = por %p298, %p299
      %p301 = scmp.le.s32.totalorder 1, %s21
      %p302 = scmp.lt.s32.totalorder %s21, 3
      %p303 = pnand %p301, %p302
      %p304 = pneg %p303
      // Predicated region
      $region9: #{tpu_custom_call.1} parent=5 // pred_check
        _
      $region10: #{tpu_custom_call.1} parent=5 // pred_check_branch
        %306 = sbr.rel (%p303) target = $region12
      $region11: #{tpu_custom_call.1} parent=5 // pred_region
        %s307 = ssub.s32 %s21, 1
        // Predicated region
        $region13: #{tpu_custom_call.1} parent=11 // pred_check
          %p308 = pneg %p68
        $region14: #{tpu_custom_call.1} parent=11 // pred_check_branch
          %310 = sbr.rel (%p308) target = $region16
        $region15: #{tpu_custom_call.1} parent=11 // pred_region
          _
        $region16: #{tpu_custom_call.1} parent=11 // pred_fallthru
          _
        // Predicated region
        $region17: #{tpu_custom_call.1} parent=11 // pred_check
          %p311 = pneg %p89
        $region18: #{tpu_custom_call.1} parent=11 // pred_check_branch
          %313 = sbr.rel (%p311) target = $region20
        $region19: #{tpu_custom_call.1} parent=11 // pred_region
          _
        $region20: #{tpu_custom_call.1} parent=11 // pred_fallthru
          _
        // Predicated region
        $region21: #{tpu_custom_call.1} parent=11 // pred_check
          %p314 = pneg %p110
        $region22: #{tpu_custom_call.1} parent=11 // pred_check_branch
          %316 = sbr.rel (%p314) target = $region24
        $region23: #{tpu_custom_call.1} parent=11 // pred_region
          _
        $region24: #{tpu_custom_call.1} parent=11 // pred_fallthru
          _
        // Predicated region
        $region25: #{tpu_custom_call.1} parent=11 // pred_check
          %p317 = pneg %p131
        $region26: #{tpu_custom_call.1} parent=11 // pred_check_branch
          %319 = sbr.rel (%p317) target = $region28
        $region27: #{tpu_custom_call.1} parent=11 // pred_region
          _
        $region28: #{tpu_custom_call.1} parent=11 // pred_fallthru
          _
        // Predicated region
        $region29: #{tpu_custom_call.1} parent=11 // pred_check
          %p320 = pneg %p152
        $region30: #{tpu_custom_call.1} parent=11 // pred_check_branch
          %322 = sbr.rel (%p320) target = $region32
        $region31: #{tpu_custom_call.1} parent=11 // pred_region
          _
        $region32: #{tpu_custom_call.1} parent=11 // pred_fallthru
          _
        // Predicated region
        $region33: #{tpu_custom_call.1} parent=11 // pred_check
          %p323 = pneg %p173
        $region34: #{tpu_custom_call.1} parent=11 // pred_check_branch
          %325 = sbr.rel (%p323) target = $region36
        $region35: #{tpu_custom_call.1} parent=11 // pred_region
          _
        $region36: #{tpu_custom_call.1} parent=11 // pred_fallthru
          _
        // Predicated region
        $region37: #{tpu_custom_call.1} parent=11 // pred_check
          %p326 = pneg %p194
        $region38: #{tpu_custom_call.1} parent=11 // pred_check_branch
          %328 = sbr.rel (%p326) target = $region40
        $region39: #{tpu_custom_call.1} parent=11 // pred_region
          _
        $region40: #{tpu_custom_call.1} parent=11 // pred_fallthru
          _
        // Predicated region
        $region41: #{tpu_custom_call.1} parent=11 // pred_check
          %p329 = pneg %p215
        $region42: #{tpu_custom_call.1} parent=11 // pred_check_branch
          %331 = sbr.rel (%p329) target = $region44
        $region43: #{tpu_custom_call.1} parent=11 // pred_region
          _
        $region44: #{tpu_custom_call.1} parent=11 // pred_fallthru
          _
      $region12: #{tpu_custom_call.1} parent=5 // pred_fallthru
        _
      %p332 = scmp.lt.s32.totalorder %s21, 2
      // Predicated region
      $region45: #{tpu_custom_call.1} parent=5 // pred_check
        %p333 = pneg %p332
      $region46: #{tpu_custom_call.1} parent=5 // pred_check_branch
        %335 = sbr.rel (%p333) target = $region48
      $region47: #{tpu_custom_call.1} parent=5 // pred_region
        // Predicated region
        $region49: #{tpu_custom_call.1} parent=47 // pred_check
          %p336 = pneg %p41
        $region50: #{tpu_custom_call.1} parent=47 // pred_check_branch
          %338 = sbr.rel (%p336) target = $region52
        $region51: #{tpu_custom_call.1} parent=47 // pred_region
          %p339 = scmp.lt.s32.totalorder %s21, 1
          %s340 = scalar_select %p339, %s21, 1
          %s341 = smul.addr %s340, 8
          %s342 = scalar_lea.vmem %s0, %s341
        $region52: #{tpu_custom_call.1} parent=47 // pred_fallthru
          _
      $region48: #{tpu_custom_call.1} parent=5 // pred_fallthru
        _
      %p343 = scmp.le.s32.totalorder 1, %s21
      %p344 = scmp.lt.s32.totalorder %s21, 3
      %p345 = pnand %p343, %p344
      %p346 = pneg %p345
      // Predicated region
      $region53: #{tpu_custom_call.1} parent=5 // pred_check
        _
      $region54: #{tpu_custom_call.1} parent=5 // pred_check_branch
        %348 = sbr.rel (%p345) target = $region56
      $region55: #{tpu_custom_call.1} parent=5 // pred_region
        %s349 = ssub.s32 %s21, 1
        %p350 = scmp.lt.s32.totalorder %s26, 1
        %s351 = scalar_select %p350, %s26, 1
        %s352 = smul.addr %s351, 8
        %s353 = scalar_lea.vmem %s0, %s352
        %p354 = pneg %p47
        %p355 = pneg %p44
        %p356 = pneg %p68
        %p357 = pneg %p65
        %p358 = pneg %p89
        %p359 = pneg %p86
        %p360 = pneg %p110
        %p361 = pneg %p107
        %p362 = pneg %p131
        %p363 = pneg %p128
        %p364 = pneg %p152
        %p365 = pneg %p149
        %p366 = pneg %p173
        %p367 = pneg %p170
        %p368 = pneg %p194
        %p369 = pneg %p191
        %p370 = pneg %p215
        %p371 = pneg %p212
        %p372 = pneg %p241
        %p373 = pneg %p238
        %s374 = sand.u32 %s228, 1
        %s375 = scalar_lea.sflag [#allocation9], %s374
        %s376 = sand.u32 %s228, 1
        %s377 = smul.addr %s376, 8
        %s378 = scalar_lea.vmem [#allocation8], %s377
        %p379 = pneg %p267
        %p380 = pneg %p264
        %p381 = scmp.lt.s32.totalorder %s26, 1
        %s382 = scalar_select %p381, %s26, 1
        %s383 = smul.addr %s382, 8
        %s384 = scalar_lea.vmem %s10, %s383
        %p385 = pneg %p293
        %p386 = pneg %p290
        %p387 = scmp.lt.s32.totalorder %s26, 1
        %s388 = scalar_select %p387, %s26, 1
        %s389 = smul.addr %s388, 8
        %s390 = scalar_lea.vmem %s11, %s389
        %p391 = scmp.lt.s32.totalorder %s26, 1
        %s392 = scalar_select %p391, %s26, 1
        %s393 = smul.addr %s392, 8
        %s394 = scalar_lea.vmem %s0, %s393
        %p395 = scmp.lt.s32.totalorder %s26, 1
        %s396 = scalar_select %p395, %s26, 1
        %s397 = smul.addr %s396, 8
        %s398 = scalar_lea.vmem %s10, %s397
        %p399 = scmp.lt.s32.totalorder %s26, 1
        %s400 = scalar_select %p399, %s26, 1
        %s401 = smul.addr %s400, 8
        %s402 = scalar_lea.vmem %s11, %s401
        %v403 = vld [vmem:[%s394] sm:$0xff]
        %v404 = vld [vmem:[%s1] sm:$0xff]
        %v405 = vld [vmem:[%s1 + $0x8] sm:$0xff]
        %v406 = vld [vmem:[%s1 + $0x10] sm:$0xff]
        %v407 = vld [vmem:[%s1 + $0x18] sm:$0xff]
        %v408 = vld [vmem:[%s2] sm:$0x1]
        %v410 = vlaneseq
        %v411 = vshrl.u32 %v410, 7
        %v412 = vsub.s32 0, %v411
        %v413 = vrot.slane %v408, %v412
        %vm415 = vcmask 261120
        %v417 = vsel %vm415, %v403, 0
        %419 = vmatprep.subr.mxu0 0.0
        %420 = vmatpush1.msra.mxu0 %v404
        %421 = vmatprep.subr.mxu0 0.0
        %422 = vmatpush1.msra.mxu0 %v405
        %423 = vmatprep.subr.mxu0 0.0
        %424 = vmatpush1.msra.mxu0 %v406
        %425 = vmatprep.subr.mxu0 0.0
        %426 = vmatpush1.msra.mxu0 %v407
        %427 = vmatprep.subr.mxu0 0.0
        %428 = vmatpush1.msra.mxu0 0.0
        %429 = vmatprep.subr.mxu0 0.0
        %430 = vmatpush1.msra.mxu0 0.0
        %431 = vmatprep.subr.mxu0 0.0
        %432 = vmatpush1.msra.mxu0 0.0
        %433 = vmatprep.subr.mxu0 0.0
        %434 = vmatpush1.msra.mxu0 0.0
        %435 = vmatprep.subr.mxu0 0.0
        %436 = vmatpush1.msra.mxu0 0.0
        %437 = vmatprep.subr.mxu0 0.0
        %438 = vmatpush1.msra.mxu0 0.0
        %439 = vmatprep.subr.mxu0 0.0
        %440 = vmatpush1.msra.mxu0 0.0
        %441 = vmatprep.subr.mxu0 0.0
        %442 = vmatpush1.msra.mxu0 0.0
        %443 = vmatprep.subr.mxu0 0.0
        %444 = vmatpush1.msra.mxu0 0.0
        %445 = vmatprep.subr.mxu0 0.0
        %446 = vmatpush1.msra.mxu0 0.0
        %447 = vmatprep.subr.mxu0 0.0
        %448 = vmatpush1.msra.mxu0 0.0
        %449 = vmatprep.subr.mxu0 0.0
        %450 = vmatpush1.msra.mxu0 0.0
        %451 = vmatprep.subr.mxu0 0.0
        %452 = vmatpush1.msra.mxu0 0.0
        %453 = vmatprep.subr.mxu0 0.0
        %454 = vmatpush1.msra.mxu0 0.0
        %455 = vmatprep.subr.mxu0 0.0
        %456 = vmatpush1.msra.mxu0 0.0
        %457 = vmatprep.subr.mxu0 0.0
        %458 = vmatpush1.msra.mxu0 0.0
        %459 = vmatprep.subr.mxu0 0.0
        %460 = vmatpush1.msra.mxu0 0.0
        %461 = vmatprep.subr.mxu0 0.0
        %462 = vmatpush1.msra.mxu0 0.0
        %463 = vmatprep.subr.mxu0 0.0
        %464 = vmatpush1.msra.mxu0 0.0
        %465 = vmatprep.subr.mxu0 0.0
        %466 = vmatpush1.msra.mxu0 0.0
        %467 = vmatprep.subr.mxu0 0.0
        %468 = vmatpush1.msra.mxu0 0.0
        %469 = vmatprep.subr.mxu0 0.0
        %470 = vmatpush1.msra.mxu0 0.0
        %471 = vmatprep.subr.mxu0 0.0
        %472 = vmatpush1.msra.mxu0 0.0
        %473 = vmatprep.subr.mxu0 0.0
        %474 = vmatpush1.msra.mxu0 0.0
        %475 = vmatprep.subr.mxu0 0.0
        %476 = vmatpush1.msra.mxu0 0.0
        %477 = vmatprep.subr.mxu0 0.0
        %478 = vmatpush1.msra.mxu0 0.0
        %479 = vmatprep.subr.mxu0 0.0
        %480 = vmatpush1.msra.mxu0 0.0
        %481 = vmatprep.subr.mxu0 0.0
        %482 = vmatpush1.msra.mxu0 0.0
        %483 = vmatprep.mubr.f32.mxu0 0.0
        %484 = vmatmul.mubr.f32.gmra.mrb[0].mxu0 %v417
        %v485 = vpop.f32.mrb[0].mxu0
        %v486 = vadd.f32 %v413, %v485
        %v487 = vpop.f32.mrb[0].mxu0
        %488 = vdwg.mxu0
        %489 = vst.msk [vmem:[#allocation2] sm:$0xff] %vm415, %v486
        %490 = vst.msk [vmem:[#allocation3] sm:$0xff] %vm415, 0.0
        %vm491 = vcmask 7168
        %492 = vst.msk [vmem:[#allocation4] sm:$0xff] %vm491, 1.0
        %vm493 = vcmask 48128
        %494 = vst.msk [vmem:[#allocation5] sm:$0xff] %vm493, 0.0
        %s495 = scalar_lea.smem [#allocation6], 0
        %496 = sst [smem:[%s495]] 0
        %s497 = scalar_lea.smem [#allocation7], 0
        %498 = sst [smem:[%s497]] 0
        %v499 = vld [vmem:[#allocation2] sm:$0xff]
        %v500 = vld [vmem:[%s3] sm:$0xff]
        %v501 = vld [vmem:[%s3 + $0x8] sm:$0xff]
        %v502 = vld [vmem:[%s3 + $0x10] sm:$0xff]
        %v503 = vld [vmem:[%s3 + $0x18] sm:$0xff]
        %v504 = vld [vmem:[%s3 + $0x20] sm:$0xff]
        %v505 = vld [vmem:[%s3 + $0x28] sm:$0xff]
        %v506 = vld [vmem:[%s3 + $0x30] sm:$0xff]
        %v507 = vld [vmem:[%s3 + $0x38] sm:$0xff]
        %v508 = vld [vmem:[%s4] sm:$0x3]
        %v510 = vlaneseq
        %v511 = vshrl.u32 %v510, 7
        %v512 = vsub.s32 0, %v511
        %v513 = vrot.slane %v508, %v512
        %v514 = vlaneseq
        %v515 = vshrl.u32 %v514, 7
        %v516 = vsub.s32 1, %v515
        %v517 = vrot.slane %v508, %v516
        %v521 = vsel %vm415, %v499, 0
        %523 = vmatprep.subr.mxu0 %v501
        %524 = vmatpush1.msra.mxu0 %v500
        %525 = vmatprep.subr.mxu0 %v503
        %526 = vmatpush1.msra.mxu0 %v502
        %527 = vmatprep.subr.mxu0 %v505
        %528 = vmatpush1.msra.mxu0 %v504
        %529 = vmatprep.subr.mxu0 %v507
        %530 = vmatpush1.msra.mxu0 %v506
        %531 = vmatprep.subr.mxu0 0.0
        %532 = vmatpush1.msra.mxu0 0.0
        %533 = vmatprep.subr.mxu0 0.0
        %534 = vmatpush1.msra.mxu0 0.0
        %535 = vmatprep.subr.mxu0 0.0
        %536 = vmatpush1.msra.mxu0 0.0
        %537 = vmatprep.subr.mxu0 0.0
        %538 = vmatpush1.msra.mxu0 0.0
        %539 = vmatprep.subr.mxu0 0.0
        %540 = vmatpush1.msra.mxu0 0.0
        %541 = vmatprep.subr.mxu0 0.0
        %542 = vmatpush1.msra.mxu0 0.0
        %543 = vmatprep.subr.mxu0 0.0
        %544 = vmatpush1.msra.mxu0 0.0
        %545 = vmatprep.subr.mxu0 0.0
        %546 = vmatpush1.msra.mxu0 0.0
        %547 = vmatprep.subr.mxu0 0.0
        %548 = vmatpush1.msra.mxu0 0.0
        %549 = vmatprep.subr.mxu0 0.0
        %550 = vmatpush1.msra.mxu0 0.0
        %551 = vmatprep.subr.mxu0 0.0
        %552 = vmatpush1.msra.mxu0 0.0
        %553 = vmatprep.subr.mxu0 0.0
        %554 = vmatpush1.msra.mxu0 0.0
        %555 = vmatprep.subr.mxu0 0.0
        %556 = vmatpush1.msra.mxu0 0.0
        %557 = vmatprep.subr.mxu0 0.0
        %558 = vmatpush1.msra.mxu0 0.0
        %559 = vmatprep.subr.mxu0 0.0
        %560 = vmatpush1.msra.mxu0 0.0
        %561 = vmatprep.subr.mxu0 0.0
        %562 = vmatpush1.msra.mxu0 0.0
        %563 = vmatprep.subr.mxu0 0.0
        %564 = vmatpush1.msra.mxu0 0.0
        %565 = vmatprep.subr.mxu0 0.0
        %566 = vmatpush1.msra.mxu0 0.0
        %567 = vmatprep.subr.mxu0 0.0
        %568 = vmatpush1.msra.mxu0 0.0
        %569 = vmatprep.subr.mxu0 0.0
        %570 = vmatpush1.msra.mxu0 0.0
        %571 = vmatprep.subr.mxu0 0.0
        %572 = vmatpush1.msra.mxu0 0.0
        %573 = vmatprep.subr.mxu0 0.0
        %574 = vmatpush1.msra.mxu0 0.0
        %575 = vmatprep.subr.mxu0 0.0
        %576 = vmatpush1.msra.mxu0 0.0
        %577 = vmatprep.subr.mxu0 0.0
        %578 = vmatpush1.msra.mxu0 0.0
        %579 = vmatprep.subr.mxu0 0.0
        %580 = vmatpush1.msra.mxu0 0.0
        %581 = vmatprep.subr.mxu0 0.0
        %582 = vmatpush1.msra.mxu0 0.0
        %583 = vmatprep.subr.mxu0 0.0
        %584 = vmatpush1.msra.mxu0 0.0
        %585 = vmatprep.subr.mxu0 0.0
        %586 = vmatpush1.msra.mxu0 0.0
        %587 = vmatprep.mubr.f32.mxu0 0.0
        %588 = vmatmul.mubr.f32.gmra.mrb[0].mxu0 %v521
        %v589 = vpop.f32.mrb[0].mxu0
        %v590 = vadd.f32 %v513, %v589
        %v591 = vpop.f32.mrb[0].mxu0
        %v592 = vadd.f32 %v517, %v591
        %593 = vdwg.mxu0
        %v594 = vmax.f32 %v590, 0.0
        %v595 = vmax.f32 %v592, 0.0
        %v596 = vld [vmem:[%s5] sm:$0xff]
        %v597 = vld [vmem:[%s5 + $0x8] sm:$0xff]
        %v598 = vld [vmem:[%s5 + $0x10] sm:$0xff]
        %v599 = vld [vmem:[%s5 + $0x18] sm:$0xff]
        %v600 = vld [vmem:[%s5 + $0x20] sm:$0xff]
        %v601 = vld [vmem:[%s5 + $0x28] sm:$0xff]
        %v602 = vld [vmem:[%s5 + $0x30] sm:$0xff]
        %v603 = vld [vmem:[%s5 + $0x38] sm:$0xff]
        %v604 = vld [vmem:[%s5 + $0x40] sm:$0xff]
        %v605 = vld [vmem:[%s5 + $0x48] sm:$0xff]
        %v606 = vld [vmem:[%s5 + $0x50] sm:$0xff]
        %v607 = vld [vmem:[%s5 + $0x58] sm:$0xff]
        %v608 = vld [vmem:[%s5 + $0x60] sm:$0xff]
        %v609 = vld [vmem:[%s5 + $0x68] sm:$0xff]
        %v610 = vld [vmem:[%s5 + $0x70] sm:$0xff]
        %v611 = vld [vmem:[%s5 + $0x78] sm:$0xff]
        %v612 = vld [vmem:[%s5 + $0x80] sm:$0xff]
        %v613 = vld [vmem:[%s5 + $0x88] sm:$0xff]
        %v614 = vld [vmem:[%s6] sm:$0x1]
        %v616 = vlaneseq
        %v617 = vshrl.u32 %v616, 7
        %v618 = vsub.s32 0, %v617
        %v619 = vrot.slane %v614, %v618
        %vm621 = vcmask 130048
        %v623 = vsel %vm621, %v595, 0
        %625 = vmatprep.subr.mxu0 0.0
        %626 = vmatpush1.msra.mxu0 %v596
        %627 = vmatprep.subr.mxu0 0.0
        %628 = vmatpush1.msra.mxu0 %v597
        %629 = vmatprep.subr.mxu0 0.0
        %630 = vmatpush1.msra.mxu0 %v598
        %631 = vmatprep.subr.mxu0 0.0
        %632 = vmatpush1.msra.mxu0 %v599
        %633 = vmatprep.subr.mxu0 0.0
        %634 = vmatpush1.msra.mxu0 %v600
        %635 = vmatprep.subr.mxu0 0.0
        %636 = vmatpush1.msra.mxu0 %v601
        %637 = vmatprep.subr.mxu0 0.0
        %638 = vmatpush1.msra.mxu0 %v602
        %639 = vmatprep.subr.mxu0 0.0
        %640 = vmatpush1.msra.mxu0 %v603
        %641 = vmatprep.subr.mxu0 0.0
        %642 = vmatpush1.msra.mxu0 %v604
        %643 = vmatprep.subr.mxu0 0.0
        %644 = vmatpush1.msra.mxu0 %v605
        %645 = vmatprep.subr.mxu0 0.0
        %646 = vmatpush1.msra.mxu0 %v606
        %647 = vmatprep.subr.mxu0 0.0
        %648 = vmatpush1.msra.mxu0 %v607
        %649 = vmatprep.subr.mxu0 0.0
        %650 = vmatpush1.msra.mxu0 %v608
        %651 = vmatprep.subr.mxu0 0.0
        %652 = vmatpush1.msra.mxu0 %v609
        %653 = vmatprep.subr.mxu0 0.0
        %654 = vmatpush1.msra.mxu0 %v610
        %655 = vmatprep.subr.mxu0 0.0
        %656 = vmatpush1.msra.mxu0 %v611
        %657 = vmatprep.subr.mxu0 0.0
        %658 = vmatpush1.msra.mxu0 %v612
        %659 = vmatprep.subr.mxu0 0.0
        %660 = vmatpush1.msra.mxu0 %v613
        %661 = vmatprep.subr.mxu0 0.0
        %662 = vmatpush1.msra.mxu0 0.0
        %663 = vmatprep.subr.mxu0 0.0
        %664 = vmatpush1.msra.mxu0 0.0
        %665 = vmatprep.subr.mxu0 0.0
        %666 = vmatpush1.msra.mxu0 0.0
        %667 = vmatprep.subr.mxu0 0.0
        %668 = vmatpush1.msra.mxu0 0.0
        %669 = vmatprep.subr.mxu0 0.0
        %670 = vmatpush1.msra.mxu0 0.0
        %671 = vmatprep.subr.mxu0 0.0
        %672 = vmatpush1.msra.mxu0 0.0
        %673 = vmatprep.subr.mxu0 0.0
        %674 = vmatpush1.msra.mxu0 0.0
        %675 = vmatprep.subr.mxu0 0.0
        %676 = vmatpush1.msra.mxu0 0.0
        %677 = vmatprep.subr.mxu0 0.0
        %678 = vmatpush1.msra.mxu0 0.0
        %679 = vmatprep.subr.mxu0 0.0
        %680 = vmatpush1.msra.mxu0 0.0
        %681 = vmatprep.subr.mxu0 0.0
        %682 = vmatpush1.msra.mxu0 0.0
        %683 = vmatprep.subr.mxu0 0.0
        %684 = vmatpush1.msra.mxu0 0.0
        %685 = vmatprep.subr.mxu0 0.0
        %686 = vmatpush1.msra.mxu0 0.0
        %687 = vmatprep.subr.mxu0 0.0
        %688 = vmatpush1.msra.mxu0 0.0
        %689 = vmatprep.mubr.f32.mxu0 %v623
        %690 = vmatmul.mubr.f32.gmra.mrb[0].mxu0 %v594
        %v691 = vpop.f32.mrb[0].mxu0
        %v692 = vadd.f32 %v619, %v691
        %v693 = vpop.f32.mrb[0].mxu0
        %694 = vdwg.mxu0
        %v695 = vsel %vm415, %v692, 0.0
        %696 = vadd.xlane.f32.xlu0 %v695
        %v697 = vpop.xlane.xlu0 %696
        %v698 = vrcp.pop 32.0
        %v699 = vmul.f32 %v697, %v698
        %v700 = vsub.f32 %v692, %v699
        %v701 = vmul.f32 %v700, %v700
        %v702 = vsel %vm415, %v701, 0.0
        %703 = vadd.xlane.f32.xlu0 %v702
        %v704 = vpop.xlane.xlu0 %703
        %v705 = vmul.f32 %v704, %v698
        %v706 = vadd.f32 %v705, 1e-05
        %v707 = vrsqrt.pop %v706
        %v708 = vmul.f32 %v700, %v707
        %v709 = vld [vmem:[%s7] sm:$0x1]
        %v711 = vlaneseq
        %v712 = vshrl.u32 %v711, 7
        %v713 = vsub.s32 0, %v712
        %v714 = vrot.slane %v709, %v713
        %v716 = vmul.f32 %v708, %v714
        %v717 = vld [vmem:[%s8] sm:$0x1]
        %v719 = vlaneseq
        %v720 = vshrl.u32 %v719, 7
        %v721 = vsub.s32 0, %v720
        %v722 = vrot.slane %v717, %v721
        %v724 = vadd.f32 %v716, %v722
        %725 = vst.msk [vmem:[#allocation2] sm:$0xff] %vm415, %v724
        %v726 = vld [vmem:[#allocation2] sm:$0xff]
        %s727 = scalar_lea.vmem %s3, 64
        %v728 = vld [vmem:[%s727] sm:$0xff]
        %v729 = vld [vmem:[%s727 + $0x8] sm:$0xff]
        %v730 = vld [vmem:[%s727 + $0x10] sm:$0xff]
        %v731 = vld [vmem:[%s727 + $0x18] sm:$0xff]
        %v732 = vld [vmem:[%s727 + $0x20] sm:$0xff]
        %v733 = vld [vmem:[%s727 + $0x28] sm:$0xff]
        %v734 = vld [vmem:[%s727 + $0x30] sm:$0xff]
        %v735 = vld [vmem:[%s727 + $0x38] sm:$0xff]
        %s736 = scalar_lea.vmem %s4, 2
        %v737 = vld [vmem:[%s736] sm:$0x3]
        %v739 = vlaneseq
        %v740 = vshrl.u32 %v739, 7
        %v741 = vsub.s32 0, %v740
        %v742 = vrot.slane %v737, %v741
        %v743 = vlaneseq
        %v744 = vshrl.u32 %v743, 7
        %v745 = vsub.s32 1, %v744
        %v746 = vrot.slane %v737, %v745
        %v750 = vsel %vm415, %v726, 0
        %752 = vmatprep.subr.mxu0 %v729
        %753 = vmatpush1.msra.mxu0 %v728
        %754 = vmatprep.subr.mxu0 %v731
        %755 = vmatpush1.msra.mxu0 %v730
        %756 = vmatprep.subr.mxu0 %v733
        %757 = vmatpush1.msra.mxu0 %v732
        %758 = vmatprep.subr.mxu0 %v735
        %759 = vmatpush1.msra.mxu0 %v734
        %760 = vmatprep.subr.mxu0 0.0
        %761 = vmatpush1.msra.mxu0 0.0
        %762 = vmatprep.subr.mxu0 0.0
        %763 = vmatpush1.msra.mxu0 0.0
        %764 = vmatprep.subr.mxu0 0.0
        %765 = vmatpush1.msra.mxu0 0.0
        %766 = vmatprep.subr.mxu0 0.0
        %767 = vmatpush1.msra.mxu0 0.0
        %768 = vmatprep.subr.mxu0 0.0
        %769 = vmatpush1.msra.mxu0 0.0
        %770 = vmatprep.subr.mxu0 0.0
        %771 = vmatpush1.msra.mxu0 0.0
        %772 = vmatprep.subr.mxu0 0.0
        %773 = vmatpush1.msra.mxu0 0.0
        %774 = vmatprep.subr.mxu0 0.0
        %775 = vmatpush1.msra.mxu0 0.0
        %776 = vmatprep.subr.mxu0 0.0
        %777 = vmatpush1.msra.mxu0 0.0
        %778 = vmatprep.subr.mxu0 0.0
        %779 = vmatpush1.msra.mxu0 0.0
        %780 = vmatprep.subr.mxu0 0.0
        %781 = vmatpush1.msra.mxu0 0.0
        %782 = vmatprep.subr.mxu0 0.0
        %783 = vmatpush1.msra.mxu0 0.0
        %784 = vmatprep.subr.mxu0 0.0
        %785 = vmatpush1.msra.mxu0 0.0
        %786 = vmatprep.subr.mxu0 0.0
        %787 = vmatpush1.msra.mxu0 0.0
        %788 = vmatprep.subr.mxu0 0.0
        %789 = vmatpush1.msra.mxu0 0.0
        %790 = vmatprep.subr.mxu0 0.0
        %791 = vmatpush1.msra.mxu0 0.0
        %792 = vmatprep.subr.mxu0 0.0
        %793 = vmatpush1.msra.mxu0 0.0
        %794 = vmatprep.subr.mxu0 0.0
        %795 = vmatpush1.msra.mxu0 0.0
        %796 = vmatprep.subr.mxu0 0.0
        %797 = vmatpush1.msra.mxu0 0.0
        %798 = vmatprep.subr.mxu0 0.0
        %799 = vmatpush1.msra.mxu0 0.0
        %800 = vmatprep.subr.mxu0 0.0
        %801 = vmatpush1.msra.mxu0 0.0
        %802 = vmatprep.subr.mxu0 0.0
        %803 = vmatpush1.msra.mxu0 0.0
        %804 = vmatprep.subr.mxu0 0.0
        %805 = vmatpush1.msra.mxu0 0.0
        %806 = vmatprep.subr.mxu0 0.0
        %807 = vmatpush1.msra.mxu0 0.0
        %808 = vmatprep.subr.mxu0 0.0
        %809 = vmatpush1.msra.mxu0 0.0
        %810 = vmatprep.subr.mxu0 0.0
        %811 = vmatpush1.msra.mxu0 0.0
        %812 = vmatprep.subr.mxu0 0.0
        %813 = vmatpush1.msra.mxu0 0.0
        %814 = vmatprep.subr.mxu0 0.0
        %815 = vmatpush1.msra.mxu0 0.0
        %816 = vmatprep.mubr.f32.mxu0 0.0
        %817 = vmatmul.mubr.f32.gmra.mrb[0].mxu0 %v750
        %v818 = vpop.f32.mrb[0].mxu0
        %v819 = vadd.f32 %v742, %v818
        %v820 = vpop.f32.mrb[0].mxu0
        %v821 = vadd.f32 %v746, %v820
        %822 = vdwg.mxu0
        %v823 = vmax.f32 %v819, 0.0
        %v824 = vmax.f32 %v821, 0.0
        %s825 = scalar_lea.vmem %s5, 144
        %v826 = vld [vmem:[%s825] sm:$0xff]
        %v827 = vld [vmem:[%s825 + $0x8] sm:$0xff]
        %v828 = vld [vmem:[%s825 + $0x10] sm:$0xff]
        %v829 = vld [vmem:[%s825 + $0x18] sm:$0xff]
        %v830 = vld [vmem:[%s825 + $0x20] sm:$0xff]
        %v831 = vld [vmem:[%s825 + $0x28] sm:$0xff]
        %v832 = vld [vmem:[%s825 + $0x30] sm:$0xff]
        %v833 = vld [vmem:[%s825 + $0x38] sm:$0xff]
        %v834 = vld [vmem:[%s825 + $0x40] sm:$0xff]
        %v835 = vld [vmem:[%s825 + $0x48] sm:$0xff]
        %v836 = vld [vmem:[%s825 + $0x50] sm:$0xff]
        %v837 = vld [vmem:[%s825 + $0x58] sm:$0xff]
        %v838 = vld [vmem:[%s825 + $0x60] sm:$0xff]
        %v839 = vld [vmem:[%s825 + $0x68] sm:$0xff]
        %v840 = vld [vmem:[%s825 + $0x70] sm:$0xff]
        %v841 = vld [vmem:[%s825 + $0x78] sm:$0xff]
        %v842 = vld [vmem:[%s825 + $0x80] sm:$0xff]
        %v843 = vld [vmem:[%s825 + $0x88] sm:$0xff]
        %s844 = scalar_lea.vmem %s6, 1
        %v845 = vld [vmem:[%s844] sm:$0x1]
        %v847 = vlaneseq
        %v848 = vshrl.u32 %v847, 7
        %v849 = vsub.s32 0, %v848
        %v850 = vrot.slane %v845, %v849
        %v853 = vsel %vm621, %v824, 0
        %855 = vmatprep.subr.mxu0 0.0
        %856 = vmatpush1.msra.mxu0 %v826
        %857 = vmatprep.subr.mxu0 0.0
        %858 = vmatpush1.msra.mxu0 %v827
        %859 = vmatprep.subr.mxu0 0.0
        %860 = vmatpush1.msra.mxu0 %v828
        %861 = vmatprep.subr.mxu0 0.0
        %862 = vmatpush1.msra.mxu0 %v829
        %863 = vmatprep.subr.mxu0 0.0
        %864 = vmatpush1.msra.mxu0 %v830
        %865 = vmatprep.subr.mxu0 0.0
        %866 = vmatpush1.msra.mxu0 %v831
        %867 = vmatprep.subr.mxu0 0.0
        %868 = vmatpush1.msra.mxu0 %v832
        %869 = vmatprep.subr.mxu0 0.0
        %870 = vmatpush1.msra.mxu0 %v833
        %871 = vmatprep.subr.mxu0 0.0
        %872 = vmatpush1.msra.mxu0 %v834
        %873 = vmatprep.subr.mxu0 0.0
        %874 = vmatpush1.msra.mxu0 %v835
        %875 = vmatprep.subr.mxu0 0.0
        %876 = vmatpush1.msra.mxu0 %v836
        %877 = vmatprep.subr.mxu0 0.0
        %878 = vmatpush1.msra.mxu0 %v837
        %879 = vmatprep.subr.mxu0 0.0
        %880 = vmatpush1.msra.mxu0 %v838
        %881 = vmatprep.subr.mxu0 0.0
        %882 = vmatpush1.msra.mxu0 %v839
        %883 = vmatprep.subr.mxu0 0.0
        %884 = vmatpush1.msra.mxu0 %v840
        %885 = vmatprep.subr.mxu0 0.0
        %886 = vmatpush1.msra.mxu0 %v841
        %887 = vmatprep.subr.mxu0 0.0
        %888 = vmatpush1.msra.mxu0 %v842
        %889 = vmatprep.subr.mxu0 0.0
        %890 = vmatpush1.msra.mxu0 %v843
        %891 = vmatprep.subr.mxu0 0.0
        %892 = vmatpush1.msra.mxu0 0.0
        %893 = vmatprep.subr.mxu0 0.0
        %894 = vmatpush1.msra.mxu0 0.0
        %895 = vmatprep.subr.mxu0 0.0
        %896 = vmatpush1.msra.mxu0 0.0
        %897 = vmatprep.subr.mxu0 0.0
        %898 = vmatpush1.msra.mxu0 0.0
        %899 = vmatprep.subr.mxu0 0.0
        %900 = vmatpush1.msra.mxu0 0.0
        %901 = vmatprep.subr.mxu0 0.0
        %902 = vmatpush1.msra.mxu0 0.0
        %903 = vmatprep.subr.mxu0 0.0
        %904 = vmatpush1.msra.mxu0 0.0
        %905 = vmatprep.subr.mxu0 0.0
        %906 = vmatpush1.msra.mxu0 0.0
        %907 = vmatprep.subr.mxu0 0.0
        %908 = vmatpush1.msra.mxu0 0.0
        %909 = vmatprep.subr.mxu0 0.0
        %910 = vmatpush1.msra.mxu0 0.0
        %911 = vmatprep.subr.mxu0 0.0
        %912 = vmatpush1.msra.mxu0 0.0
        %913 = vmatprep.subr.mxu0 0.0
        %914 = vmatpush1.msra.mxu0 0.0
        %915 = vmatprep.subr.mxu0 0.0
        %916 = vmatpush1.msra.mxu0 0.0
        %917 = vmatprep.subr.mxu0 0.0
        %918 = vmatpush1.msra.mxu0 0.0
        %919 = vmatprep.mubr.f32.mxu0 %v853
        %920 = vmatmul.mubr.f32.gmra.mrb[0].mxu0 %v823
        %v921 = vpop.f32.mrb[0].mxu0
        %v922 = vadd.f32 %v850, %v921
        %v923 = vpop.f32.mrb[0].mxu0
        %924 = vdwg.mxu0
        %v925 = vsel %vm415, %v922, 0.0
        %926 = vadd.xlane.f32.xlu0 %v925
        %v927 = vpop.xlane.xlu0 %926
        %v928 = vmul.f32 %v927, %v698
        %v929 = vsub.f32 %v922, %v928
        %v930 = vmul.f32 %v929, %v929
        %v931 = vsel %vm415, %v930, 0.0
        %932 = vadd.xlane.f32.xlu0 %v931
        %v933 = vpop.xlane.xlu0 %932
        %v934 = vmul.f32 %v933, %v698
        %v935 = vadd.f32 %v934, 1e-05
        %v936 = vrsqrt.pop %v935
        %v937 = vmul.f32 %v929, %v936
        %s938 = scalar_lea.vmem %s7, 1
        %v939 = vld [vmem:[%s938] sm:$0x1]
        %v941 = vlaneseq
        %v942 = vshrl.u32 %v941, 7
        %v943 = vsub.s32 0, %v942
        %v944 = vrot.slane %v939, %v943
        %v946 = vmul.f32 %v937, %v944
        %s947 = scalar_lea.vmem %s8, 1
        %v948 = vld [vmem:[%s947] sm:$0x1]
        %v950 = vlaneseq
        %v951 = vshrl.u32 %v950, 7
        %v952 = vsub.s32 0, %v951
        %v953 = vrot.slane %v948, %v952
        %v955 = vadd.f32 %v946, %v953
        %956 = vst.msk [vmem:[#allocation2] sm:$0xff] %vm415, %v955
        %v957 = vld [vmem:[#allocation2] sm:$0xff]
        %s958 = scalar_lea.vmem %s3, 128
        %v959 = vld [vmem:[%s958] sm:$0xff]
        %v960 = vld [vmem:[%s958 + $0x8] sm:$0xff]
        %v961 = vld [vmem:[%s958 + $0x10] sm:$0xff]
        %v962 = vld [vmem:[%s958 + $0x18] sm:$0xff]
        %v963 = vld [vmem:[%s958 + $0x20] sm:$0xff]
        %v964 = vld [vmem:[%s958 + $0x28] sm:$0xff]
        %v965 = vld [vmem:[%s958 + $0x30] sm:$0xff]
        %v966 = vld [vmem:[%s958 + $0x38] sm:$0xff]
        %s967 = scalar_lea.vmem %s4, 4
        %v968 = vld [vmem:[%s967] sm:$0x3]
        %v970 = vlaneseq
        %v971 = vshrl.u32 %v970, 7
        %v972 = vsub.s32 0, %v971
        %v973 = vrot.slane %v968, %v972
        %v974 = vlaneseq
        %v975 = vshrl.u32 %v974, 7
        %v976 = vsub.s32 1, %v975
        %v977 = vrot.slane %v968, %v976
        %v981 = vsel %vm415, %v957, 0
        %983 = vmatprep.subr.mxu0 %v960
        %984 = vmatpush1.msra.mxu0 %v959
        %985 = vmatprep.subr.mxu0 %v962
        %986 = vmatpush1.msra.mxu0 %v961
        %987 = vmatprep.subr.mxu0 %v964
        %988 = vmatpush1.msra.mxu0 %v963
        %989 = vmatprep.subr.mxu0 %v966
        %990 = vmatpush1.msra.mxu0 %v965
        %991 = vmatprep.subr.mxu0 0.0
        %992 = vmatpush1.msra.mxu0 0.0
        %993 = vmatprep.subr.mxu0 0.0
        %994 = vmatpush1.msra.mxu0 0.0
        %995 = vmatprep.subr.mxu0 0.0
        %996 = vmatpush1.msra.mxu0 0.0
        %997 = vmatprep.subr.mxu0 0.0
        %998 = vmatpush1.msra.mxu0 0.0
        %999 = vmatprep.subr.mxu0 0.0
        %1000 = vmatpush1.msra.mxu0 0.0
        %1001 = vmatprep.subr.mxu0 0.0
        %1002 = vmatpush1.msra.mxu0 0.0
        %1003 = vmatprep.subr.mxu0 0.0
        %1004 = vmatpush1.msra.mxu0 0.0
        %1005 = vmatprep.subr.mxu0 0.0
        %1006 = vmatpush1.msra.mxu0 0.0
        %1007 = vmatprep.subr.mxu0 0.0
        %1008 = vmatpush1.msra.mxu0 0.0
        %1009 = vmatprep.subr.mxu0 0.0
        %1010 = vmatpush1.msra.mxu0 0.0
        %1011 = vmatprep.subr.mxu0 0.0
        %1012 = vmatpush1.msra.mxu0 0.0
        %1013 = vmatprep.subr.mxu0 0.0
        %1014 = vmatpush1.msra.mxu0 0.0
        %1015 = vmatprep.subr.mxu0 0.0
        %1016 = vmatpush1.msra.mxu0 0.0
        %1017 = vmatprep.subr.mxu0 0.0
        %1018 = vmatpush1.msra.mxu0 0.0
        %1019 = vmatprep.subr.mxu0 0.0
        %1020 = vmatpush1.msra.mxu0 0.0
        %1021 = vmatprep.subr.mxu0 0.0
        %1022 = vmatpush1.msra.mxu0 0.0
        %1023 = vmatprep.subr.mxu0 0.0
        %1024 = vmatpush1.msra.mxu0 0.0
        %1025 = vmatprep.subr.mxu0 0.0
        %1026 = vmatpush1.msra.mxu0 0.0
        %1027 = vmatprep.subr.mxu0 0.0
        %1028 = vmatpush1.msra.mxu0 0.0
        %1029 = vmatprep.subr.mxu0 0.0
        %1030 = vmatpush1.msra.mxu0 0.0
        %1031 = vmatprep.subr.mxu0 0.0
        %1032 = vmatpush1.msra.mxu0 0.0
        %1033 = vmatprep.subr.mxu0 0.0
        %1034 = vmatpush1.msra.mxu0 0.0
        %1035 = vmatprep.subr.mxu0 0.0
        %1036 = vmatpush1.msra.mxu0 0.0
        %1037 = vmatprep.subr.mxu0 0.0
        %1038 = vmatpush1.msra.mxu0 0.0
        %1039 = vmatprep.subr.mxu0 0.0
        %1040 = vmatpush1.msra.mxu0 0.0
        %1041 = vmatprep.subr.mxu0 0.0
        %1042 = vmatpush1.msra.mxu0 0.0
        %1043 = vmatprep.subr.mxu0 0.0
        %1044 = vmatpush1.msra.mxu0 0.0
        %1045 = vmatprep.subr.mxu0 0.0
        %1046 = vmatpush1.msra.mxu0 0.0
        %1047 = vmatprep.mubr.f32.mxu0 0.0
        %1048 = vmatmul.mubr.f32.gmra.mrb[0].mxu0 %v981
        %v1049 = vpop.f32.mrb[0].mxu0
        %v1050 = vadd.f32 %v973, %v1049
        %v1051 = vpop.f32.mrb[0].mxu0
        %v1052 = vadd.f32 %v977, %v1051
        %1053 = vdwg.mxu0
        %v1054 = vmax.f32 %v1050, 0.0
        %v1055 = vmax.f32 %v1052, 0.0
        %s1056 = scalar_lea.vmem %s5, 288
        %v1057 = vld [vmem:[%s1056] sm:$0xff]
        %v1058 = vld [vmem:[%s1056 + $0x8] sm:$0xff]
        %v1059 = vld [vmem:[%s1056 + $0x10] sm:$0xff]
        %v1060 = vld [vmem:[%s1056 + $0x18] sm:$0xff]
        %v1061 = vld [vmem:[%s1056 + $0x20] sm:$0xff]
        %v1062 = vld [vmem:[%s1056 + $0x28] sm:$0xff]
        %v1063 = vld [vmem:[%s1056 + $0x30] sm:$0xff]
        %v1064 = vld [vmem:[%s1056 + $0x38] sm:$0xff]
        %v1065 = vld [vmem:[%s1056 + $0x40] sm:$0xff]
        %v1066 = vld [vmem:[%s1056 + $0x48] sm:$0xff]
        %v1067 = vld [vmem:[%s1056 + $0x50] sm:$0xff]
        %v1068 = vld [vmem:[%s1056 + $0x58] sm:$0xff]
        %v1069 = vld [vmem:[%s1056 + $0x60] sm:$0xff]
        %v1070 = vld [vmem:[%s1056 + $0x68] sm:$0xff]
        %v1071 = vld [vmem:[%s1056 + $0x70] sm:$0xff]
        %v1072 = vld [vmem:[%s1056 + $0x78] sm:$0xff]
        %v1073 = vld [vmem:[%s1056 + $0x80] sm:$0xff]
        %v1074 = vld [vmem:[%s1056 + $0x88] sm:$0xff]
        %s1075 = scalar_lea.vmem %s6, 2
        %v1076 = vld [vmem:[%s1075] sm:$0x1]
        %v1078 = vlaneseq
        %v1079 = vshrl.u32 %v1078, 7
        %v1080 = vsub.s32 0, %v1079
        %v1081 = vrot.slane %v1076, %v1080
        %v1084 = vsel %vm621, %v1055, 0
        %1086 = vmatprep.subr.mxu0 0.0
        %1087 = vmatpush1.msra.mxu0 %v1057
        %1088 = vmatprep.subr.mxu0 0.0
        %1089 = vmatpush1.msra.mxu0 %v1058
        %1090 = vmatprep.subr.mxu0 0.0
        %1091 = vmatpush1.msra.mxu0 %v1059
        %1092 = vmatprep.subr.mxu0 0.0
        %1093 = vmatpush1.msra.mxu0 %v1060
        %1094 = vmatprep.subr.mxu0 0.0
        %1095 = vmatpush1.msra.mxu0 %v1061
        %1096 = vmatprep.subr.mxu0 0.0
        %1097 = vmatpush1.msra.mxu0 %v1062
        %1098 = vmatprep.subr.mxu0 0.0
        %1099 = vmatpush1.msra.mxu0 %v1063
        %1100 = vmatprep.subr.mxu0 0.0
        %1101 = vmatpush1.msra.mxu0 %v1064
        %1102 = vmatprep.subr.mxu0 0.0
        %1103 = vmatpush1.msra.mxu0 %v1065
        %1104 = vmatprep.subr.mxu0 0.0
        %1105 = vmatpush1.msra.mxu0 %v1066
        %1106 = vmatprep.subr.mxu0 0.0
        %1107 = vmatpush1.msra.mxu0 %v1067
        %1108 = vmatprep.subr.mxu0 0.0
        %1109 = vmatpush1.msra.mxu0 %v1068
        %1110 = vmatprep.subr.mxu0 0.0
        %1111 = vmatpush1.msra.mxu0 %v1069
        %1112 = vmatprep.subr.mxu0 0.0
        %1113 = vmatpush1.msra.mxu0 %v1070
        %1114 = vmatprep.subr.mxu0 0.0
        %1115 = vmatpush1.msra.mxu0 %v1071
        %1116 = vmatprep.subr.mxu0 0.0
        %1117 = vmatpush1.msra.mxu0 %v1072
        %1118 = vmatprep.subr.mxu0 0.0
        %1119 = vmatpush1.msra.mxu0 %v1073
        %1120 = vmatprep.subr.mxu0 0.0
        %1121 = vmatpush1.msra.mxu0 %v1074
        %1122 = vmatprep.subr.mxu0 0.0
        %1123 = vmatpush1.msra.mxu0 0.0
        %1124 = vmatprep.subr.mxu0 0.0
        %1125 = vmatpush1.msra.mxu0 0.0
        %1126 = vmatprep.subr.mxu0 0.0
        %1127 = vmatpush1.msra.mxu0 0.0
        %1128 = vmatprep.subr.mxu0 0.0
        %1129 = vmatpush1.msra.mxu0 0.0
        %1130 = vmatprep.subr.mxu0 0.0
        %1131 = vmatpush1.msra.mxu0 0.0
        %1132 = vmatprep.subr.mxu0 0.0
        %1133 = vmatpush1.msra.mxu0 0.0
        %1134 = vmatprep.subr.mxu0 0.0
        %1135 = vmatpush1.msra.mxu0 0.0
        %1136 = vmatprep.subr.mxu0 0.0
        %1137 = vmatpush1.msra.mxu0 0.0
        %1138 = vmatprep.subr.mxu0 0.0
        %1139 = vmatpush1.msra.mxu0 0.0
        %1140 = vmatprep.subr.mxu0 0.0
        %1141 = vmatpush1.msra.mxu0 0.0
        %1142 = vmatprep.subr.mxu0 0.0
        %1143 = vmatpush1.msra.mxu0 0.0
        %1144 = vmatprep.subr.mxu0 0.0
        %1145 = vmatpush1.msra.mxu0 0.0
        %1146 = vmatprep.subr.mxu0 0.0
        %1147 = vmatpush1.msra.mxu0 0.0
        %1148 = vmatprep.subr.mxu0 0.0
        %1149 = vmatpush1.msra.mxu0 0.0
        %1150 = vmatprep.mubr.f32.mxu0 %v1084
        %1151 = vmatmul.mubr.f32.gmra.mrb[0].mxu0 %v1054
        %v1152 = vpop.f32.mrb[0].mxu0
        %v1153 = vadd.f32 %v1081, %v1152
        %v1154 = vpop.f32.mrb[0].mxu0
        %1155 = vdwg.mxu0
        %v1156 = vsel %vm415, %v1153, 0.0
        %1157 = vadd.xlane.f32.xlu0 %v1156
        %v1158 = vpop.xlane.xlu0 %1157
        %v1159 = vmul.f32 %v1158, %v698
        %v1160 = vsub.f32 %v1153, %v1159
        %v1161 = vmul.f32 %v1160, %v1160
        %v1162 = vsel %vm415, %v1161, 0.0
        %1163 = vadd.xlane.f32.xlu0 %v1162
        %v1164 = vpop.xlane.xlu0 %1163
        %v1165 = vmul.f32 %v1164, %v698
        %v1166 = vadd.f32 %v1165, 1e-05
        %v1167 = vrsqrt.pop %v1166
        %v1168 = vmul.f32 %v1160, %v1167
        %s1169 = scalar_lea.vmem %s7, 2
        %v1170 = vld [vmem:[%s1169] sm:$0x1]
        %v1172 = vlaneseq
        %v1173 = vshrl.u32 %v1172, 7
        %v1174 = vsub.s32 0, %v1173
        %v1175 = vrot.slane %v1170, %v1174
        %v1177 = vmul.f32 %v1168, %v1175
        %s1178 = scalar_lea.vmem %s8, 2
        %v1179 = vld [vmem:[%s1178] sm:$0x1]
        %v1181 = vlaneseq
        %v1182 = vshrl.u32 %v1181, 7
        %v1183 = vsub.s32 0, %v1182
        %v1184 = vrot.slane %v1179, %v1183
        %v1186 = vadd.f32 %v1177, %v1184
        %1187 = vst.msk [vmem:[#allocation2] sm:$0xff] %vm415, %v1186
        %v1188 = vxor.u32 %v1153, 2147483648
        %v1189 = vmul.f32 %v1188, 1.442695
        %v1190 = vpow.pop %v1189
        %v1191 = vadd.f32 %v1190, 1.0
        %v1192 = vrcp.pop %v1191
        %v1193 = vmul.f32 1.0, %v1192
        %1195 = vrot.lane.b32.xlu0 %v1193, 98
        %v1196 = vpop.permute.xlu0 %1195
        %vm1198 = vcmask 23568
        %1199 = vst.msk [vmem:[#allocation5] sm:$0xff] %vm1198, %v1196
        %v1200 = vld [vmem:[#allocation4] sm:$0xff]
        %1201 = vrot.lane.b32.xlu0 %v1193, 96
        %v1202 = vpop.permute.xlu0 %1201
        %v1204 = vmin.f32 %v1200, %v1202
        %v1205 = vld [vmem:[#allocation3] sm:$0xff]
        %1207 = vset.pattern.permute.xlu0 0
        %1208 = vperm.xlu0 %1207, %v1204
        %v1209 = vpop.permute.xlu0 %1208
        %v1211 = vmul.f32 %v1209, %v1186
        %v1212 = vadd.f32 %v1205, %v1211
        %1213 = vst.msk [vmem:[#allocation3] sm:$0xff] %vm415, %v1212
        %v1214 = vsub.f32 %v1200, %v1204
        %1215 = vst.msk [vmem:[#allocation4] sm:$0xff] %vm491, %v1214
        %1216 = sst [smem:[%s497]] 3
        %v1217 = vsel %vm491, %v1214, -inf
        %1218 = vmax.xlane.f32.xlu0 %v1217
        %v1219 = vpop.xlane.xlu0 %1218
        %v1220 = vrot.slane %v1219, 4
        %v1221 = vmax.f32 %v1219, %v1220
        %v1222 = vrot.slane %v1221, 2
        %v1223 = vmax.f32 %v1221, %v1222
        %v1224 = vrot.slane %v1223, 1
        %v1225 = vmax.f32 %v1223, %v1224
        %s1226 = vtos %v1225
        %p1227 = scmp.lt.f32.partialorder %s1226, 0.9
        %s1228 = scalar_select %p1227, 1, 0
        %1229 = sst [smem:[%s495]] %s1228
        %s1230 = sld [smem:[#allocation6]]
        %p1231 = scmp.eq.s32.totalorder %s1230, 0
        // Predicated region
        $region57: #{tpu_custom_call.1} parent=55 // pred_check
          %p1232 = pneg %p1231
        $region58: #{tpu_custom_call.1} parent=55 // pred_check_branch
          %1234 = sbr.rel (%p1232) target = $region60
        $region59: #{tpu_custom_call.1} parent=55 // pred_region
          %v1235 = vld [vmem:[#allocation2] sm:$0xff]
          %s1236 = scalar_lea.vmem %s3, 192
          %v1237 = vld [vmem:[%s1236] sm:$0xff]
          %v1238 = vld [vmem:[%s1236 + $0x8] sm:$0xff]
          %v1239 = vld [vmem:[%s1236 + $0x10] sm:$0xff]
          %v1240 = vld [vmem:[%s1236 + $0x18] sm:$0xff]
          %v1241 = vld [vmem:[%s1236 + $0x20] sm:$0xff]
          %v1242 = vld [vmem:[%s1236 + $0x28] sm:$0xff]
          %v1243 = vld [vmem:[%s1236 + $0x30] sm:$0xff]
          %v1244 = vld [vmem:[%s1236 + $0x38] sm:$0xff]
          %s1245 = scalar_lea.vmem %s4, 6
          %v1246 = vld [vmem:[%s1245] sm:$0x3]
          %v1248 = vlaneseq
          %v1249 = vshrl.u32 %v1248, 7
          %v1250 = vsub.s32 0, %v1249
          %v1251 = vrot.slane %v1246, %v1250
          %v1252 = vlaneseq
          %v1253 = vshrl.u32 %v1252, 7
          %v1254 = vsub.s32 1, %v1253
          %v1255 = vrot.slane %v1246, %v1254
          %v1259 = vsel %vm415, %v1235, 0
          %1261 = vmatprep.subr.mxu0 %v1238
          %1262 = vmatpush1.msra.mxu0 %v1237
          %1263 = vmatprep.subr.mxu0 %v1240
          %1264 = vmatpush1.msra.mxu0 %v1239
          %1265 = vmatprep.subr.mxu0 %v1242
          %1266 = vmatpush1.msra.mxu0 %v1241
          %1267 = vmatprep.subr.mxu0 %v1244
          %1268 = vmatpush1.msra.mxu0 %v1243
          %1269 = vmatprep.subr.mxu0 0.0
          %1270 = vmatpush1.msra.mxu0 0.0
          %1271 = vmatprep.subr.mxu0 0.0
          %1272 = vmatpush1.msra.mxu0 0.0
          %1273 = vmatprep.subr.mxu0 0.0
          %1274 = vmatpush1.msra.mxu0 0.0
          %1275 = vmatprep.subr.mxu0 0.0
          %1276 = vmatpush1.msra.mxu0 0.0
          %1277 = vmatprep.subr.mxu0 0.0
          %1278 = vmatpush1.msra.mxu0 0.0
          %1279 = vmatprep.subr.mxu0 0.0
          %1280 = vmatpush1.msra.mxu0 0.0
          %1281 = vmatprep.subr.mxu0 0.0
          %1282 = vmatpush1.msra.mxu0 0.0
          %1283 = vmatprep.subr.mxu0 0.0
          %1284 = vmatpush1.msra.mxu0 0.0
          %1285 = vmatprep.subr.mxu0 0.0
          %1286 = vmatpush1.msra.mxu0 0.0
          %1287 = vmatprep.subr.mxu0 0.0
          %1288 = vmatpush1.msra.mxu0 0.0
          %1289 = vmatprep.subr.mxu0 0.0
          %1290 = vmatpush1.msra.mxu0 0.0
          %1291 = vmatprep.subr.mxu0 0.0
          %1292 = vmatpush1.msra.mxu0 0.0
          %1293 = vmatprep.subr.mxu0 0.0
          %1294 = vmatpush1.msra.mxu0 0.0
          %1295 = vmatprep.subr.mxu0 0.0
          %1296 = vmatpush1.msra.mxu0 0.0
          %1297 = vmatprep.subr.mxu0 0.0
          %1298 = vmatpush1.msra.mxu0 0.0
          %1299 = vmatprep.subr.mxu0 0.0
          %1300 = vmatpush1.msra.mxu0 0.0
          %1301 = vmatprep.subr.mxu0 0.0
          %1302 = vmatpush1.msra.mxu0 0.0
          %1303 = vmatprep.subr.mxu0 0.0
          %1304 = vmatpush1.msra.mxu0 0.0
          %1305 = vmatprep.subr.mxu0 0.0
          %1306 = vmatpush1.msra.mxu0 0.0
          %1307 = vmatprep.subr.mxu0 0.0
          %1308 = vmatpush1.msra.mxu0 0.0
          %1309 = vmatprep.subr.mxu0 0.0
          %1310 = vmatpush1.msra.mxu0 0.0
          %1311 = vmatprep.subr.mxu0 0.0
          %1312 = vmatpush1.msra.mxu0 0.0
          %1313 = vmatprep.subr.mxu0 0.0
          %1314 = vmatpush1.msra.mxu0 0.0
          %1315 = vmatprep.subr.mxu0 0.0
          %1316 = vmatpush1.msra.mxu0 0.0
          %1317 = vmatprep.subr.mxu0 0.0
          %1318 = vmatpush1.msra.mxu0 0.0
          %1319 = vmatprep.subr.mxu0 0.0
          %1320 = vmatpush1.msra.mxu0 0.0
          %1321 = vmatprep.subr.mxu0 0.0
          %1322 = vmatpush1.msra.mxu0 0.0
          %1323 = vmatprep.subr.mxu0 0.0
          %1324 = vmatpush1.msra.mxu0 0.0
          %1325 = vmatprep.mubr.f32.mxu0 0.0
          %1326 = vmatmul.mubr.f32.gmra.mrb[0].mxu0 %v1259
          %v1327 = vpop.f32.mrb[0].mxu0
          %v1328 = vadd.f32 %v1251, %v1327
          %v1329 = vpop.f32.mrb[0].mxu0
          %v1330 = vadd.f32 %v1255, %v1329
          %1331 = vdwg.mxu0
          %v1332 = vmax.f32 %v1328, 0.0
          %v1333 = vmax.f32 %v1330, 0.0
          %s1334 = scalar_lea.vmem %s5, 432
          %v1335 = vld [vmem:[%s1334] sm:$0xff]
          %v1336 = vld [vmem:[%s1334 + $0x8] sm:$0xff]
          %v1337 = vld [vmem:[%s1334 + $0x10] sm:$0xff]
          %v1338 = vld [vmem:[%s1334 + $0x18] sm:$0xff]
          %v1339 = vld [vmem:[%s1334 + $0x20] sm:$0xff]
          %v1340 = vld [vmem:[%s1334 + $0x28] sm:$0xff]
          %v1341 = vld [vmem:[%s1334 + $0x30] sm:$0xff]
          %v1342 = vld [vmem:[%s1334 + $0x38] sm:$0xff]
          %v1343 = vld [vmem:[%s1334 + $0x40] sm:$0xff]
          %v1344 = vld [vmem:[%s1334 + $0x48] sm:$0xff]
          %v1345 = vld [vmem:[%s1334 + $0x50] sm:$0xff]
          %v1346 = vld [vmem:[%s1334 + $0x58] sm:$0xff]
          %v1347 = vld [vmem:[%s1334 + $0x60] sm:$0xff]
          %v1348 = vld [vmem:[%s1334 + $0x68] sm:$0xff]
          %v1349 = vld [vmem:[%s1334 + $0x70] sm:$0xff]
          %v1350 = vld [vmem:[%s1334 + $0x78] sm:$0xff]
          %v1351 = vld [vmem:[%s1334 + $0x80] sm:$0xff]
          %v1352 = vld [vmem:[%s1334 + $0x88] sm:$0xff]
          %s1353 = scalar_lea.vmem %s6, 3
          %v1354 = vld [vmem:[%s1353] sm:$0x1]
          %v1356 = vlaneseq
          %v1357 = vshrl.u32 %v1356, 7
          %v1358 = vsub.s32 0, %v1357
          %v1359 = vrot.slane %v1354, %v1358
          %v1362 = vsel %vm621, %v1333, 0
          %1364 = vmatprep.subr.mxu0 0.0
          %1365 = vmatpush1.msra.mxu0 %v1335
          %1366 = vmatprep.subr.mxu0 0.0
          %1367 = vmatpush1.msra.mxu0 %v1336
          %1368 = vmatprep.subr.mxu0 0.0
          %1369 = vmatpush1.msra.mxu0 %v1337
          %1370 = vmatprep.subr.mxu0 0.0
          %1371 = vmatpush1.msra.mxu0 %v1338
          %1372 = vmatprep.subr.mxu0 0.0
          %1373 = vmatpush1.msra.mxu0 %v1339
          %1374 = vmatprep.subr.mxu0 0.0
          %1375 = vmatpush1.msra.mxu0 %v1340
          %1376 = vmatprep.subr.mxu0 0.0
          %1377 = vmatpush1.msra.mxu0 %v1341
          %1378 = vmatprep.subr.mxu0 0.0
          %1379 = vmatpush1.msra.mxu0 %v1342
          %1380 = vmatprep.subr.mxu0 0.0
          %1381 = vmatpush1.msra.mxu0 %v1343
          %1382 = vmatprep.subr.mxu0 0.0
          %1383 = vmatpush1.msra.mxu0 %v1344
          %1384 = vmatprep.subr.mxu0 0.0
          %1385 = vmatpush1.msra.mxu0 %v1345
          %1386 = vmatprep.subr.mxu0 0.0
          %1387 = vmatpush1.msra.mxu0 %v1346
          %1388 = vmatprep.subr.mxu0 0.0
          %1389 = vmatpush1.msra.mxu0 %v1347
          %1390 = vmatprep.subr.mxu0 0.0
          %1391 = vmatpush1.msra.mxu0 %v1348
          %1392 = vmatprep.subr.mxu0 0.0
          %1393 = vmatpush1.msra.mxu0 %v1349
          %1394 = vmatprep.subr.mxu0 0.0
          %1395 = vmatpush1.msra.mxu0 %v1350
          %1396 = vmatprep.subr.mxu0 0.0
          %1397 = vmatpush1.msra.mxu0 %v1351
          %1398 = vmatprep.subr.mxu0 0.0
          %1399 = vmatpush1.msra.mxu0 %v1352
          %1400 = vmatprep.subr.mxu0 0.0
          %1401 = vmatpush1.msra.mxu0 0.0
          %1402 = vmatprep.subr.mxu0 0.0
          %1403 = vmatpush1.msra.mxu0 0.0
          %1404 = vmatprep.subr.mxu0 0.0
          %1405 = vmatpush1.msra.mxu0 0.0
          %1406 = vmatprep.subr.mxu0 0.0
          %1407 = vmatpush1.msra.mxu0 0.0
          %1408 = vmatprep.subr.mxu0 0.0
          %1409 = vmatpush1.msra.mxu0 0.0
          %1410 = vmatprep.subr.mxu0 0.0
          %1411 = vmatpush1.msra.mxu0 0.0
          %1412 = vmatprep.subr.mxu0 0.0
          %1413 = vmatpush1.msra.mxu0 0.0
          %1414 = vmatprep.subr.mxu0 0.0
          %1415 = vmatpush1.msra.mxu0 0.0
          %1416 = vmatprep.subr.mxu0 0.0
          %1417 = vmatpush1.msra.mxu0 0.0
          %1418 = vmatprep.subr.mxu0 0.0
          %1419 = vmatpush1.msra.mxu0 0.0
          %1420 = vmatprep.subr.mxu0 0.0
          %1421 = vmatpush1.msra.mxu0 0.0
          %1422 = vmatprep.subr.mxu0 0.0
          %1423 = vmatpush1.msra.mxu0 0.0
          %1424 = vmatprep.subr.mxu0 0.0
          %1425 = vmatpush1.msra.mxu0 0.0
          %1426 = vmatprep.subr.mxu0 0.0
          %1427 = vmatpush1.msra.mxu0 0.0
          %1428 = vmatprep.mubr.f32.mxu0 %v1362
          %1429 = vmatmul.mubr.f32.gmra.mrb[0].mxu0 %v1332
          %v1430 = vpop.f32.mrb[0].mxu0
          %v1431 = vadd.f32 %v1359, %v1430
          %v1432 = vpop.f32.mrb[0].mxu0
          %1433 = vdwg.mxu0
          %v1434 = vsel %vm415, %v1431, 0.0
          %1435 = vadd.xlane.f32.xlu0 %v1434
          %v1436 = vpop.xlane.xlu0 %1435
          %v1437 = vmul.f32 %v1436, %v698
          %v1438 = vsub.f32 %v1431, %v1437
          %v1439 = vmul.f32 %v1438, %v1438
          %v1440 = vsel %vm415, %v1439, 0.0
          %1441 = vadd.xlane.f32.xlu0 %v1440
          %v1442 = vpop.xlane.xlu0 %1441
          %v1443 = vmul.f32 %v1442, %v698
          %v1444 = vadd.f32 %v1443, 1e-05
          %v1445 = vrsqrt.pop %v1444
          %v1446 = vmul.f32 %v1438, %v1445
          %s1447 = scalar_lea.vmem %s7, 3
          %v1448 = vld [vmem:[%s1447] sm:$0x1]
          %v1450 = vlaneseq
          %v1451 = vshrl.u32 %v1450, 7
          %v1452 = vsub.s32 0, %v1451
          %v1453 = vrot.slane %v1448, %v1452
          %v1455 = vmul.f32 %v1446, %v1453
          %s1456 = scalar_lea.vmem %s8, 3
          %v1457 = vld [vmem:[%s1456] sm:$0x1]
          %v1459 = vlaneseq
          %v1460 = vshrl.u32 %v1459, 7
          %v1461 = vsub.s32 0, %v1460
          %v1462 = vrot.slane %v1457, %v1461
          %v1464 = vadd.f32 %v1455, %v1462
          %1465 = vst.msk [vmem:[#allocation2] sm:$0xff] %vm415, %v1464
          %v1466 = vxor.u32 %v1431, 2147483648
          %v1467 = vmul.f32 %v1466, 1.442695
          %v1468 = vpow.pop %v1467
          %v1469 = vadd.f32 %v1468, 1.0
          %v1470 = vrcp.pop %v1469
          %v1471 = vmul.f32 1.0, %v1470
          %1473 = vrot.lane.b32.xlu0 %v1471, 99
          %v1474 = vpop.permute.xlu0 %1473
          %vm1476 = vcmask 31768
          %1477 = vst.msk [vmem:[#allocation5] sm:$0xff] %vm1476, %v1474
          %v1478 = vld [vmem:[#allocation4] sm:$0xff]
          %1479 = vrot.lane.b32.xlu0 %v1471, 96
          %v1480 = vpop.permute.xlu0 %1479
          %v1482 = vmin.f32 %v1478, %v1480
          %v1483 = vld [vmem:[#allocation3] sm:$0xff]
          %1485 = vset.pattern.permute.xlu0 0
          %1486 = vperm.xlu0 %1485, %v1482
          %v1487 = vpop.permute.xlu0 %1486
          %v1489 = vmul.f32 %v1487, %v1464
          %v1490 = vadd.f32 %v1483, %v1489
          %1491 = vst.msk [vmem:[#allocation3] sm:$0xff] %vm415, %v1490
          %v1492 = vsub.f32 %v1478, %v1482
          %1493 = vst.msk [vmem:[#allocation4] sm:$0xff] %vm491, %v1492
          %1494 = sst [smem:[%s497]] 4
          %v1495 = vsel %vm491, %v1492, -inf
          %1496 = vmax.xlane.f32.xlu0 %v1495
          %v1497 = vpop.xlane.xlu0 %1496
          %v1498 = vrot.slane %v1497, 4
          %v1499 = vmax.f32 %v1497, %v1498
          %v1500 = vrot.slane %v1499, 2
          %v1501 = vmax.f32 %v1499, %v1500
          %v1502 = vrot.slane %v1501, 1
          %v1503 = vmax.f32 %v1501, %v1502
          %s1504 = vtos %v1503
          %p1505 = scmp.lt.f32.partialorder %s1504, 0.9
          %s1506 = scalar_select %p1505, 1, 0
          %1507 = sst [smem:[%s495]] %s1506
        $region60: #{tpu_custom_call.1} parent=55 // pred_fallthru
          _
        %s1508 = sld [smem:[#allocation6]]
        %p1509 = scmp.eq.s32.totalorder %s1508, 0
        // Predicated region
        $region61: #{tpu_custom_call.1} parent=55 // pred_check
          %p1510 = pneg %p1509
        $region62: #{tpu_custom_call.1} parent=55 // pred_check_branch
          %1512 = sbr.rel (%p1510) target = $region64
        $region63: #{tpu_custom_call.1} parent=55 // pred_region
          %v1513 = vld [vmem:[#allocation2] sm:$0xff]
          %s1514 = scalar_lea.vmem %s3, 256
          %v1515 = vld [vmem:[%s1514] sm:$0xff]
          %v1516 = vld [vmem:[%s1514 + $0x8] sm:$0xff]
          %v1517 = vld [vmem:[%s1514 + $0x10] sm:$0xff]
          %v1518 = vld [vmem:[%s1514 + $0x18] sm:$0xff]
          %v1519 = vld [vmem:[%s1514 + $0x20] sm:$0xff]
          %v1520 = vld [vmem:[%s1514 + $0x28] sm:$0xff]
          %v1521 = vld [vmem:[%s1514 + $0x30] sm:$0xff]
          %v1522 = vld [vmem:[%s1514 + $0x38] sm:$0xff]
          %s1523 = scalar_lea.vmem %s4, 8
          %v1524 = vld [vmem:[%s1523] sm:$0x3]
          %v1526 = vlaneseq
          %v1527 = vshrl.u32 %v1526, 7
          %v1528 = vsub.s32 0, %v1527
          %v1529 = vrot.slane %v1524, %v1528
          %v1530 = vlaneseq
          %v1531 = vshrl.u32 %v1530, 7
          %v1532 = vsub.s32 1, %v1531
          %v1533 = vrot.slane %v1524, %v1532
          %v1537 = vsel %vm415, %v1513, 0
          %1539 = vmatprep.subr.mxu0 %v1516
          %1540 = vmatpush1.msra.mxu0 %v1515
          %1541 = vmatprep.subr.mxu0 %v1518
          %1542 = vmatpush1.msra.mxu0 %v1517
          %1543 = vmatprep.subr.mxu0 %v1520
          %1544 = vmatpush1.msra.mxu0 %v1519
          %1545 = vmatprep.subr.mxu0 %v1522
          %1546 = vmatpush1.msra.mxu0 %v1521
          %1547 = vmatprep.subr.mxu0 0.0
          %1548 = vmatpush1.msra.mxu0 0.0
          %1549 = vmatprep.subr.mxu0 0.0
          %1550 = vmatpush1.msra.mxu0 0.0
          %1551 = vmatprep.subr.mxu0 0.0
          %1552 = vmatpush1.msra.mxu0 0.0
          %1553 = vmatprep.subr.mxu0 0.0
          %1554 = vmatpush1.msra.mxu0 0.0
          %1555 = vmatprep.subr.mxu0 0.0
          %1556 = vmatpush1.msra.mxu0 0.0
          %1557 = vmatprep.subr.mxu0 0.0
          %1558 = vmatpush1.msra.mxu0 0.0
          %1559 = vmatprep.subr.mxu0 0.0
          %1560 = vmatpush1.msra.mxu0 0.0
          %1561 = vmatprep.subr.mxu0 0.0
          %1562 = vmatpush1.msra.mxu0 0.0
          %1563 = vmatprep.subr.mxu0 0.0
          %1564 = vmatpush1.msra.mxu0 0.0
          %1565 = vmatprep.subr.mxu0 0.0
          %1566 = vmatpush1.msra.mxu0 0.0
          %1567 = vmatprep.subr.mxu0 0.0
          %1568 = vmatpush1.msra.mxu0 0.0
          %1569 = vmatprep.subr.mxu0 0.0
          %1570 = vmatpush1.msra.mxu0 0.0
          %1571 = vmatprep.subr.mxu0 0.0
          %1572 = vmatpush1.msra.mxu0 0.0
          %1573 = vmatprep.subr.mxu0 0.0
          %1574 = vmatpush1.msra.mxu0 0.0
          %1575 = vmatprep.subr.mxu0 0.0
          %1576 = vmatpush1.msra.mxu0 0.0
          %1577 = vmatprep.subr.mxu0 0.0
          %1578 = vmatpush1.msra.mxu0 0.0
          %1579 = vmatprep.subr.mxu0 0.0
          %1580 = vmatpush1.msra.mxu0 0.0
          %1581 = vmatprep.subr.mxu0 0.0
          %1582 = vmatpush1.msra.mxu0 0.0
          %1583 = vmatprep.subr.mxu0 0.0
          %1584 = vmatpush1.msra.mxu0 0.0
          %1585 = vmatprep.subr.mxu0 0.0
          %1586 = vmatpush1.msra.mxu0 0.0
          %1587 = vmatprep.subr.mxu0 0.0
          %1588 = vmatpush1.msra.mxu0 0.0
          %1589 = vmatprep.subr.mxu0 0.0
          %1590 = vmatpush1.msra.mxu0 0.0
          %1591 = vmatprep.subr.mxu0 0.0
          %1592 = vmatpush1.msra.mxu0 0.0
          %1593 = vmatprep.subr.mxu0 0.0
          %1594 = vmatpush1.msra.mxu0 0.0
          %1595 = vmatprep.subr.mxu0 0.0
          %1596 = vmatpush1.msra.mxu0 0.0
          %1597 = vmatprep.subr.mxu0 0.0
          %1598 = vmatpush1.msra.mxu0 0.0
          %1599 = vmatprep.subr.mxu0 0.0
          %1600 = vmatpush1.msra.mxu0 0.0
          %1601 = vmatprep.subr.mxu0 0.0
          %1602 = vmatpush1.msra.mxu0 0.0
          %1603 = vmatprep.mubr.f32.mxu0 0.0
          %1604 = vmatmul.mubr.f32.gmra.mrb[0].mxu0 %v1537
          %v1605 = vpop.f32.mrb[0].mxu0
          %v1606 = vadd.f32 %v1529, %v1605
          %v1607 = vpop.f32.mrb[0].mxu0
          %v1608 = vadd.f32 %v1533, %v1607
          %1609 = vdwg.mxu0
          %v1610 = vmax.f32 %v1606, 0.0
          %v1611 = vmax.f32 %v1608, 0.0
          %s1612 = scalar_lea.vmem %s5, 576
          %v1613 = vld [vmem:[%s1612] sm:$0xff]
          %v1614 = vld [vmem:[%s1612 + $0x8] sm:$0xff]
          %v1615 = vld [vmem:[%s1612 + $0x10] sm:$0xff]
          %v1616 = vld [vmem:[%s1612 + $0x18] sm:$0xff]
          %v1617 = vld [vmem:[%s1612 + $0x20] sm:$0xff]
          %v1618 = vld [vmem:[%s1612 + $0x28] sm:$0xff]
          %v1619 = vld [vmem:[%s1612 + $0x30] sm:$0xff]
          %v1620 = vld [vmem:[%s1612 + $0x38] sm:$0xff]
          %v1621 = vld [vmem:[%s1612 + $0x40] sm:$0xff]
          %v1622 = vld [vmem:[%s1612 + $0x48] sm:$0xff]
          %v1623 = vld [vmem:[%s1612 + $0x50] sm:$0xff]
          %v1624 = vld [vmem:[%s1612 + $0x58] sm:$0xff]
          %v1625 = vld [vmem:[%s1612 + $0x60] sm:$0xff]
          %v1626 = vld [vmem:[%s1612 + $0x68] sm:$0xff]
          %v1627 = vld [vmem:[%s1612 + $0x70] sm:$0xff]
          %v1628 = vld [vmem:[%s1612 + $0x78] sm:$0xff]
          %v1629 = vld [vmem:[%s1612 + $0x80] sm:$0xff]
          %v1630 = vld [vmem:[%s1612 + $0x88] sm:$0xff]
          %s1631 = scalar_lea.vmem %s6, 4
          %v1632 = vld [vmem:[%s1631] sm:$0x1]
          %v1634 = vlaneseq
          %v1635 = vshrl.u32 %v1634, 7
          %v1636 = vsub.s32 0, %v1635
          %v1637 = vrot.slane %v1632, %v1636
          %v1640 = vsel %vm621, %v1611, 0
          %1642 = vmatprep.subr.mxu0 0.0
          %1643 = vmatpush1.msra.mxu0 %v1613
          %1644 = vmatprep.subr.mxu0 0.0
          %1645 = vmatpush1.msra.mxu0 %v1614
          %1646 = vmatprep.subr.mxu0 0.0
          %1647 = vmatpush1.msra.mxu0 %v1615
          %1648 = vmatprep.subr.mxu0 0.0
          %1649 = vmatpush1.msra.mxu0 %v1616
          %1650 = vmatprep.subr.mxu0 0.0
          %1651 = vmatpush1.msra.mxu0 %v1617
          %1652 = vmatprep.subr.mxu0 0.0
          %1653 = vmatpush1.msra.mxu0 %v1618
          %1654 = vmatprep.subr.mxu0 0.0
          %1655 = vmatpush1.msra.mxu0 %v1619
          %1656 = vmatprep.subr.mxu0 0.0
          %1657 = vmatpush1.msra.mxu0 %v1620
          %1658 = vmatprep.subr.mxu0 0.0
          %1659 = vmatpush1.msra.mxu0 %v1621
          %1660 = vmatprep.subr.mxu0 0.0
          %1661 = vmatpush1.msra.mxu0 %v1622
          %1662 = vmatprep.subr.mxu0 0.0
          %1663 = vmatpush1.msra.mxu0 %v1623
          %1664 = vmatprep.subr.mxu0 0.0
          %1665 = vmatpush1.msra.mxu0 %v1624
          %1666 = vmatprep.subr.mxu0 0.0
          %1667 = vmatpush1.msra.mxu0 %v1625
          %1668 = vmatprep.subr.mxu0 0.0
          %1669 = vmatpush1.msra.mxu0 %v1626
          %1670 = vmatprep.subr.mxu0 0.0
          %1671 = vmatpush1.msra.mxu0 %v1627
          %1672 = vmatprep.subr.mxu0 0.0
          %1673 = vmatpush1.msra.mxu0 %v1628
          %1674 = vmatprep.subr.mxu0 0.0
          %1675 = vmatpush1.msra.mxu0 %v1629
          %1676 = vmatprep.subr.mxu0 0.0
          %1677 = vmatpush1.msra.mxu0 %v1630
          %1678 = vmatprep.subr.mxu0 0.0
          %1679 = vmatpush1.msra.mxu0 0.0
          %1680 = vmatprep.subr.mxu0 0.0
          %1681 = vmatpush1.msra.mxu0 0.0
          %1682 = vmatprep.subr.mxu0 0.0
          %1683 = vmatpush1.msra.mxu0 0.0
          %1684 = vmatprep.subr.mxu0 0.0
          %1685 = vmatpush1.msra.mxu0 0.0
          %1686 = vmatprep.subr.mxu0 0.0
          %1687 = vmatpush1.msra.mxu0 0.0
          %1688 = vmatprep.subr.mxu0 0.0
          %1689 = vmatpush1.msra.mxu0 0.0
          %1690 = vmatprep.subr.mxu0 0.0
          %1691 = vmatpush1.msra.mxu0 0.0
          %1692 = vmatprep.subr.mxu0 0.0
          %1693 = vmatpush1.msra.mxu0 0.0
          %1694 = vmatprep.subr.mxu0 0.0
          %1695 = vmatpush1.msra.mxu0 0.0
          %1696 = vmatprep.subr.mxu0 0.0
          %1697 = vmatpush1.msra.mxu0 0.0
          %1698 = vmatprep.subr.mxu0 0.0
          %1699 = vmatpush1.msra.mxu0 0.0
          %1700 = vmatprep.subr.mxu0 0.0
          %1701 = vmatpush1.msra.mxu0 0.0
          %1702 = vmatprep.subr.mxu0 0.0
          %1703 = vmatpush1.msra.mxu0 0.0
          %1704 = vmatprep.subr.mxu0 0.0
          %1705 = vmatpush1.msra.mxu0 0.0
          %1706 = vmatprep.mubr.f32.mxu0 %v1640
          %1707 = vmatmul.mubr.f32.gmra.mrb[0].mxu0 %v1610
          %v1708 = vpop.f32.mrb[0].mxu0
          %v1709 = vadd.f32 %v1637, %v1708
          %v1710 = vpop.f32.mrb[0].mxu0
          %1711 = vdwg.mxu0
          %v1712 = vsel %vm415, %v1709, 0.0
          %1713 = vadd.xlane.f32.xlu0 %v1712
          %v1714 = vpop.xlane.xlu0 %1713
          %v1715 = vmul.f32 %v1714, %v698
          %v1716 = vsub.f32 %v1709, %v1715
          %v1717 = vmul.f32 %v1716, %v1716
          %v1718 = vsel %vm415, %v1717, 0.0
          %1719 = vadd.xlane.f32.xlu0 %v1718
          %v1720 = vpop.xlane.xlu0 %1719
          %v1721 = vmul.f32 %v1720, %v698
          %v1722 = vadd.f32 %v1721, 1e-05
          %v1723 = vrsqrt.pop %v1722
          %v1724 = vmul.f32 %v1716, %v1723
          %s1725 = scalar_lea.vmem %s7, 4
          %v1726 = vld [vmem:[%s1725] sm:$0x1]
          %v1728 = vlaneseq
          %v1729 = vshrl.u32 %v1728, 7
          %v1730 = vsub.s32 0, %v1729
          %v1731 = vrot.slane %v1726, %v1730
          %v1733 = vmul.f32 %v1724, %v1731
          %s1734 = scalar_lea.vmem %s8, 4
          %v1735 = vld [vmem:[%s1734] sm:$0x1]
          %v1737 = vlaneseq
          %v1738 = vshrl.u32 %v1737, 7
          %v1739 = vsub.s32 0, %v1738
          %v1740 = vrot.slane %v1735, %v1739
          %v1742 = vadd.f32 %v1733, %v1740
          %1743 = vst.msk [vmem:[#allocation2] sm:$0xff] %vm415, %v1742
          %v1744 = vxor.u32 %v1709, 2147483648
          %v1745 = vmul.f32 %v1744, 1.442695
          %v1746 = vpow.pop %v1745
          %v1747 = vadd.f32 %v1746, 1.0
          %v1748 = vrcp.pop %v1747
          %v1749 = vmul.f32 1.0, %v1748
          %1751 = vrot.lane.b32.xlu0 %v1749, 100
          %v1752 = vpop.permute.xlu0 %1751
          %vm1754 = vcmask 39968
          %1755 = vst.msk [vmem:[#allocation5] sm:$0xff] %vm1754, %v1752
          %v1756 = vld [vmem:[#allocation4] sm:$0xff]
          %1757 = vrot.lane.b32.xlu0 %v1749, 96
          %v1758 = vpop.permute.xlu0 %1757
          %v1760 = vmin.f32 %v1756, %v1758
          %v1761 = vld [vmem:[#allocation3] sm:$0xff]
          %1763 = vset.pattern.permute.xlu0 0
          %1764 = vperm.xlu0 %1763, %v1760
          %v1765 = vpop.permute.xlu0 %1764
          %v1767 = vmul.f32 %v1765, %v1742
          %v1768 = vadd.f32 %v1761, %v1767
          %1769 = vst.msk [vmem:[#allocation3] sm:$0xff] %vm415, %v1768
          %v1770 = vsub.f32 %v1756, %v1760
          %1771 = vst.msk [vmem:[#allocation4] sm:$0xff] %vm491, %v1770
          %1772 = sst [smem:[%s497]] 5
          %v1773 = vsel %vm491, %v1770, -inf
          %1774 = vmax.xlane.f32.xlu0 %v1773
          %v1775 = vpop.xlane.xlu0 %1774
          %v1776 = vrot.slane %v1775, 4
          %v1777 = vmax.f32 %v1775, %v1776
          %v1778 = vrot.slane %v1777, 2
          %v1779 = vmax.f32 %v1777, %v1778
          %v1780 = vrot.slane %v1779, 1
          %v1781 = vmax.f32 %v1779, %v1780
          %s1782 = vtos %v1781
          %p1783 = scmp.lt.f32.partialorder %s1782, 0.9
          %s1784 = scalar_select %p1783, 1, 0
          %1785 = sst [smem:[%s495]] %s1784
        $region64: #{tpu_custom_call.1} parent=55 // pred_fallthru
          _
        %s1786 = sld [smem:[#allocation6]]
        %p1787 = scmp.eq.s32.totalorder %s1786, 0
        // Predicated region
        $region65: #{tpu_custom_call.1} parent=55 // pred_check
          %p1788 = pneg %p1787
        $region66: #{tpu_custom_call.1} parent=55 // pred_check_branch
          %1790 = sbr.rel (%p1788) target = $region68
        $region67: #{tpu_custom_call.1} parent=55 // pred_region
          %v1791 = vld [vmem:[#allocation2] sm:$0xff]
          %s1792 = scalar_lea.vmem %s3, 320
          %v1793 = vld [vmem:[%s1792] sm:$0xff]
          %v1794 = vld [vmem:[%s1792 + $0x8] sm:$0xff]
          %v1795 = vld [vmem:[%s1792 + $0x10] sm:$0xff]
          %v1796 = vld [vmem:[%s1792 + $0x18] sm:$0xff]
          %v1797 = vld [vmem:[%s1792 + $0x20] sm:$0xff]
          %v1798 = vld [vmem:[%s1792 + $0x28] sm:$0xff]
          %v1799 = vld [vmem:[%s1792 + $0x30] sm:$0xff]
          %v1800 = vld [vmem:[%s1792 + $0x38] sm:$0xff]
          %s1801 = scalar_lea.vmem %s4, 10
          %v1802 = vld [vmem:[%s1801] sm:$0x3]
          %v1804 = vlaneseq
          %v1805 = vshrl.u32 %v1804, 7
          %v1806 = vsub.s32 0, %v1805
          %v1807 = vrot.slane %v1802, %v1806
          %v1808 = vlaneseq
          %v1809 = vshrl.u32 %v1808, 7
          %v1810 = vsub.s32 1, %v1809
          %v1811 = vrot.slane %v1802, %v1810
          %v1815 = vsel %vm415, %v1791, 0
          %1817 = vmatprep.subr.mxu0 %v1794
          %1818 = vmatpush1.msra.mxu0 %v1793
          %1819 = vmatprep.subr.mxu0 %v1796
          %1820 = vmatpush1.msra.mxu0 %v1795
          %1821 = vmatprep.subr.mxu0 %v1798
          %1822 = vmatpush1.msra.mxu0 %v1797
          %1823 = vmatprep.subr.mxu0 %v1800
          %1824 = vmatpush1.msra.mxu0 %v1799
          %1825 = vmatprep.subr.mxu0 0.0
          %1826 = vmatpush1.msra.mxu0 0.0
          %1827 = vmatprep.subr.mxu0 0.0
          %1828 = vmatpush1.msra.mxu0 0.0
          %1829 = vmatprep.subr.mxu0 0.0
          %1830 = vmatpush1.msra.mxu0 0.0
          %1831 = vmatprep.subr.mxu0 0.0
          %1832 = vmatpush1.msra.mxu0 0.0
          %1833 = vmatprep.subr.mxu0 0.0
          %1834 = vmatpush1.msra.mxu0 0.0
          %1835 = vmatprep.subr.mxu0 0.0
          %1836 = vmatpush1.msra.mxu0 0.0
          %1837 = vmatprep.subr.mxu0 0.0
          %1838 = vmatpush1.msra.mxu0 0.0
          %1839 = vmatprep.subr.mxu0 0.0
          %1840 = vmatpush1.msra.mxu0 0.0
          %1841 = vmatprep.subr.mxu0 0.0
          %1842 = vmatpush1.msra.mxu0 0.0
          %1843 = vmatprep.subr.mxu0 0.0
          %1844 = vmatpush1.msra.mxu0 0.0
          %1845 = vmatprep.subr.mxu0 0.0
          %1846 = vmatpush1.msra.mxu0 0.0
          %1847 = vmatprep.subr.mxu0 0.0
          %1848 = vmatpush1.msra.mxu0 0.0
          %1849 = vmatprep.subr.mxu0 0.0
          %1850 = vmatpush1.msra.mxu0 0.0
          %1851 = vmatprep.subr.mxu0 0.0
          %1852 = vmatpush1.msra.mxu0 0.0
          %1853 = vmatprep.subr.mxu0 0.0
          %1854 = vmatpush1.msra.mxu0 0.0
          %1855 = vmatprep.subr.mxu0 0.0
          %1856 = vmatpush1.msra.mxu0 0.0
          %1857 = vmatprep.subr.mxu0 0.0
          %1858 = vmatpush1.msra.mxu0 0.0
          %1859 = vmatprep.subr.mxu0 0.0
          %1860 = vmatpush1.msra.mxu0 0.0
          %1861 = vmatprep.subr.mxu0 0.0
          %1862 = vmatpush1.msra.mxu0 0.0
          %1863 = vmatprep.subr.mxu0 0.0
          %1864 = vmatpush1.msra.mxu0 0.0
          %1865 = vmatprep.subr.mxu0 0.0
          %1866 = vmatpush1.msra.mxu0 0.0
          %1867 = vmatprep.subr.mxu0 0.0
          %1868 = vmatpush1.msra.mxu0 0.0
          %1869 = vmatprep.subr.mxu0 0.0
          %1870 = vmatpush1.msra.mxu0 0.0
          %1871 = vmatprep.subr.mxu0 0.0
          %1872 = vmatpush1.msra.mxu0 0.0
          %1873 = vmatprep.subr.mxu0 0.0
          %1874 = vmatpush1.msra.mxu0 0.0
          %1875 = vmatprep.subr.mxu0 0.0
          %1876 = vmatpush1.msra.mxu0 0.0
          %1877 = vmatprep.subr.mxu0 0.0
          %1878 = vmatpush1.msra.mxu0 0.0
          %1879 = vmatprep.subr.mxu0 0.0
          %1880 = vmatpush1.msra.mxu0 0.0
          %1881 = vmatprep.mubr.f32.mxu0 0.0
          %1882 = vmatmul.mubr.f32.gmra.mrb[0].mxu0 %v1815
          %v1883 = vpop.f32.mrb[0].mxu0
          %v1884 = vadd.f32 %v1807, %v1883
          %v1885 = vpop.f32.mrb[0].mxu0
          %v1886 = vadd.f32 %v1811, %v1885
          %1887 = vdwg.mxu0
          %v1888 = vmax.f32 %v1884, 0.0
          %v1889 = vmax.f32 %v1886, 0.0
          %s1890 = scalar_lea.vmem %s5, 720
          %v1891 = vld [vmem:[%s1890] sm:$0xff]
          %v1892 = vld [vmem:[%s1890 + $0x8] sm:$0xff]
          %v1893 = vld [vmem:[%s1890 + $0x10] sm:$0xff]
          %v1894 = vld [vmem:[%s1890 + $0x18] sm:$0xff]
          %v1895 = vld [vmem:[%s1890 + $0x20] sm:$0xff]
          %v1896 = vld [vmem:[%s1890 + $0x28] sm:$0xff]
          %v1897 = vld [vmem:[%s1890 + $0x30] sm:$0xff]
          %v1898 = vld [vmem:[%s1890 + $0x38] sm:$0xff]
          %v1899 = vld [vmem:[%s1890 + $0x40] sm:$0xff]
          %v1900 = vld [vmem:[%s1890 + $0x48] sm:$0xff]
          %v1901 = vld [vmem:[%s1890 + $0x50] sm:$0xff]
          %v1902 = vld [vmem:[%s1890 + $0x58] sm:$0xff]
          %v1903 = vld [vmem:[%s1890 + $0x60] sm:$0xff]
          %v1904 = vld [vmem:[%s1890 + $0x68] sm:$0xff]
          %v1905 = vld [vmem:[%s1890 + $0x70] sm:$0xff]
          %v1906 = vld [vmem:[%s1890 + $0x78] sm:$0xff]
          %v1907 = vld [vmem:[%s1890 + $0x80] sm:$0xff]
          %v1908 = vld [vmem:[%s1890 + $0x88] sm:$0xff]
          %s1909 = scalar_lea.vmem %s6, 5
          %v1910 = vld [vmem:[%s1909] sm:$0x1]
          %v1912 = vlaneseq
          %v1913 = vshrl.u32 %v1912, 7
          %v1914 = vsub.s32 0, %v1913
          %v1915 = vrot.slane %v1910, %v1914
          %v1918 = vsel %vm621, %v1889, 0
          %1920 = vmatprep.subr.mxu0 0.0
          %1921 = vmatpush1.msra.mxu0 %v1891
          %1922 = vmatprep.subr.mxu0 0.0
          %1923 = vmatpush1.msra.mxu0 %v1892
          %1924 = vmatprep.subr.mxu0 0.0
          %1925 = vmatpush1.msra.mxu0 %v1893
          %1926 = vmatprep.subr.mxu0 0.0
          %1927 = vmatpush1.msra.mxu0 %v1894
          %1928 = vmatprep.subr.mxu0 0.0
          %1929 = vmatpush1.msra.mxu0 %v1895
          %1930 = vmatprep.subr.mxu0 0.0
          %1931 = vmatpush1.msra.mxu0 %v1896
          %1932 = vmatprep.subr.mxu0 0.0
          %1933 = vmatpush1.msra.mxu0 %v1897
          %1934 = vmatprep.subr.mxu0 0.0
          %1935 = vmatpush1.msra.mxu0 %v1898
          %1936 = vmatprep.subr.mxu0 0.0
          %1937 = vmatpush1.msra.mxu0 %v1899
          %1938 = vmatprep.subr.mxu0 0.0
          %1939 = vmatpush1.msra.mxu0 %v1900
          %1940 = vmatprep.subr.mxu0 0.0
          %1941 = vmatpush1.msra.mxu0 %v1901
          %1942 = vmatprep.subr.mxu0 0.0
          %1943 = vmatpush1.msra.mxu0 %v1902
          %1944 = vmatprep.subr.mxu0 0.0
          %1945 = vmatpush1.msra.mxu0 %v1903
          %1946 = vmatprep.subr.mxu0 0.0
          %1947 = vmatpush1.msra.mxu0 %v1904
          %1948 = vmatprep.subr.mxu0 0.0
          %1949 = vmatpush1.msra.mxu0 %v1905
          %1950 = vmatprep.subr.mxu0 0.0
          %1951 = vmatpush1.msra.mxu0 %v1906
          %1952 = vmatprep.subr.mxu0 0.0
          %1953 = vmatpush1.msra.mxu0 %v1907
          %1954 = vmatprep.subr.mxu0 0.0
          %1955 = vmatpush1.msra.mxu0 %v1908
          %1956 = vmatprep.subr.mxu0 0.0
          %1957 = vmatpush1.msra.mxu0 0.0
          %1958 = vmatprep.subr.mxu0 0.0
          %1959 = vmatpush1.msra.mxu0 0.0
          %1960 = vmatprep.subr.mxu0 0.0
          %1961 = vmatpush1.msra.mxu0 0.0
          %1962 = vmatprep.subr.mxu0 0.0
          %1963 = vmatpush1.msra.mxu0 0.0
          %1964 = vmatprep.subr.mxu0 0.0
          %1965 = vmatpush1.msra.mxu0 0.0
          %1966 = vmatprep.subr.mxu0 0.0
          %1967 = vmatpush1.msra.mxu0 0.0
          %1968 = vmatprep.subr.mxu0 0.0
          %1969 = vmatpush1.msra.mxu0 0.0
          %1970 = vmatprep.subr.mxu0 0.0
          %1971 = vmatpush1.msra.mxu0 0.0
          %1972 = vmatprep.subr.mxu0 0.0
          %1973 = vmatpush1.msra.mxu0 0.0
          %1974 = vmatprep.subr.mxu0 0.0
          %1975 = vmatpush1.msra.mxu0 0.0
          %1976 = vmatprep.subr.mxu0 0.0
          %1977 = vmatpush1.msra.mxu0 0.0
          %1978 = vmatprep.subr.mxu0 0.0
          %1979 = vmatpush1.msra.mxu0 0.0
          %1980 = vmatprep.subr.mxu0 0.0
          %1981 = vmatpush1.msra.mxu0 0.0
          %1982 = vmatprep.subr.mxu0 0.0
          %1983 = vmatpush1.msra.mxu0 0.0
          %1984 = vmatprep.mubr.f32.mxu0 %v1918
          %1985 = vmatmul.mubr.f32.gmra.mrb[0].mxu0 %v1888
          %v1986 = vpop.f32.mrb[0].mxu0
          %v1987 = vadd.f32 %v1915, %v1986
          %v1988 = vpop.f32.mrb[0].mxu0
          %1989 = vdwg.mxu0
          %v1990 = vsel %vm415, %v1987, 0.0
          %1991 = vadd.xlane.f32.xlu0 %v1990
          %v1992 = vpop.xlane.xlu0 %1991
          %v1993 = vmul.f32 %v1992, %v698
          %v1994 = vsub.f32 %v1987, %v1993
          %v1995 = vmul.f32 %v1994, %v1994
          %v1996 = vsel %vm415, %v1995, 0.0
          %1997 = vadd.xlane.f32.xlu0 %v1996
          %v1998 = vpop.xlane.xlu0 %1997
          %v1999 = vmul.f32 %v1998, %v698
          %v2000 = vadd.f32 %v1999, 1e-05
          %v2001 = vrsqrt.pop %v2000
          %v2002 = vmul.f32 %v1994, %v2001
          %s2003 = scalar_lea.vmem %s7, 5
          %v2004 = vld [vmem:[%s2003] sm:$0x1]
          %v2006 = vlaneseq
          %v2007 = vshrl.u32 %v2006, 7
          %v2008 = vsub.s32 0, %v2007
          %v2009 = vrot.slane %v2004, %v2008
          %v2011 = vmul.f32 %v2002, %v2009
          %s2012 = scalar_lea.vmem %s8, 5
          %v2013 = vld [vmem:[%s2012] sm:$0x1]
          %v2015 = vlaneseq
          %v2016 = vshrl.u32 %v2015, 7
          %v2017 = vsub.s32 0, %v2016
          %v2018 = vrot.slane %v2013, %v2017
          %v2020 = vadd.f32 %v2011, %v2018
          %2021 = vst.msk [vmem:[#allocation2] sm:$0xff] %vm415, %v2020
          %v2022 = vxor.u32 %v1987, 2147483648
          %v2023 = vmul.f32 %v2022, 1.442695
          %v2024 = vpow.pop %v2023
          %v2025 = vadd.f32 %v2024, 1.0
          %v2026 = vrcp.pop %v2025
          %v2027 = vmul.f32 1.0, %v2026
          %2029 = vrot.lane.b32.xlu0 %v2027, 101
          %v2030 = vpop.permute.xlu0 %2029
          %vm2032 = vcmask 48168
          %2033 = vst.msk [vmem:[#allocation5] sm:$0xff] %vm2032, %v2030
          %v2034 = vld [vmem:[#allocation4] sm:$0xff]
          %2035 = vrot.lane.b32.xlu0 %v2027, 96
          %v2036 = vpop.permute.xlu0 %2035
          %v2038 = vmin.f32 %v2034, %v2036
          %v2039 = vld [vmem:[#allocation3] sm:$0xff]
          %2041 = vset.pattern.permute.xlu0 0
          %2042 = vperm.xlu0 %2041, %v2038
          %v2043 = vpop.permute.xlu0 %2042
          %v2045 = vmul.f32 %v2043, %v2020
          %v2046 = vadd.f32 %v2039, %v2045
          %2047 = vst.msk [vmem:[#allocation3] sm:$0xff] %vm415, %v2046
          %v2048 = vsub.f32 %v2034, %v2038
          %2049 = vst.msk [vmem:[#allocation4] sm:$0xff] %vm491, %v2048
          %2050 = sst [smem:[%s497]] 6
          %v2051 = vsel %vm491, %v2048, -inf
          %2052 = vmax.xlane.f32.xlu0 %v2051
          %v2053 = vpop.xlane.xlu0 %2052
          %v2054 = vrot.slane %v2053, 4
          %v2055 = vmax.f32 %v2053, %v2054
          %v2056 = vrot.slane %v2055, 2
          %v2057 = vmax.f32 %v2055, %v2056
          %v2058 = vrot.slane %v2057, 1
          %v2059 = vmax.f32 %v2057, %v2058
          %s2060 = vtos %v2059
          %p2061 = scmp.lt.f32.partialorder %s2060, 0.9
          %s2062 = scalar_select %p2061, 1, 0
          %2063 = sst [smem:[%s495]] %s2062
        $region68: #{tpu_custom_call.1} parent=55 // pred_fallthru
          _
        %v2064 = vld [vmem:[#allocation4] sm:$0xff]
        %v2065 = vld [vmem:[#allocation3] sm:$0xff]
        %v2066 = vsel %vm491, %v2064, 0.0
        %2067 = vadd.xlane.f32.xlu0 %v2066
        %v2068 = vpop.xlane.xlu0 %2067
        %v2069 = vrot.slane %v2068, 4
        %v2070 = vadd.f32 %v2068, %v2069
        %v2071 = vrot.slane %v2070, 2
        %v2072 = vadd.f32 %v2070, %v2071
        %v2073 = vrot.slane %v2072, 1
        %v2074 = vadd.f32 %v2072, %v2073
        %s2075 = vtos %v2074
        %p2076 = scmp.gt.f32.partialorder %s2075, 0.0
        %v2077 = vld [vmem:[#allocation2] sm:$0xff]
        %2079 = vset.pattern.permute.xlu0 0
        %2080 = vperm.xlu0 %2079, %v2064
        %v2081 = vpop.permute.xlu0 %2080
        %v2083 = vmul.f32 %v2081, %v2077
        %v2084 = vadd.f32 %v2065, %v2083
        %s2085 = scalar_select %p2076, 1, 0
        %v2086 = vstv %s2085
        %vm2087 = vcmp.eq.s32.totalorder %v2086, 1
        %v2088 = vsel %vm2087, %v2084, %v2065
        %2089 = vst.msk [vmem:[%s378] sm:$0xff] %vm415, %v2088
        %v2090 = vld [vmem:[#allocation5] sm:$0xff]
        %2091 = vst.msk [vmem:[%s398] sm:$0xff] %vm493, %v2090
        %s2092 = sld [smem:[#allocation7]]
        %v2093 = vstv %s2092
        %2094 = vst.msk [vmem:[%s402] sm:$0xff] %vm491, %v2093
        %s2095 = sand.u32 %s228, 1
        %s2096 = scalar_lea.sflag [#allocation9], %s2095
        %s2097 = sand.u32 %s228, 1
        %s2098 = smul.addr %s2097, 8
        %s2099 = scalar_lea.vmem [#allocation8], %s2098
        %p2100 = scmp.lt.s32.totalorder %s26, 1
        %s2101 = scalar_select %p2100, %s26, 1
        %s2102 = smul.addr %s2101, 8
        %s2103 = scalar_lea.vmem %s10, %s2102
        %p2104 = scmp.lt.s32.totalorder %s26, 1
        %s2105 = scalar_select %p2104, %s26, 1
        %s2106 = smul.addr %s2105, 8
        %s2107 = scalar_lea.vmem %s11, %s2106
        // Predicated region
        $region69: #{tpu_custom_call.1} parent=55 // pred_check
          %p2108 = pneg %p238
        $region70: #{tpu_custom_call.1} parent=55 // pred_check_branch
          %2110 = sbr.rel (%p2108) target = $region72
        $region71: #{tpu_custom_call.1} parent=55 // pred_region
          %s2112 = ssub.s32 128, 128
          %2113 = vsyncadd %s2096, %s2112
          %s2114 = smul.addr %s26, 128
          %s2115 = scalar_lea.hbm %s9, %s2114
          %s2117 = sshll.u32 %s2099, 4
          %s2118 = int_to_ptr.vmem [resolvable:$true] %s2117
          %2120 = dma.vmem_to_hbm [thread:$0]  %s2118, 128, %s2115, %s2096
        $region72: #{tpu_custom_call.1} parent=55 // pred_fallthru
          _
        // Predicated region
        $region73: #{tpu_custom_call.1} parent=55 // pred_check
          %p2121 = pneg %p264
        $region74: #{tpu_custom_call.1} parent=55 // pred_check_branch
          %2123 = sbr.rel (%p2121) target = $region76
        $region75: #{tpu_custom_call.1} parent=55 // pred_region
          _
        $region76: #{tpu_custom_call.1} parent=55 // pred_fallthru
          _
        // Predicated region
        $region77: #{tpu_custom_call.1} parent=55 // pred_check
          %p2124 = pneg %p290
        $region78: #{tpu_custom_call.1} parent=55 // pred_check_branch
          %2126 = sbr.rel (%p2124) target = $region80
        $region79: #{tpu_custom_call.1} parent=55 // pred_region
          _
        $region80: #{tpu_custom_call.1} parent=55 // pred_fallthru
          _
      $region56: #{tpu_custom_call.1} parent=5 // pred_fallthru
        _
      %p2127 = scmp.le.s32.totalorder 2, %s21
      // Predicated region
      $region81: #{tpu_custom_call.1} parent=5 // pred_check
        %p2128 = pneg %p2127
      $region82: #{tpu_custom_call.1} parent=5 // pred_check_branch
        %2130 = sbr.rel (%p2128) target = $region84
      $region83: #{tpu_custom_call.1} parent=5 // pred_region
        %s2131 = ssub.s32 %s21, 2
        // Predicated region
        $region85: #{tpu_custom_call.1} parent=83 // pred_check
          %p2132 = pneg %p244
        $region86: #{tpu_custom_call.1} parent=83 // pred_check_branch
          %2134 = sbr.rel (%p2132) target = $region88
        $region87: #{tpu_custom_call.1} parent=83 // pred_region
          %s2135 = sand.u32 %s229, 1
          %s2136 = scalar_lea.sflag [#allocation9], %s2135
          %s2137 = sand.u32 %s229, 1
          %s2138 = smul.addr %s2137, 8
          %s2139 = scalar_lea.vmem [#allocation8], %s2138
          %2140 = dma.done %s2136, 128
        $region88: #{tpu_custom_call.1} parent=83 // pred_fallthru
          _
        // Predicated region
        $region89: #{tpu_custom_call.1} parent=83 // pred_check
          %p2141 = pneg %p270
        $region90: #{tpu_custom_call.1} parent=83 // pred_check_branch
          %2143 = sbr.rel (%p2141) target = $region92
        $region91: #{tpu_custom_call.1} parent=83 // pred_region
          %p2144 = scmp.lt.s32.totalorder %s27, 1
          %s2145 = scalar_select %p2144, %s27, 1
          %s2146 = smul.addr %s2145, 8
          %s2147 = scalar_lea.vmem %s10, %s2146
        $region92: #{tpu_custom_call.1} parent=83 // pred_fallthru
          _
        // Predicated region
        $region93: #{tpu_custom_call.1} parent=83 // pred_check
          %p2148 = pneg %p296
        $region94: #{tpu_custom_call.1} parent=83 // pred_check_branch
          %2150 = sbr.rel (%p2148) target = $region96
        $region95: #{tpu_custom_call.1} parent=83 // pred_region
          %p2151 = scmp.lt.s32.totalorder %s27, 1
          %s2152 = scalar_select %p2151, %s27, 1
          %s2153 = smul.addr %s2152, 8
          %s2154 = scalar_lea.vmem %s11, %s2153
        $region96: #{tpu_custom_call.1} parent=83 // pred_fallthru
          _
      $region84: #{tpu_custom_call.1} parent=5 // pred_fallthru
        _
    $region6: #{tpu_custom_call.1} parent=1 // loop_footer
      %s25 = sadd.s32 1, %s21
    $region7: #{tpu_custom_call.1} parent=1 // loop_footer_branch
      %20 = sbr.rel target = $region3
    $region8: #{tpu_custom_call.1} parent=1 // loop_exit
      _
    %2155 = vsyncpa [#allocation9], 1
    %s2156 = scalar_lea.sflag [#allocation9], 1
    %2157 = vsyncpa %s2156, 1

</llo_original>
